<compile_context>
chip_gen: v6e
topology: v6e:2x2x1
jax: 0.10.0
libtpu: 0.0.40
codegen_flags: <defaults>
</compile_context>

<pallas_src>
import jax
import jax.numpy as jnp
from jax.experimental import pallas as pl
from jax.experimental.pallas import tpu as pltpu

EPS = 1e-5


# --------------------------------------------------------------------------
# Fused Pallas kernel (one grid step == one batch element)
# --------------------------------------------------------------------------
def _fused_kernel(xps_ref,
                  b1dw_w_ref, b1dw_s_ref, b1dw_b_ref,
                  b1pw_w_ref, b1pw_s_ref, b1pw_b_ref,
                  b2pw1_w_ref, b2pw1_s_ref, b2pw1_b_ref,
                  b2dw_w_ref, b2dw_s_ref, b2dw_b_ref,
                  b2pw2_w_ref, b2pw2_s_ref, b2pw2_b_ref,
                  y1_ref, y2_ref, pad_ref):
    """xps_ref : (1, 2, 2, Ho+1, Wo+1, Cin)  phase-split zero-padded input,
                 xps[0, rp, cp, i, j, c] == x_padded[2*i+rp, 2*j+cp, c]
       pad_ref : VMEM scratch (2, 2, Ho+1, Wo+1, Cmid) -- phase-split padded
                 branch2 pointwise-1 output (stays on-chip).
       y1_ref / y2_ref : (1, Ho*Wo, Cmid) per-branch outputs.
    """
    Ho = xps_ref.shape[3] - 1
    Wo = xps_ref.shape[4] - 1
    Cin = xps_ref.shape[5]
    Cmid = y1_ref.shape[2]
    P = Ho * Wo

    def dw3x3(read_tap, w_ref, s_ref, b_ref, C):
        # 3x3 depthwise conv, stride 2, pad 1 (+ folded BN) as a 9-tap MAC.
        # Tap (kh, kw) of output (i, j) is padded pixel (2i+kh, 2j+kw), i.e.
        # phase (kh&1, kw&1) at offset (kh>>1, kw>>1): a static contiguous slice.
        acc = jnp.zeros((Ho, Wo, C), jnp.float32)
        for kh in range(3):
            rp, ro = kh & 1, kh >> 1
            for kw in range(3):
                cp, co = kw & 1, kw >> 1
                t = kh * 3 + kw
                tap = read_tap(rp, cp, ro, co).astype(jnp.float32)
                acc = acc + tap * w_ref[t]              # w_ref[t]: (1, 1, C)
        return acc * s_ref[...] + b_ref[...]            # (Ho, Wo, C)

    def pw_bn_silu(x2d, w_ref, s_ref, b_ref):
        # 1x1 conv as MXU matmul + folded BN affine + SiLU.
        y = jnp.dot(x2d, w_ref[...], preferred_element_type=jnp.float32)
        y = y * s_ref[...] + b_ref[...]
        return y * jax.nn.sigmoid(y)

    # ---- branch 1: dw3x3(s2) + BN  ->  1x1 + BN + SiLU ---------------------
    y1dw = dw3x3(
        lambda rp, cp, ro, co: xps_ref[0, rp, cp, ro:ro + Ho, co:co + Wo, :],
        b1dw_w_ref, b1dw_s_ref, b1dw_b_ref, Cin)
    y1 = pw_bn_silu(y1dw.reshape(P, Cin), b1pw_w_ref, b1pw_s_ref, b1pw_b_ref)
    y1_ref[0, :, :] = y1.astype(y1_ref.dtype)

    # ---- branch 2: 1x1 + BN + SiLU  ->  dw3x3(s2) + BN  -> 1x1 + BN + SiLU --
    # The pointwise-1 output is written zero-padded & phase-split into VMEM
    # scratch so the depthwise taps below are again static slices.
    pad_ref[...] = jnp.zeros_like(pad_ref)               # border = 0 (the padding)
    for rp in range(2):
        ilo = 1 - rp                                     # interior rows of this phase
        for cp in range(2):
            jlo = 1 - cp                                 # interior cols of this phase
            xin = xps_ref[0, rp, cp, ilo:ilo + Ho, jlo:jlo + Wo, :]
            xin = xin.astype(jnp.float32).reshape(P, Cin)
            v = pw_bn_silu(xin, b2pw1_w_ref, b2pw1_s_ref, b2pw1_b_ref)
            pad_ref[rp, cp, ilo:ilo + Ho, jlo:jlo + Wo, :] = v.reshape(Ho, Wo, Cmid)

    y2dw = dw3x3(
        lambda rp, cp, ro, co: pad_ref[rp, cp, ro:ro + Ho, co:co + Wo, :],
        b2dw_w_ref, b2dw_s_ref, b2dw_b_ref, Cmid)
    y2 = pw_bn_silu(y2dw.reshape(P, Cmid), b2pw2_w_ref, b2pw2_s_ref, b2pw2_b_ref)
    y2_ref[0, :, :] = y2.astype(y2_ref.dtype)


# --------------------------------------------------------------------------
# Wrapper
# --------------------------------------------------------------------------
def _fold_bn(conv_bias, bn):
    gamma, beta, mean, var = bn
    s = gamma / jnp.sqrt(var + EPS)
    return s, (conv_bias - mean) * s + beta


def residual_downsample_forward(x_nchw, p):
    """Forward pass matching the PyTorch ResidualDownsample module (eval-mode BN)."""
    N, Cin, H, W = x_nchw.shape
    if H % 2 or W % 2:
        raise NotImplementedError("even H, W required")  # TODO(synk): odd spatial sizes
    Ho, Wo = H // 2, W // 2
    P = Ho * Wo
    Cmid = p["b1_pw_w"].shape[0]          # out_channels // 2
    Cout = 2 * Cmid

    # Single XLA relayout of the input: NCHW -> zero-padded NHWC -> 2x2 phase
    # split  xps[n, rp, cp, i, j, c] = x_pad[n, 2*i+rp, 2*j+cp, c].
    x = jnp.transpose(x_nchw, (0, 2, 3, 1))
    xpad = jnp.pad(x, ((0, 0), (1, 1), (1, 1), (0, 0)))
    xps = xpad.reshape(N, Ho + 1, 2, Wo + 1, 2, Cin).transpose(0, 2, 4, 1, 3, 5)

    # Fold BN (inference) into per-channel scale/shift; pre-shape weights.
    b1dw_s, b1dw_b = _fold_bn(p["b1_dw_b"], p["b1_bn1"])
    b1pw_s, b1pw_b = _fold_bn(p["b1_pw_b"], p["b1_bn2"])
    b2pw1_s, b2pw1_b = _fold_bn(p["b2_pw1_b"], p["b2_bn1"])
    b2dw_s, b2dw_b = _fold_bn(p["b2_dw_b"], p["b2_bn2"])
    b2pw2_s, b2pw2_b = _fold_bn(p["b2_pw2_b"], p["b2_bn3"])

    b1dw_w = p["b1_dw_w"].reshape(Cin, 9).T.reshape(9, 1, 1, Cin)
    b2dw_w = p["b2_dw_w"].reshape(Cmid, 9).T.reshape(9, 1, 1, Cmid)
    b1pw_w = p["b1_pw_w"].reshape(Cmid, Cin).T
    b2pw1_w = p["b2_pw1_w"].reshape(Cmid, Cin).T
    b2pw2_w = p["b2_pw2_w"].reshape(Cmid, Cmid).T

    args = (
        xps,
        b1dw_w, b1dw_s.reshape(1, 1, Cin), b1dw_b.reshape(1, 1, Cin),
        b1pw_w, b1pw_s.reshape(1, Cmid), b1pw_b.reshape(1, Cmid),
        b2pw1_w, b2pw1_s.reshape(1, Cmid), b2pw1_b.reshape(1, Cmid),
        b2dw_w, b2dw_s.reshape(1, 1, Cmid), b2dw_b.reshape(1, 1, Cmid),
        b2pw2_w, b2pw2_s.reshape(1, Cmid), b2pw2_b.reshape(1, Cmid),
    )

    def resident(shape):
        # weights / scales: whole array resident, never re-indexed.
        return pl.BlockSpec(shape, lambda n, _nd=len(shape): (0,) * _nd)

    in_specs = [
        pl.BlockSpec((1, 2, 2, Ho + 1, Wo + 1, Cin),
                     lambda n: (n, 0, 0, 0, 0, 0)),
        resident((9, 1, 1, Cin)), resident((1, 1, Cin)), resident((1, 1, Cin)),
        resident((Cin, Cmid)), resident((1, Cmid)), resident((1, Cmid)),
        resident((Cin, Cmid)), resident((1, Cmid)), resident((1, Cmid)),
        resident((9, 1, 1, Cmid)), resident((1, 1, Cmid)), resident((1, 1, Cmid)),
        resident((Cmid, Cmid)), resident((1, Cmid)), resident((1, Cmid)),
    ]
    out_specs = [
        pl.BlockSpec((1, P, Cmid), lambda n: (n, 0, 0)),
        pl.BlockSpec((1, P, Cmid), lambda n: (n, 0, 0)),
    ]

    y1, y2 = pl.pallas_call(
        _fused_kernel,
        out_shape=(jax.ShapeDtypeStruct((N, P, Cmid), jnp.float32),
                   jax.ShapeDtypeStruct((N, P, Cmid), jnp.float32)),
        grid=(N,),
        in_specs=in_specs,
        out_specs=out_specs,
        scratch_shapes=[pltpu.VMEM((2, 2, Ho + 1, Wo + 1, Cmid), jnp.float32)],
        compiler_params=pltpu.CompilerParams(
            dimension_semantics=("parallel",)),
    )(*args)

    # concat + ChannelShuffle(groups=2) + NHWC->NCHW folded into ONE permutation:
    #   out channel 2*i   <- branch1 channel i
    #   out channel 2*i+1 <- branch2 channel i
    y = jnp.stack([y1, y2], axis=-1).reshape(N, P, Cout)
    y = jnp.transpose(y, (0, 2, 1)).reshape(N, Cout, Ho, Wo)
    return y


# --------------------------------------------------------------------------
# Pure-JAX reference (independent path via lax.conv) for verification
# --------------------------------------------------------------------------
def torch_reference(x, p):
    hi = jax.lax.Precision.HIGHEST

    def conv(x, w, b, stride=1, padding=0, groups=1):
        y = jax.lax.conv_general_dilated(
            x, w, (stride, stride), [(padding, padding)] * 2,
            feature_group_count=groups,
            dimension_numbers=("NCHW", "OIHW", "NCHW"), precision=hi,
        )
        return y + b[None, :, None, None]

    def bn(y, stats):
        g, b, m, v = stats
        return (y - m[None, :, None, None]) / jnp.sqrt(v + EPS)[
            None, :, None, None
        ] * g[None, :, None, None] + b[None, :, None, None]

    def silu(y):
        return y * jax.nn.sigmoid(y)

    Cin = x.shape[1]
    # branch1
    y1 = bn(conv(x, p["b1_dw_w"], p["b1_dw_b"], 2, 1, groups=Cin), p["b1_bn1"])
    y1 = silu(bn(conv(y1, p["b1_pw_w"], p["b1_pw_b"]), p["b1_bn2"]))
    # branch2
    y2 = silu(bn(conv(x, p["b2_pw1_w"], p["b2_pw1_b"]), p["b2_bn1"]))
    Cmid = y2.shape[1]
    y2 = bn(conv(y2, p["b2_dw_w"], p["b2_dw_b"], 2, 1, groups=Cmid), p["b2_bn2"])
    y2 = silu(bn(conv(y2, p["b2_pw2_w"], p["b2_pw2_b"]), p["b2_bn3"]))
    y = jnp.concatenate([y1, y2], axis=1)
    n, c, h, w = y.shape
    y = y.reshape(n, 2, c // 2, h, w).transpose(0, 2, 1, 3, 4).reshape(n, c, h, w)
    return y


# --------------------------------------------------------------------------
# Deterministic parameter init + run
# --------------------------------------------------------------------------
def init_params(key, in_channels, out_channels):
    Cmid = out_channels // 2
    keys = jax.random.split(key, 32)
    ki = iter(keys)

    def w(shape, scale=0.3):
        return scale * jax.random.normal(next(ki), shape, jnp.float32)

    def bn(c):
        gamma = 1.0 + 0.1 * jax.random.normal(next(ki), (c,), jnp.float32)
        beta = 0.1 * jax.random.normal(next(ki), (c,), jnp.float32)
        mean = 0.1 * jax.random.normal(next(ki), (c,), jnp.float32)
        var = 0.5 + 0.5 * jnp.abs(jax.random.normal(next(ki), (c,), jnp.float32))
        return (gamma, beta, mean, var)

    p = {}
    # branch1
    p["b1_dw_w"] = w((in_channels, 1, 3, 3))
    p["b1_dw_b"] = w((in_channels,), 0.1)
    p["b1_bn1"] = bn(in_channels)
    p["b1_pw_w"] = w((Cmid, in_channels, 1, 1))
    p["b1_pw_b"] = w((Cmid,), 0.1)
    p["b1_bn2"] = bn(Cmid)
    # branch2
    p["b2_pw1_w"] = w((Cmid, in_channels, 1, 1))
    p["b2_pw1_b"] = w((Cmid,), 0.1)
    p["b2_bn1"] = bn(Cmid)
    p["b2_dw_w"] = w((Cmid, 1, 3, 3))
    p["b2_dw_b"] = w((Cmid,), 0.1)
    p["b2_bn2"] = bn(Cmid)
    p["b2_pw2_w"] = w((Cmid, Cmid, 1, 1))
    p["b2_pw2_b"] = w((Cmid,), 0.1)
    p["b2_bn3"] = bn(Cmid)
    return p


if __name__ == "__main__":
    key = jax.random.PRNGKey(0)
    kp, kx = jax.random.split(key)

    N, Cin, H, W = 2, 4, 16, 16
    Cout = 8

    params = init_params(kp, Cin, Cout)
    x = jax.random.normal(kx, (N, Cin, H, W), jnp.float32)

    fwd = jax.jit(residual_downsample_forward)
    out = jax.block_until_ready(fwd(x, params))

    assert out.shape == (N, Cout, H // 2, W // 2), out.shape

    ref = torch_reference(x, params)
    max_err = float(jnp.max(jnp.abs(out - ref)))
    assert max_err < 1e-3, f"max abs error too large: {max_err}"

    print("KERNEL_OK")
</pallas_src>

<mosaic_0001>
module attributes {stable_mosaic.version = 11 : i64} {
  func.func @_fused_kernel(%arg0: i32, %arg1: memref<1x2x2x9x9x4xf32, #tpu.memory_space<vmem>>, %arg2: memref<9x1x1x4xf32, #tpu.memory_space<vmem>>, %arg3: memref<1x1x4xf32, #tpu.memory_space<vmem>>, %arg4: memref<1x1x4xf32, #tpu.memory_space<vmem>>, %arg5: memref<4x4xf32, #tpu.memory_space<vmem>>, %arg6: memref<1x4xf32, #tpu.memory_space<vmem>>, %arg7: memref<1x4xf32, #tpu.memory_space<vmem>>, %arg8: memref<4x4xf32, #tpu.memory_space<vmem>>, %arg9: memref<1x4xf32, #tpu.memory_space<vmem>>, %arg10: memref<1x4xf32, #tpu.memory_space<vmem>>, %arg11: memref<9x1x1x4xf32, #tpu.memory_space<vmem>>, %arg12: memref<1x1x4xf32, #tpu.memory_space<vmem>>, %arg13: memref<1x1x4xf32, #tpu.memory_space<vmem>>, %arg14: memref<4x4xf32, #tpu.memory_space<vmem>>, %arg15: memref<1x4xf32, #tpu.memory_space<vmem>>, %arg16: memref<1x4xf32, #tpu.memory_space<vmem>>, %arg17: memref<1x64x4xf32, #tpu.memory_space<vmem>>, %arg18: memref<1x64x4xf32, #tpu.memory_space<vmem>>, %arg19: memref<2x2x9x9x4xf32, #tpu.memory_space<vmem>>) attributes {dimension_semantics = [#tpu.dimension_semantics<parallel>], iteration_bounds = array<i64: 2>, scalar_prefetch = 0 : i64, scratch_operands = 1 : i64, tpu.core_type = #tpu.core_type<tc>, window_params = [{transform_indices = @transform_0, window_bounds = array<i64: 1, 2, 2, 9, 9, 4>}, {pipeline_mode = #tpu.pipeline_mode<synchronous>, transform_indices = @transform_1, window_bounds = array<i64: 9, 1, 1, 4>}, {pipeline_mode = #tpu.pipeline_mode<synchronous>, transform_indices = @transform_2, window_bounds = array<i64: 1, 1, 4>}, {pipeline_mode = #tpu.pipeline_mode<synchronous>, transform_indices = @transform_3, window_bounds = array<i64: 1, 1, 4>}, {pipeline_mode = #tpu.pipeline_mode<synchronous>, transform_indices = @transform_4, window_bounds = array<i64: 4, 4>}, {pipeline_mode = #tpu.pipeline_mode<synchronous>, transform_indices = @transform_5, window_bounds = array<i64: 1, 4>}, {pipeline_mode = #tpu.pipeline_mode<synchronous>, transform_indices = @transform_6, window_bounds = array<i64: 1, 4>}, {pipeline_mode = #tpu.pipeline_mode<synchronous>, transform_indices = @transform_7, window_bounds = array<i64: 4, 4>}, {pipeline_mode = #tpu.pipeline_mode<synchronous>, transform_indices = @transform_8, window_bounds = array<i64: 1, 4>}, {pipeline_mode = #tpu.pipeline_mode<synchronous>, transform_indices = @transform_9, window_bounds = array<i64: 1, 4>}, {pipeline_mode = #tpu.pipeline_mode<synchronous>, transform_indices = @transform_10, window_bounds = array<i64: 9, 1, 1, 4>}, {pipeline_mode = #tpu.pipeline_mode<synchronous>, transform_indices = @transform_11, window_bounds = array<i64: 1, 1, 4>}, {pipeline_mode = #tpu.pipeline_mode<synchronous>, transform_indices = @transform_12, window_bounds = array<i64: 1, 1, 4>}, {pipeline_mode = #tpu.pipeline_mode<synchronous>, transform_indices = @transform_13, window_bounds = array<i64: 4, 4>}, {pipeline_mode = #tpu.pipeline_mode<synchronous>, transform_indices = @transform_14, window_bounds = array<i64: 1, 4>}, {pipeline_mode = #tpu.pipeline_mode<synchronous>, transform_indices = @transform_15, window_bounds = array<i64: 1, 4>}, {transform_indices = @transform_16, window_bounds = array<i64: 1, 64, 4>}, {transform_indices = @transform_17, window_bounds = array<i64: 1, 64, 4>}]} {
    %cst = arith.constant 0.000000e+00 : f32
    %0 = vector.broadcast %cst : f32 to vector<8x8x4xf32>
    %c0 = arith.constant 0 : index
    %c0_0 = arith.constant 0 : index
    %c0_1 = arith.constant 0 : index
    %c0_2 = arith.constant 0 : index
    %c0_3 = arith.constant 0 : index
    %c0_4 = arith.constant 0 : index
    %1 = vector.load %arg1[%c0, %c0_0, %c0_1, %c0_2, %c0_3, %c0_4] : memref<1x2x2x9x9x4xf32, #tpu.memory_space<vmem>>, vector<1x1x1x8x8x4xf32>
    %2 = vector.shape_cast %1 : vector<1x1x1x8x8x4xf32> to vector<8x8x4xf32>
    %c0_5 = arith.constant 0 : index
    %c0_6 = arith.constant 0 : index
    %c0_7 = arith.constant 0 : index
    %c0_8 = arith.constant 0 : index
    %3 = vector.load %arg2[%c0_5, %c0_6, %c0_7, %c0_8] : memref<9x1x1x4xf32, #tpu.memory_space<vmem>>, vector<1x1x1x4xf32>
    %4 = vector.shape_cast %3 : vector<1x1x1x4xf32> to vector<1x1x4xf32>
    %5 = vector.broadcast %4 : vector<1x1x4xf32> to vector<8x8x4xf32>
    %6 = arith.mulf %2, %5 : vector<8x8x4xf32>
    %7 = arith.addf %0, %6 : vector<8x8x4xf32>
    %c0_9 = arith.constant 0 : index
    %c0_10 = arith.constant 0 : index
    %c1 = arith.constant 1 : index
    %c0_11 = arith.constant 0 : index
    %c0_12 = arith.constant 0 : index
    %c0_13 = arith.constant 0 : index
    %8 = vector.load %arg1[%c0_9, %c0_10, %c1, %c0_11, %c0_12, %c0_13] : memref<1x2x2x9x9x4xf32, #tpu.memory_space<vmem>>, vector<1x1x1x8x8x4xf32>
    %9 = vector.shape_cast %8 : vector<1x1x1x8x8x4xf32> to vector<8x8x4xf32>
    %c1_14 = arith.constant 1 : index
    %c0_15 = arith.constant 0 : index
    %c0_16 = arith.constant 0 : index
    %c0_17 = arith.constant 0 : index
    %10 = vector.load %arg2[%c1_14, %c0_15, %c0_16, %c0_17] : memref<9x1x1x4xf32, #tpu.memory_space<vmem>>, vector<1x1x1x4xf32>
    %11 = vector.shape_cast %10 : vector<1x1x1x4xf32> to vector<1x1x4xf32>
    %12 = vector.broadcast %11 : vector<1x1x4xf32> to vector<8x8x4xf32>
    %13 = arith.mulf %9, %12 : vector<8x8x4xf32>
    %14 = arith.addf %7, %13 : vector<8x8x4xf32>
    %c0_18 = arith.constant 0 : index
    %c0_19 = arith.constant 0 : index
    %c0_20 = arith.constant 0 : index
    %c0_21 = arith.constant 0 : index
    %c1_22 = arith.constant 1 : index
    %c0_23 = arith.constant 0 : index
    %15 = vector.load %arg1[%c0_18, %c0_19, %c0_20, %c0_21, %c1_22, %c0_23] : memref<1x2x2x9x9x4xf32, #tpu.memory_space<vmem>>, vector<1x1x1x8x8x4xf32>
    %16 = vector.shape_cast %15 : vector<1x1x1x8x8x4xf32> to vector<8x8x4xf32>
    %c2 = arith.constant 2 : index
    %c0_24 = arith.constant 0 : index
    %c0_25 = arith.constant 0 : index
    %c0_26 = arith.constant 0 : index
    %17 = vector.load %arg2[%c2, %c0_24, %c0_25, %c0_26] : memref<9x1x1x4xf32, #tpu.memory_space<vmem>>, vector<1x1x1x4xf32>
    %18 = vector.shape_cast %17 : vector<1x1x1x4xf32> to vector<1x1x4xf32>
    %19 = vector.broadcast %18 : vector<1x1x4xf32> to vector<8x8x4xf32>
    %20 = arith.mulf %16, %19 : vector<8x8x4xf32>
    %21 = arith.addf %14, %20 : vector<8x8x4xf32>
    %c0_27 = arith.constant 0 : index
    %c1_28 = arith.constant 1 : index
    %c0_29 = arith.constant 0 : index
    %c0_30 = arith.constant 0 : index
    %c0_31 = arith.constant 0 : index
    %c0_32 = arith.constant 0 : index
    %22 = vector.load %arg1[%c0_27, %c1_28, %c0_29, %c0_30, %c0_31, %c0_32] : memref<1x2x2x9x9x4xf32, #tpu.memory_space<vmem>>, vector<1x1x1x8x8x4xf32>
    %23 = vector.shape_cast %22 : vector<1x1x1x8x8x4xf32> to vector<8x8x4xf32>
    %c3 = arith.constant 3 : index
    %c0_33 = arith.constant 0 : index
    %c0_34 = arith.constant 0 : index
    %c0_35 = arith.constant 0 : index
    %24 = vector.load %arg2[%c3, %c0_33, %c0_34, %c0_35] : memref<9x1x1x4xf32, #tpu.memory_space<vmem>>, vector<1x1x1x4xf32>
    %25 = vector.shape_cast %24 : vector<1x1x1x4xf32> to vector<1x1x4xf32>
    %26 = vector.broadcast %25 : vector<1x1x4xf32> to vector<8x8x4xf32>
    %27 = arith.mulf %23, %26 : vector<8x8x4xf32>
    %28 = arith.addf %21, %27 : vector<8x8x4xf32>
    %c0_36 = arith.constant 0 : index
    %c1_37 = arith.constant 1 : index
    %c1_38 = arith.constant 1 : index
    %c0_39 = arith.constant 0 : index
    %c0_40 = arith.constant 0 : index
    %c0_41 = arith.constant 0 : index
    %29 = vector.load %arg1[%c0_36, %c1_37, %c1_38, %c0_39, %c0_40, %c0_41] : memref<1x2x2x9x9x4xf32, #tpu.memory_space<vmem>>, vector<1x1x1x8x8x4xf32>
    %30 = vector.shape_cast %29 : vector<1x1x1x8x8x4xf32> to vector<8x8x4xf32>
    %c4 = arith.constant 4 : index
    %c0_42 = arith.constant 0 : index
    %c0_43 = arith.constant 0 : index
    %c0_44 = arith.constant 0 : index
    %31 = vector.load %arg2[%c4, %c0_42, %c0_43, %c0_44] : memref<9x1x1x4xf32, #tpu.memory_space<vmem>>, vector<1x1x1x4xf32>
    %32 = vector.shape_cast %31 : vector<1x1x1x4xf32> to vector<1x1x4xf32>
    %33 = vector.broadcast %32 : vector<1x1x4xf32> to vector<8x8x4xf32>
    %34 = arith.mulf %30, %33 : vector<8x8x4xf32>
    %35 = arith.addf %28, %34 : vector<8x8x4xf32>
    %c0_45 = arith.constant 0 : index
    %c1_46 = arith.constant 1 : index
    %c0_47 = arith.constant 0 : index
    %c0_48 = arith.constant 0 : index
    %c1_49 = arith.constant 1 : index
    %c0_50 = arith.constant 0 : index
    %36 = vector.load %arg1[%c0_45, %c1_46, %c0_47, %c0_48, %c1_49, %c0_50] : memref<1x2x2x9x9x4xf32, #tpu.memory_space<vmem>>, vector<1x1x1x8x8x4xf32>
    %37 = vector.shape_cast %36 : vector<1x1x1x8x8x4xf32> to vector<8x8x4xf32>
    %c5 = arith.constant 5 : index
    %c0_51 = arith.constant 0 : index
    %c0_52 = arith.constant 0 : index
    %c0_53 = arith.constant 0 : index
    %38 = vector.load %arg2[%c5, %c0_51, %c0_52, %c0_53] : memref<9x1x1x4xf32, #tpu.memory_space<vmem>>, vector<1x1x1x4xf32>
    %39 = vector.shape_cast %38 : vector<1x1x1x4xf32> to vector<1x1x4xf32>
    %40 = vector.broadcast %39 : vector<1x1x4xf32> to vector<8x8x4xf32>
    %41 = arith.mulf %37, %40 : vector<8x8x4xf32>
    %42 = arith.addf %35, %41 : vector<8x8x4xf32>
    %c0_54 = arith.constant 0 : index
    %c0_55 = arith.constant 0 : index
    %c0_56 = arith.constant 0 : index
    %c1_57 = arith.constant 1 : index
    %c0_58 = arith.constant 0 : index
    %c0_59 = arith.constant 0 : index
    %43 = vector.load %arg1[%c0_54, %c0_55, %c0_56, %c1_57, %c0_58, %c0_59] : memref<1x2x2x9x9x4xf32, #tpu.memory_space<vmem>>, vector<1x1x1x8x8x4xf32>
    %44 = vector.shape_cast %43 : vector<1x1x1x8x8x4xf32> to vector<8x8x4xf32>
    %c6 = arith.constant 6 : index
    %c0_60 = arith.constant 0 : index
    %c0_61 = arith.constant 0 : index
    %c0_62 = arith.constant 0 : index
    %45 = vector.load %arg2[%c6, %c0_60, %c0_61, %c0_62] : memref<9x1x1x4xf32, #tpu.memory_space<vmem>>, vector<1x1x1x4xf32>
    %46 = vector.shape_cast %45 : vector<1x1x1x4xf32> to vector<1x1x4xf32>
    %47 = vector.broadcast %46 : vector<1x1x4xf32> to vector<8x8x4xf32>
    %48 = arith.mulf %44, %47 : vector<8x8x4xf32>
    %49 = arith.addf %42, %48 : vector<8x8x4xf32>
    %c0_63 = arith.constant 0 : index
    %c0_64 = arith.constant 0 : index
    %c1_65 = arith.constant 1 : index
    %c1_66 = arith.constant 1 : index
    %c0_67 = arith.constant 0 : index
    %c0_68 = arith.constant 0 : index
    %50 = vector.load %arg1[%c0_63, %c0_64, %c1_65, %c1_66, %c0_67, %c0_68] : memref<1x2x2x9x9x4xf32, #tpu.memory_space<vmem>>, vector<1x1x1x8x8x4xf32>
    %51 = vector.shape_cast %50 : vector<1x1x1x8x8x4xf32> to vector<8x8x4xf32>
    %c7 = arith.constant 7 : index
    %c0_69 = arith.constant 0 : index
    %c0_70 = arith.constant 0 : index
    %c0_71 = arith.constant 0 : index
    %52 = vector.load %arg2[%c7, %c0_69, %c0_70, %c0_71] : memref<9x1x1x4xf32, #tpu.memory_space<vmem>>, vector<1x1x1x4xf32>
    %53 = vector.shape_cast %52 : vector<1x1x1x4xf32> to vector<1x1x4xf32>
    %54 = vector.broadcast %53 : vector<1x1x4xf32> to vector<8x8x4xf32>
    %55 = arith.mulf %51, %54 : vector<8x8x4xf32>
    %56 = arith.addf %49, %55 : vector<8x8x4xf32>
    %c0_72 = arith.constant 0 : index
    %c0_73 = arith.constant 0 : index
    %c0_74 = arith.constant 0 : index
    %c1_75 = arith.constant 1 : index
    %c1_76 = arith.constant 1 : index
    %c0_77 = arith.constant 0 : index
    %57 = vector.load %arg1[%c0_72, %c0_73, %c0_74, %c1_75, %c1_76, %c0_77] : memref<1x2x2x9x9x4xf32, #tpu.memory_space<vmem>>, vector<1x1x1x8x8x4xf32>
    %58 = vector.shape_cast %57 : vector<1x1x1x8x8x4xf32> to vector<8x8x4xf32>
    %c8 = arith.constant 8 : index
    %c0_78 = arith.constant 0 : index
    %c0_79 = arith.constant 0 : index
    %c0_80 = arith.constant 0 : index
    %59 = vector.load %arg2[%c8, %c0_78, %c0_79, %c0_80] : memref<9x1x1x4xf32, #tpu.memory_space<vmem>>, vector<1x1x1x4xf32>
    %60 = vector.shape_cast %59 : vector<1x1x1x4xf32> to vector<1x1x4xf32>
    %61 = vector.broadcast %60 : vector<1x1x4xf32> to vector<8x8x4xf32>
    %62 = arith.mulf %58, %61 : vector<8x8x4xf32>
    %63 = arith.addf %56, %62 : vector<8x8x4xf32>
    %c0_81 = arith.constant 0 : index
    %c0_82 = arith.constant 0 : index
    %c0_83 = arith.constant 0 : index
    %64 = vector.load %arg3[%c0_81, %c0_82, %c0_83] : memref<1x1x4xf32, #tpu.memory_space<vmem>>, vector<1x1x4xf32>
    %65 = vector.broadcast %64 : vector<1x1x4xf32> to vector<8x8x4xf32>
    %66 = arith.mulf %63, %65 : vector<8x8x4xf32>
    %c0_84 = arith.constant 0 : index
    %c0_85 = arith.constant 0 : index
    %c0_86 = arith.constant 0 : index
    %67 = vector.load %arg4[%c0_84, %c0_85, %c0_86] : memref<1x1x4xf32, #tpu.memory_space<vmem>>, vector<1x1x4xf32>
    %68 = vector.broadcast %67 : vector<1x1x4xf32> to vector<8x8x4xf32>
    %69 = arith.addf %66, %68 : vector<8x8x4xf32>
    %70 = vector.shape_cast %69 : vector<8x8x4xf32> to vector<64x4xf32>
    %c0_87 = arith.constant 0 : index
    %c0_88 = arith.constant 0 : index
    %71 = vector.load %arg5[%c0_87, %c0_88] : memref<4x4xf32, #tpu.memory_space<vmem>>, vector<4x4xf32>
    %cst_89 = arith.constant dense<0.000000e+00> : vector<64x4xf32>
    %72 = tpu.matmul %70, %71, %cst_89 {dimension_numbers = #tpu.dot_dimension_numbers<[1], [0], [0], [1], [0, 0, 1, 1], [], []>} : vector<64x4xf32>, vector<4x4xf32>, vector<64x4xf32> -> vector<64x4xf32>
    %c0_90 = arith.constant 0 : index
    %c0_91 = arith.constant 0 : index
    %73 = vector.load %arg6[%c0_90, %c0_91] : memref<1x4xf32, #tpu.memory_space<vmem>>, vector<1x4xf32>
    %74 = vector.broadcast %73 : vector<1x4xf32> to vector<64x4xf32>
    %75 = arith.mulf %72, %74 : vector<64x4xf32>
    %c0_92 = arith.constant 0 : index
    %c0_93 = arith.constant 0 : index
    %76 = vector.load %arg7[%c0_92, %c0_93] : memref<1x4xf32, #tpu.memory_space<vmem>>, vector<1x4xf32>
    %77 = vector.broadcast %76 : vector<1x4xf32> to vector<64x4xf32>
    %78 = arith.addf %75, %77 : vector<64x4xf32>
    %79 = arith.negf %78 : vector<64x4xf32>
    %80 = math.exp %79 : vector<64x4xf32>
    %cst_94 = arith.constant 1.000000e+00 : f32
    %81 = vector.broadcast %cst_94 : f32 to vector<64x4xf32>
    %82 = arith.addf %81, %80 : vector<64x4xf32>
    %83 = arith.divf %81, %82 : vector<64x4xf32>
    %84 = arith.mulf %78, %83 : vector<64x4xf32>
    %c0_95 = arith.constant 0 : index
    %c0_96 = arith.constant 0 : index
    %c0_97 = arith.constant 0 : index
    %85 = vector.load %arg17[%c0_95, %c0_96, %c0_97] : memref<1x64x4xf32, #tpu.memory_space<vmem>>, vector<1x64x4xf32>
    %86 = vector.shape_cast %85 : vector<1x64x4xf32> to vector<64x4xf32>
    %87 = vector.shape_cast %84 : vector<64x4xf32> to vector<1x64x4xf32>
    tpu.vector_store %arg17[%c0_95, %c0_96, %c0_97], %87 {strides = array<i32>} : memref<1x64x4xf32, #tpu.memory_space<vmem>>, vector<1x64x4xf32>,
    %cst_98 = arith.constant 0.000000e+00 : f32
    %88 = vector.broadcast %cst_98 : f32 to vector<2x2x9x9x4xf32>
    %c0_99 = arith.constant 0 : index
    %c0_100 = arith.constant 0 : index
    %c0_101 = arith.constant 0 : index
    %c0_102 = arith.constant 0 : index
    %c0_103 = arith.constant 0 : index
    %89 = vector.load %arg19[%c0_99, %c0_100, %c0_101, %c0_102, %c0_103] : memref<2x2x9x9x4xf32, #tpu.memory_space<vmem>>, vector<2x2x9x9x4xf32>
    tpu.vector_store %arg19[%c0_99, %c0_100, %c0_101, %c0_102, %c0_103], %88 {strides = array<i32>} : memref<2x2x9x9x4xf32, #tpu.memory_space<vmem>>, vector<2x2x9x9x4xf32>,
    %c0_104 = arith.constant 0 : index
    %c0_105 = arith.constant 0 : index
    %c0_106 = arith.constant 0 : index
    %c1_107 = arith.constant 1 : index
    %c1_108 = arith.constant 1 : index
    %c0_109 = arith.constant 0 : index
    %90 = vector.load %arg1[%c0_104, %c0_105, %c0_106, %c1_107, %c1_108, %c0_109] : memref<1x2x2x9x9x4xf32, #tpu.memory_space<vmem>>, vector<1x1x1x8x8x4xf32>
    %91 = vector.shape_cast %90 : vector<1x1x1x8x8x4xf32> to vector<8x8x4xf32>
    %92 = vector.shape_cast %91 : vector<8x8x4xf32> to vector<64x4xf32>
    %c0_110 = arith.constant 0 : index
    %c0_111 = arith.constant 0 : index
    %93 = vector.load %arg8[%c0_110, %c0_111] : memref<4x4xf32, #tpu.memory_space<vmem>>, vector<4x4xf32>
    %cst_112 = arith.constant dense<0.000000e+00> : vector<64x4xf32>
    %94 = tpu.matmul %92, %93, %cst_112 {dimension_numbers = #tpu.dot_dimension_numbers<[1], [0], [0], [1], [0, 0, 1, 1], [], []>} : vector<64x4xf32>, vector<4x4xf32>, vector<64x4xf32> -> vector<64x4xf32>
    %c0_113 = arith.constant 0 : index
    %c0_114 = arith.constant 0 : index
    %95 = vector.load %arg9[%c0_113, %c0_114] : memref<1x4xf32, #tpu.memory_space<vmem>>, vector<1x4xf32>
    %96 = vector.broadcast %95 : vector<1x4xf32> to vector<64x4xf32>
    %97 = arith.mulf %94, %96 : vector<64x4xf32>
    %c0_115 = arith.constant 0 : index
    %c0_116 = arith.constant 0 : index
    %98 = vector.load %arg10[%c0_115, %c0_116] : memref<1x4xf32, #tpu.memory_space<vmem>>, vector<1x4xf32>
    %99 = vector.broadcast %98 : vector<1x4xf32> to vector<64x4xf32>
    %100 = arith.addf %97, %99 : vector<64x4xf32>
    %101 = arith.negf %100 : vector<64x4xf32>
    %102 = math.exp %101 : vector<64x4xf32>
    %cst_117 = arith.constant 1.000000e+00 : f32
    %103 = vector.broadcast %cst_117 : f32 to vector<64x4xf32>
    %104 = arith.addf %103, %102 : vector<64x4xf32>
    %105 = arith.divf %103, %104 : vector<64x4xf32>
    %106 = arith.mulf %100, %105 : vector<64x4xf32>
    %107 = vector.shape_cast %106 : vector<64x4xf32> to vector<8x8x4xf32>
    %c0_118 = arith.constant 0 : index
    %c0_119 = arith.constant 0 : index
    %c1_120 = arith.constant 1 : index
    %c1_121 = arith.constant 1 : index
    %c0_122 = arith.constant 0 : index
    %108 = vector.load %arg19[%c0_118, %c0_119, %c1_120, %c1_121, %c0_122] : memref<2x2x9x9x4xf32, #tpu.memory_space<vmem>>, vector<1x1x8x8x4xf32>
    %109 = vector.shape_cast %108 : vector<1x1x8x8x4xf32> to vector<8x8x4xf32>
    %110 = vector.shape_cast %107 : vector<8x8x4xf32> to vector<1x1x8x8x4xf32>
    tpu.vector_store %arg19[%c0_118, %c0_119, %c1_120, %c1_121, %c0_122], %110 {strides = array<i32>} : memref<2x2x9x9x4xf32, #tpu.memory_space<vmem>>, vector<1x1x8x8x4xf32>,
    %c0_123 = arith.constant 0 : index
    %c0_124 = arith.constant 0 : index
    %c1_125 = arith.constant 1 : index
    %c1_126 = arith.constant 1 : index
    %c0_127 = arith.constant 0 : index
    %c0_128 = arith.constant 0 : index
    %111 = vector.load %arg1[%c0_123, %c0_124, %c1_125, %c1_126, %c0_127, %c0_128] : memref<1x2x2x9x9x4xf32, #tpu.memory_space<vmem>>, vector<1x1x1x8x8x4xf32>
    %112 = vector.shape_cast %111 : vector<1x1x1x8x8x4xf32> to vector<8x8x4xf32>
    %113 = vector.shape_cast %112 : vector<8x8x4xf32> to vector<64x4xf32>
    %c0_129 = arith.constant 0 : index
    %c0_130 = arith.constant 0 : index
    %114 = vector.load %arg8[%c0_129, %c0_130] : memref<4x4xf32, #tpu.memory_space<vmem>>, vector<4x4xf32>
    %cst_131 = arith.constant dense<0.000000e+00> : vector<64x4xf32>
    %115 = tpu.matmul %113, %114, %cst_131 {dimension_numbers = #tpu.dot_dimension_numbers<[1], [0], [0], [1], [0, 0, 1, 1], [], []>} : vector<64x4xf32>, vector<4x4xf32>, vector<64x4xf32> -> vector<64x4xf32>
    %c0_132 = arith.constant 0 : index
    %c0_133 = arith.constant 0 : index
    %116 = vector.load %arg9[%c0_132, %c0_133] : memref<1x4xf32, #tpu.memory_space<vmem>>, vector<1x4xf32>
    %117 = vector.broadcast %116 : vector<1x4xf32> to vector<64x4xf32>
    %118 = arith.mulf %115, %117 : vector<64x4xf32>
    %c0_134 = arith.constant 0 : index
    %c0_135 = arith.constant 0 : index
    %119 = vector.load %arg10[%c0_134, %c0_135] : memref<1x4xf32, #tpu.memory_space<vmem>>, vector<1x4xf32>
    %120 = vector.broadcast %119 : vector<1x4xf32> to vector<64x4xf32>
    %121 = arith.addf %118, %120 : vector<64x4xf32>
    %122 = arith.negf %121 : vector<64x4xf32>
    %123 = math.exp %122 : vector<64x4xf32>
    %cst_136 = arith.constant 1.000000e+00 : f32
    %124 = vector.broadcast %cst_136 : f32 to vector<64x4xf32>
    %125 = arith.addf %124, %123 : vector<64x4xf32>
    %126 = arith.divf %124, %125 : vector<64x4xf32>
    %127 = arith.mulf %121, %126 : vector<64x4xf32>
    %128 = vector.shape_cast %127 : vector<64x4xf32> to vector<8x8x4xf32>
    %c0_137 = arith.constant 0 : index
    %c1_138 = arith.constant 1 : index
    %c1_139 = arith.constant 1 : index
    %c0_140 = arith.constant 0 : index
    %c0_141 = arith.constant 0 : index
    %129 = vector.load %arg19[%c0_137, %c1_138, %c1_139, %c0_140, %c0_141] : memref<2x2x9x9x4xf32, #tpu.memory_space<vmem>>, vector<1x1x8x8x4xf32>
    %130 = vector.shape_cast %129 : vector<1x1x8x8x4xf32> to vector<8x8x4xf32>
    %131 = vector.shape_cast %128 : vector<8x8x4xf32> to vector<1x1x8x8x4xf32>
    tpu.vector_store %arg19[%c0_137, %c1_138, %c1_139, %c0_140, %c0_141], %131 {strides = array<i32>} : memref<2x2x9x9x4xf32, #tpu.memory_space<vmem>>, vector<1x1x8x8x4xf32>,
    %c0_142 = arith.constant 0 : index
    %c1_143 = arith.constant 1 : index
    %c0_144 = arith.constant 0 : index
    %c0_145 = arith.constant 0 : index
    %c1_146 = arith.constant 1 : index
    %c0_147 = arith.constant 0 : index
    %132 = vector.load %arg1[%c0_142, %c1_143, %c0_144, %c0_145, %c1_146, %c0_147] : memref<1x2x2x9x9x4xf32, #tpu.memory_space<vmem>>, vector<1x1x1x8x8x4xf32>
    %133 = vector.shape_cast %132 : vector<1x1x1x8x8x4xf32> to vector<8x8x4xf32>
    %134 = vector.shape_cast %133 : vector<8x8x4xf32> to vector<64x4xf32>
    %c0_148 = arith.constant 0 : index
    %c0_149 = arith.constant 0 : index
    %135 = vector.load %arg8[%c0_148, %c0_149] : memref<4x4xf32, #tpu.memory_space<vmem>>, vector<4x4xf32>
    %cst_150 = arith.constant dense<0.000000e+00> : vector<64x4xf32>
    %136 = tpu.matmul %134, %135, %cst_150 {dimension_numbers = #tpu.dot_dimension_numbers<[1], [0], [0], [1], [0, 0, 1, 1], [], []>} : vector<64x4xf32>, vector<4x4xf32>, vector<64x4xf32> -> vector<64x4xf32>
    %c0_151 = arith.constant 0 : index
    %c0_152 = arith.constant 0 : index
    %137 = vector.load %arg9[%c0_151, %c0_152] : memref<1x4xf32, #tpu.memory_space<vmem>>, vector<1x4xf32>
    %138 = vector.broadcast %137 : vector<1x4xf32> to vector<64x4xf32>
    %139 = arith.mulf %136, %138 : vector<64x4xf32>
    %c0_153 = arith.constant 0 : index
    %c0_154 = arith.constant 0 : index
    %140 = vector.load %arg10[%c0_153, %c0_154] : memref<1x4xf32, #tpu.memory_space<vmem>>, vector<1x4xf32>
    %141 = vector.broadcast %140 : vector<1x4xf32> to vector<64x4xf32>
    %142 = arith.addf %139, %141 : vector<64x4xf32>
    %143 = arith.negf %142 : vector<64x4xf32>
    %144 = math.exp %143 : vector<64x4xf32>
    %cst_155 = arith.constant 1.000000e+00 : f32
    %145 = vector.broadcast %cst_155 : f32 to vector<64x4xf32>
    %146 = arith.addf %145, %144 : vector<64x4xf32>
    %147 = arith.divf %145, %146 : vector<64x4xf32>
    %148 = arith.mulf %142, %147 : vector<64x4xf32>
    %149 = vector.shape_cast %148 : vector<64x4xf32> to vector<8x8x4xf32>
    %c1_156 = arith.constant 1 : index
    %c0_157 = arith.constant 0 : index
    %c0_158 = arith.constant 0 : index
    %c1_159 = arith.constant 1 : index
    %c0_160 = arith.constant 0 : index
    %150 = vector.load %arg19[%c1_156, %c0_157, %c0_158, %c1_159, %c0_160] : memref<2x2x9x9x4xf32, #tpu.memory_space<vmem>>, vector<1x1x8x8x4xf32>
    %151 = vector.shape_cast %150 : vector<1x1x8x8x4xf32> to vector<8x8x4xf32>
    %152 = vector.shape_cast %149 : vector<8x8x4xf32> to vector<1x1x8x8x4xf32>
    tpu.vector_store %arg19[%c1_156, %c0_157, %c0_158, %c1_159, %c0_160], %152 {strides = array<i32>} : memref<2x2x9x9x4xf32, #tpu.memory_space<vmem>>, vector<1x1x8x8x4xf32>,
    %c0_161 = arith.constant 0 : index
    %c1_162 = arith.constant 1 : index
    %c1_163 = arith.constant 1 : index
    %c0_164 = arith.constant 0 : index
    %c0_165 = arith.constant 0 : index
    %c0_166 = arith.constant 0 : index
    %153 = vector.load %arg1[%c0_161, %c1_162, %c1_163, %c0_164, %c0_165, %c0_166] : memref<1x2x2x9x9x4xf32, #tpu.memory_space<vmem>>, vector<1x1x1x8x8x4xf32>
    %154 = vector.shape_cast %153 : vector<1x1x1x8x8x4xf32> to vector<8x8x4xf32>
    %155 = vector.shape_cast %154 : vector<8x8x4xf32> to vector<64x4xf32>
    %c0_167 = arith.constant 0 : index
    %c0_168 = arith.constant 0 : index
    %156 = vector.load %arg8[%c0_167, %c0_168] : memref<4x4xf32, #tpu.memory_space<vmem>>, vector<4x4xf32>
    %cst_169 = arith.constant dense<0.000000e+00> : vector<64x4xf32>
    %157 = tpu.matmul %155, %156, %cst_169 {dimension_numbers = #tpu.dot_dimension_numbers<[1], [0], [0], [1], [0, 0, 1, 1], [], []>} : vector<64x4xf32>, vector<4x4xf32>, vector<64x4xf32> -> vector<64x4xf32>
    %c0_170 = arith.constant 0 : index
    %c0_171 = arith.constant 0 : index
    %158 = vector.load %arg9[%c0_170, %c0_171] : memref<1x4xf32, #tpu.memory_space<vmem>>, vector<1x4xf32>
    %159 = vector.broadcast %158 : vector<1x4xf32> to vector<64x4xf32>
    %160 = arith.mulf %157, %159 : vector<64x4xf32>
    %c0_172 = arith.constant 0 : index
    %c0_173 = arith.constant 0 : index
    %161 = vector.load %arg10[%c0_172, %c0_173] : memref<1x4xf32, #tpu.memory_space<vmem>>, vector<1x4xf32>
    %162 = vector.broadcast %161 : vector<1x4xf32> to vector<64x4xf32>
    %163 = arith.addf %160, %162 : vector<64x4xf32>
    %164 = arith.negf %163 : vector<64x4xf32>
    %165 = math.exp %164 : vector<64x4xf32>
    %cst_174 = arith.constant 1.000000e+00 : f32
    %166 = vector.broadcast %cst_174 : f32 to vector<64x4xf32>
    %167 = arith.addf %166, %165 : vector<64x4xf32>
    %168 = arith.divf %166, %167 : vector<64x4xf32>
    %169 = arith.mulf %163, %168 : vector<64x4xf32>
    %170 = vector.shape_cast %169 : vector<64x4xf32> to vector<8x8x4xf32>
    %c1_175 = arith.constant 1 : index
    %c1_176 = arith.constant 1 : index
    %c0_177 = arith.constant 0 : index
    %c0_178 = arith.constant 0 : index
    %c0_179 = arith.constant 0 : index
    %171 = vector.load %arg19[%c1_175, %c1_176, %c0_177, %c0_178, %c0_179] : memref<2x2x9x9x4xf32, #tpu.memory_space<vmem>>, vector<1x1x8x8x4xf32>
    %172 = vector.shape_cast %171 : vector<1x1x8x8x4xf32> to vector<8x8x4xf32>
    %173 = vector.shape_cast %170 : vector<8x8x4xf32> to vector<1x1x8x8x4xf32>
    tpu.vector_store %arg19[%c1_175, %c1_176, %c0_177, %c0_178, %c0_179], %173 {strides = array<i32>} : memref<2x2x9x9x4xf32, #tpu.memory_space<vmem>>, vector<1x1x8x8x4xf32>,
    %cst_180 = arith.constant 0.000000e+00 : f32
    %174 = vector.broadcast %cst_180 : f32 to vector<8x8x4xf32>
    %c0_181 = arith.constant 0 : index
    %c0_182 = arith.constant 0 : index
    %c0_183 = arith.constant 0 : index
    %c0_184 = arith.constant 0 : index
    %c0_185 = arith.constant 0 : index
    %175 = vector.load %arg19[%c0_181, %c0_182, %c0_183, %c0_184, %c0_185] : memref<2x2x9x9x4xf32, #tpu.memory_space<vmem>>, vector<1x1x8x8x4xf32>
    %176 = vector.shape_cast %175 : vector<1x1x8x8x4xf32> to vector<8x8x4xf32>
    %c0_186 = arith.constant 0 : index
    %c0_187 = arith.constant 0 : index
    %c0_188 = arith.constant 0 : index
    %c0_189 = arith.constant 0 : index
    %177 = vector.load %arg11[%c0_186, %c0_187, %c0_188, %c0_189] : memref<9x1x1x4xf32, #tpu.memory_space<vmem>>, vector<1x1x1x4xf32>
    %178 = vector.shape_cast %177 : vector<1x1x1x4xf32> to vector<1x1x4xf32>
    %179 = vector.broadcast %178 : vector<1x1x4xf32> to vector<8x8x4xf32>
    %180 = arith.mulf %176, %179 : vector<8x8x4xf32>
    %181 = arith.addf %174, %180 : vector<8x8x4xf32>
    %c0_190 = arith.constant 0 : index
    %c1_191 = arith.constant 1 : index
    %c0_192 = arith.constant 0 : index
    %c0_193 = arith.constant 0 : index
    %c0_194 = arith.constant 0 : index
    %182 = vector.load %arg19[%c0_190, %c1_191, %c0_192, %c0_193, %c0_194] : memref<2x2x9x9x4xf32, #tpu.memory_space<vmem>>, vector<1x1x8x8x4xf32>
    %183 = vector.shape_cast %182 : vector<1x1x8x8x4xf32> to vector<8x8x4xf32>
    %c1_195 = arith.constant 1 : index
    %c0_196 = arith.constant 0 : index
    %c0_197 = arith.constant 0 : index
    %c0_198 = arith.constant 0 : index
    %184 = vector.load %arg11[%c1_195, %c0_196, %c0_197, %c0_198] : memref<9x1x1x4xf32, #tpu.memory_space<vmem>>, vector<1x1x1x4xf32>
    %185 = vector.shape_cast %184 : vector<1x1x1x4xf32> to vector<1x1x4xf32>
    %186 = vector.broadcast %185 : vector<1x1x4xf32> to vector<8x8x4xf32>
    %187 = arith.mulf %183, %186 : vector<8x8x4xf32>
    %188 = arith.addf %181, %187 : vector<8x8x4xf32>
    %c0_199 = arith.constant 0 : index
    %c0_200 = arith.constant 0 : index
    %c0_201 = arith.constant 0 : index
    %c1_202 = arith.constant 1 : index
    %c0_203 = arith.constant 0 : index
    %189 = vector.load %arg19[%c0_199, %c0_200, %c0_201, %c1_202, %c0_203] : memref<2x2x9x9x4xf32, #tpu.memory_space<vmem>>, vector<1x1x8x8x4xf32>
    %190 = vector.shape_cast %189 : vector<1x1x8x8x4xf32> to vector<8x8x4xf32>
    %c2_204 = arith.constant 2 : index
    %c0_205 = arith.constant 0 : index
    %c0_206 = arith.constant 0 : index
    %c0_207 = arith.constant 0 : index
    %191 = vector.load %arg11[%c2_204, %c0_205, %c0_206, %c0_207] : memref<9x1x1x4xf32, #tpu.memory_space<vmem>>, vector<1x1x1x4xf32>
    %192 = vector.shape_cast %191 : vector<1x1x1x4xf32> to vector<1x1x4xf32>
    %193 = vector.broadcast %192 : vector<1x1x4xf32> to vector<8x8x4xf32>
    %194 = arith.mulf %190, %193 : vector<8x8x4xf32>
    %195 = arith.addf %188, %194 : vector<8x8x4xf32>
    %c1_208 = arith.constant 1 : index
    %c0_209 = arith.constant 0 : index
    %c0_210 = arith.constant 0 : index
    %c0_211 = arith.constant 0 : index
    %c0_212 = arith.constant 0 : index
    %196 = vector.load %arg19[%c1_208, %c0_209, %c0_210, %c0_211, %c0_212] : memref<2x2x9x9x4xf32, #tpu.memory_space<vmem>>, vector<1x1x8x8x4xf32>
    %197 = vector.shape_cast %196 : vector<1x1x8x8x4xf32> to vector<8x8x4xf32>
    %c3_213 = arith.constant 3 : index
    %c0_214 = arith.constant 0 : index
    %c0_215 = arith.constant 0 : index
    %c0_216 = arith.constant 0 : index
    %198 = vector.load %arg11[%c3_213, %c0_214, %c0_215, %c0_216] : memref<9x1x1x4xf32, #tpu.memory_space<vmem>>, vector<1x1x1x4xf32>
    %199 = vector.shape_cast %198 : vector<1x1x1x4xf32> to vector<1x1x4xf32>
    %200 = vector.broadcast %199 : vector<1x1x4xf32> to vector<8x8x4xf32>
    %201 = arith.mulf %197, %200 : vector<8x8x4xf32>
    %202 = arith.addf %195, %201 : vector<8x8x4xf32>
    %c1_217 = arith.constant 1 : index
    %c1_218 = arith.constant 1 : index
    %c0_219 = arith.constant 0 : index
    %c0_220 = arith.constant 0 : index
    %c0_221 = arith.constant 0 : index
    %203 = vector.load %arg19[%c1_217, %c1_218, %c0_219, %c0_220, %c0_221] : memref<2x2x9x9x4xf32, #tpu.memory_space<vmem>>, vector<1x1x8x8x4xf32>
    %204 = vector.shape_cast %203 : vector<1x1x8x8x4xf32> to vector<8x8x4xf32>
    %c4_222 = arith.constant 4 : index
    %c0_223 = arith.constant 0 : index
    %c0_224 = arith.constant 0 : index
    %c0_225 = arith.constant 0 : index
    %205 = vector.load %arg11[%c4_222, %c0_223, %c0_224, %c0_225] : memref<9x1x1x4xf32, #tpu.memory_space<vmem>>, vector<1x1x1x4xf32>
    %206 = vector.shape_cast %205 : vector<1x1x1x4xf32> to vector<1x1x4xf32>
    %207 = vector.broadcast %206 : vector<1x1x4xf32> to vector<8x8x4xf32>
    %208 = arith.mulf %204, %207 : vector<8x8x4xf32>
    %209 = arith.addf %202, %208 : vector<8x8x4xf32>
    %c1_226 = arith.constant 1 : index
    %c0_227 = arith.constant 0 : index
    %c0_228 = arith.constant 0 : index
    %c1_229 = arith.constant 1 : index
    %c0_230 = arith.constant 0 : index
    %210 = vector.load %arg19[%c1_226, %c0_227, %c0_228, %c1_229, %c0_230] : memref<2x2x9x9x4xf32, #tpu.memory_space<vmem>>, vector<1x1x8x8x4xf32>
    %211 = vector.shape_cast %210 : vector<1x1x8x8x4xf32> to vector<8x8x4xf32>
    %c5_231 = arith.constant 5 : index
    %c0_232 = arith.constant 0 : index
    %c0_233 = arith.constant 0 : index
    %c0_234 = arith.constant 0 : index
    %212 = vector.load %arg11[%c5_231, %c0_232, %c0_233, %c0_234] : memref<9x1x1x4xf32, #tpu.memory_space<vmem>>, vector<1x1x1x4xf32>
    %213 = vector.shape_cast %212 : vector<1x1x1x4xf32> to vector<1x1x4xf32>
    %214 = vector.broadcast %213 : vector<1x1x4xf32> to vector<8x8x4xf32>
    %215 = arith.mulf %211, %214 : vector<8x8x4xf32>
    %216 = arith.addf %209, %215 : vector<8x8x4xf32>
    %c0_235 = arith.constant 0 : index
    %c0_236 = arith.constant 0 : index
    %c1_237 = arith.constant 1 : index
    %c0_238 = arith.constant 0 : index
    %c0_239 = arith.constant 0 : index
    %217 = vector.load %arg19[%c0_235, %c0_236, %c1_237, %c0_238, %c0_239] : memref<2x2x9x9x4xf32, #tpu.memory_space<vmem>>, vector<1x1x8x8x4xf32>
    %218 = vector.shape_cast %217 : vector<1x1x8x8x4xf32> to vector<8x8x4xf32>
    %c6_240 = arith.constant 6 : index
    %c0_241 = arith.constant 0 : index
    %c0_242 = arith.constant 0 : index
    %c0_243 = arith.constant 0 : index
    %219 = vector.load %arg11[%c6_240, %c0_241, %c0_242, %c0_243] : memref<9x1x1x4xf32, #tpu.memory_space<vmem>>, vector<1x1x1x4xf32>
    %220 = vector.shape_cast %219 : vector<1x1x1x4xf32> to vector<1x1x4xf32>
    %221 = vector.broadcast %220 : vector<1x1x4xf32> to vector<8x8x4xf32>
    %222 = arith.mulf %218, %221 : vector<8x8x4xf32>
    %223 = arith.addf %216, %222 : vector<8x8x4xf32>
    %c0_244 = arith.constant 0 : index
    %c1_245 = arith.constant 1 : index
    %c1_246 = arith.constant 1 : index
    %c0_247 = arith.constant 0 : index
    %c0_248 = arith.constant 0 : index
    %224 = vector.load %arg19[%c0_244, %c1_245, %c1_246, %c0_247, %c0_248] : memref<2x2x9x9x4xf32, #tpu.memory_space<vmem>>, vector<1x1x8x8x4xf32>
    %225 = vector.shape_cast %224 : vector<1x1x8x8x4xf32> to vector<8x8x4xf32>
    %c7_249 = arith.constant 7 : index
    %c0_250 = arith.constant 0 : index
    %c0_251 = arith.constant 0 : index
    %c0_252 = arith.constant 0 : index
    %226 = vector.load %arg11[%c7_249, %c0_250, %c0_251, %c0_252] : memref<9x1x1x4xf32, #tpu.memory_space<vmem>>, vector<1x1x1x4xf32>
    %227 = vector.shape_cast %226 : vector<1x1x1x4xf32> to vector<1x1x4xf32>
    %228 = vector.broadcast %227 : vector<1x1x4xf32> to vector<8x8x4xf32>
    %229 = arith.mulf %225, %228 : vector<8x8x4xf32>
    %230 = arith.addf %223, %229 : vector<8x8x4xf32>
    %c0_253 = arith.constant 0 : index
    %c0_254 = arith.constant 0 : index
    %c1_255 = arith.constant 1 : index
    %c1_256 = arith.constant 1 : index
    %c0_257 = arith.constant 0 : index
    %231 = vector.load %arg19[%c0_253, %c0_254, %c1_255, %c1_256, %c0_257] : memref<2x2x9x9x4xf32, #tpu.memory_space<vmem>>, vector<1x1x8x8x4xf32>
    %232 = vector.shape_cast %231 : vector<1x1x8x8x4xf32> to vector<8x8x4xf32>
    %c8_258 = arith.constant 8 : index
    %c0_259 = arith.constant 0 : index
    %c0_260 = arith.constant 0 : index
    %c0_261 = arith.constant 0 : index
    %233 = vector.load %arg11[%c8_258, %c0_259, %c0_260, %c0_261] : memref<9x1x1x4xf32, #tpu.memory_space<vmem>>, vector<1x1x1x4xf32>
    %234 = vector.shape_cast %233 : vector<1x1x1x4xf32> to vector<1x1x4xf32>
    %235 = vector.broadcast %234 : vector<1x1x4xf32> to vector<8x8x4xf32>
    %236 = arith.mulf %232, %235 : vector<8x8x4xf32>
    %237 = arith.addf %230, %236 : vector<8x8x4xf32>
    %c0_262 = arith.constant 0 : index
    %c0_263 = arith.constant 0 : index
    %c0_264 = arith.constant 0 : index
    %238 = vector.load %arg12[%c0_262, %c0_263, %c0_264] : memref<1x1x4xf32, #tpu.memory_space<vmem>>, vector<1x1x4xf32>
    %239 = vector.broadcast %238 : vector<1x1x4xf32> to vector<8x8x4xf32>
    %240 = arith.mulf %237, %239 : vector<8x8x4xf32>
    %c0_265 = arith.constant 0 : index
    %c0_266 = arith.constant 0 : index
    %c0_267 = arith.constant 0 : index
    %241 = vector.load %arg13[%c0_265, %c0_266, %c0_267] : memref<1x1x4xf32, #tpu.memory_space<vmem>>, vector<1x1x4xf32>
    %242 = vector.broadcast %241 : vector<1x1x4xf32> to vector<8x8x4xf32>
    %243 = arith.addf %240, %242 : vector<8x8x4xf32>
    %244 = vector.shape_cast %243 : vector<8x8x4xf32> to vector<64x4xf32>
    %c0_268 = arith.constant 0 : index
    %c0_269 = arith.constant 0 : index
    %245 = vector.load %arg14[%c0_268, %c0_269] : memref<4x4xf32, #tpu.memory_space<vmem>>, vector<4x4xf32>
    %cst_270 = arith.constant dense<0.000000e+00> : vector<64x4xf32>
    %246 = tpu.matmul %244, %245, %cst_270 {dimension_numbers = #tpu.dot_dimension_numbers<[1], [0], [0], [1], [0, 0, 1, 1], [], []>} : vector<64x4xf32>, vector<4x4xf32>, vector<64x4xf32> -> vector<64x4xf32>
    %c0_271 = arith.constant 0 : index
    %c0_272 = arith.constant 0 : index
    %247 = vector.load %arg15[%c0_271, %c0_272] : memref<1x4xf32, #tpu.memory_space<vmem>>, vector<1x4xf32>
    %248 = vector.broadcast %247 : vector<1x4xf32> to vector<64x4xf32>
    %249 = arith.mulf %246, %248 : vector<64x4xf32>
    %c0_273 = arith.constant 0 : index
    %c0_274 = arith.constant 0 : index
    %250 = vector.load %arg16[%c0_273, %c0_274] : memref<1x4xf32, #tpu.memory_space<vmem>>, vector<1x4xf32>
    %251 = vector.broadcast %250 : vector<1x4xf32> to vector<64x4xf32>
    %252 = arith.addf %249, %251 : vector<64x4xf32>
    %253 = arith.negf %252 : vector<64x4xf32>
    %254 = math.exp %253 : vector<64x4xf32>
    %cst_275 = arith.constant 1.000000e+00 : f32
    %255 = vector.broadcast %cst_275 : f32 to vector<64x4xf32>
    %256 = arith.addf %255, %254 : vector<64x4xf32>
    %257 = arith.divf %255, %256 : vector<64x4xf32>
    %258 = arith.mulf %252, %257 : vector<64x4xf32>
    %c0_276 = arith.constant 0 : index
    %c0_277 = arith.constant 0 : index
    %c0_278 = arith.constant 0 : index
    %259 = vector.load %arg18[%c0_276, %c0_277, %c0_278] : memref<1x64x4xf32, #tpu.memory_space<vmem>>, vector<1x64x4xf32>
    %260 = vector.shape_cast %259 : vector<1x64x4xf32> to vector<64x4xf32>
    %261 = vector.shape_cast %258 : vector<64x4xf32> to vector<1x64x4xf32>
    tpu.vector_store %arg18[%c0_276, %c0_277, %c0_278], %261 {strides = array<i32>} : memref<1x64x4xf32, #tpu.memory_space<vmem>>, vector<1x64x4xf32>,
    return
  }
  func.func @transform_0(%arg0: i32) -> (i32, i32, i32, i32, i32, i32) {
    %c0_i32 = arith.constant 0 : i32
    %c0_i32_0 = arith.constant 0 : i32
    %c0_i32_1 = arith.constant 0 : i32
    %c0_i32_2 = arith.constant 0 : i32
    %c0_i32_3 = arith.constant 0 : i32
    %c0_i32_4 = arith.constant 0 : i32
    return %arg0, %c0_i32, %c0_i32_0, %c0_i32_1, %c0_i32_2, %c0_i32_3 : i32, i32, i32, i32, i32, i32
  }
  func.func @transform_1(%arg0: i32) -> (i32, i32, i32, i32) {
    %c0_i32 = arith.constant 0 : i32
    %c0_i32_0 = arith.constant 0 : i32
    %c0_i32_1 = arith.constant 0 : i32
    %c0_i32_2 = arith.constant 0 : i32
    %c0_i32_3 = arith.constant 0 : i32
    return %c0_i32, %c0_i32_0, %c0_i32_1, %c0_i32_2 : i32, i32, i32, i32
  }
  func.func @transform_2(%arg0: i32) -> (i32, i32, i32) {
    %c0_i32 = arith.constant 0 : i32
    %c0_i32_0 = arith.constant 0 : i32
    %c0_i32_1 = arith.constant 0 : i32
    %c0_i32_2 = arith.constant 0 : i32
    return %c0_i32, %c0_i32_0, %c0_i32_1 : i32, i32, i32
  }
  func.func @transform_3(%arg0: i32) -> (i32, i32, i32) {
    %c0_i32 = arith.constant 0 : i32
    %c0_i32_0 = arith.constant 0 : i32
    %c0_i32_1 = arith.constant 0 : i32
    %c0_i32_2 = arith.constant 0 : i32
    return %c0_i32, %c0_i32_0, %c0_i32_1 : i32, i32, i32
  }
  func.func @transform_4(%arg0: i32) -> (i32, i32) {
    %c0_i32 = arith.constant 0 : i32
    %c0_i32_0 = arith.constant 0 : i32
    %c0_i32_1 = arith.constant 0 : i32
    return %c0_i32, %c0_i32_0 : i32, i32
  }
  func.func @transform_5(%arg0: i32) -> (i32, i32) {
    %c0_i32 = arith.constant 0 : i32
    %c0_i32_0 = arith.constant 0 : i32
    %c0_i32_1 = arith.constant 0 : i32
    return %c0_i32, %c0_i32_0 : i32, i32
  }
  func.func @transform_6(%arg0: i32) -> (i32, i32) {
    %c0_i32 = arith.constant 0 : i32
    %c0_i32_0 = arith.constant 0 : i32
    %c0_i32_1 = arith.constant 0 : i32
    return %c0_i32, %c0_i32_0 : i32, i32
  }
  func.func @transform_7(%arg0: i32) -> (i32, i32) {
    %c0_i32 = arith.constant 0 : i32
    %c0_i32_0 = arith.constant 0 : i32
    %c0_i32_1 = arith.constant 0 : i32
    return %c0_i32, %c0_i32_0 : i32, i32
  }
  func.func @transform_8(%arg0: i32) -> (i32, i32) {
    %c0_i32 = arith.constant 0 : i32
    %c0_i32_0 = arith.constant 0 : i32
    %c0_i32_1 = arith.constant 0 : i32
    return %c0_i32, %c0_i32_0 : i32, i32
  }
  func.func @transform_9(%arg0: i32) -> (i32, i32) {
    %c0_i32 = arith.constant 0 : i32
    %c0_i32_0 = arith.constant 0 : i32
    %c0_i32_1 = arith.constant 0 : i32
    return %c0_i32, %c0_i32_0 : i32, i32
  }
  func.func @transform_10(%arg0: i32) -> (i32, i32, i32, i32) {
    %c0_i32 = arith.constant 0 : i32
    %c0_i32_0 = arith.constant 0 : i32
    %c0_i32_1 = arith.constant 0 : i32
    %c0_i32_2 = arith.constant 0 : i32
    %c0_i32_3 = arith.constant 0 : i32
    return %c0_i32, %c0_i32_0, %c0_i32_1, %c0_i32_2 : i32, i32, i32, i32
  }
  func.func @transform_11(%arg0: i32) -> (i32, i32, i32) {
    %c0_i32 = arith.constant 0 : i32
    %c0_i32_0 = arith.constant 0 : i32
    %c0_i32_1 = arith.constant 0 : i32
    %c0_i32_2 = arith.constant 0 : i32
    return %c0_i32, %c0_i32_0, %c0_i32_1 : i32, i32, i32
  }
  func.func @transform_12(%arg0: i32) -> (i32, i32, i32) {
    %c0_i32 = arith.constant 0 : i32
    %c0_i32_0 = arith.constant 0 : i32
    %c0_i32_1 = arith.constant 0 : i32
    %c0_i32_2 = arith.constant 0 : i32
    return %c0_i32, %c0_i32_0, %c0_i32_1 : i32, i32, i32
  }
  func.func @transform_13(%arg0: i32) -> (i32, i32) {
    %c0_i32 = arith.constant 0 : i32
    %c0_i32_0 = arith.constant 0 : i32
    %c0_i32_1 = arith.constant 0 : i32
    return %c0_i32, %c0_i32_0 : i32, i32
  }
  func.func @transform_14(%arg0: i32) -> (i32, i32) {
    %c0_i32 = arith.constant 0 : i32
    %c0_i32_0 = arith.constant 0 : i32
    %c0_i32_1 = arith.constant 0 : i32
    return %c0_i32, %c0_i32_0 : i32, i32
  }
  func.func @transform_15(%arg0: i32) -> (i32, i32) {
    %c0_i32 = arith.constant 0 : i32
    %c0_i32_0 = arith.constant 0 : i32
    %c0_i32_1 = arith.constant 0 : i32
    return %c0_i32, %c0_i32_0 : i32, i32
  }
  func.func @transform_16(%arg0: i32) -> (i32, i32, i32) {
    %c0_i32 = arith.constant 0 : i32
    %c0_i32_0 = arith.constant 0 : i32
    %c0_i32_1 = arith.constant 0 : i32
    return %arg0, %c0_i32, %c0_i32_0 : i32, i32, i32
  }
  func.func @transform_17(%arg0: i32) -> (i32, i32, i32) {
    %c0_i32 = arith.constant 0 : i32
    %c0_i32_0 = arith.constant 0 : i32
    %c0_i32_1 = arith.constant 0 : i32
    return %arg0, %c0_i32, %c0_i32_0 : i32, i32, i32
  }
}

</mosaic_0001>

<llo_original>
// kernel: residual_downsample_forward.1
$region0: #{residual_downsample_forward.1}
  #allocation0 [shape = 'u32[]', space=smem, size = 0x4, offset = 0x4, fixed_abs, tag = 'smem constant byte address 0x4 - core index']
  #allocation1 [shape = 'u32[144,128]{1,0:T(1,128)}', space=vmem, size = 0x12000, scoped, tag = 'internal scratch']
  #allocation2 [shape = 'f32[2,2,9,9,4]{4,3,2,1,0:T(8,128)}', space=vmem, size = 0x48000, scoped, tag = 'scratch operand']
  %s0 = inlined_call_operand.vmem [shape: f32[2,2,2,9,9,4], index: 0, kind: input, shape index: {}]
  %s1 = inlined_call_operand.vmem [shape: f32[9,1,1,4], index: 1, kind: input, shape index: {}]
  %s2 = inlined_call_operand.vmem [shape: f32[1,1,4], index: 2, kind: input, shape index: {}]
  %s3 = inlined_call_operand.vmem [shape: f32[1,1,4], index: 3, kind: input, shape index: {}]
  %s4 = inlined_call_operand.vmem [shape: f32[4,4], index: 4, kind: input, shape index: {}]
  %s5 = inlined_call_operand.vmem [shape: f32[1,4], index: 5, kind: input, shape index: {}]
  %s6 = inlined_call_operand.vmem [shape: f32[1,4], index: 6, kind: input, shape index: {}]
  %s7 = inlined_call_operand.vmem [shape: f32[4,4], index: 7, kind: input, shape index: {}]
  %s8 = inlined_call_operand.vmem [shape: f32[1,4], index: 8, kind: input, shape index: {}]
  %s9 = inlined_call_operand.vmem [shape: f32[1,4], index: 9, kind: input, shape index: {}]
  %s10 = inlined_call_operand.vmem [shape: f32[9,1,1,4], index: 10, kind: input, shape index: {}]
  %s11 = inlined_call_operand.vmem [shape: f32[1,1,4], index: 11, kind: input, shape index: {}]
  %s12 = inlined_call_operand.vmem [shape: f32[1,1,4], index: 12, kind: input, shape index: {}]
  %s13 = inlined_call_operand.vmem [shape: f32[4,4], index: 13, kind: input, shape index: {}]
  %s14 = inlined_call_operand.vmem [shape: f32[1,4], index: 14, kind: input, shape index: {}]
  %s15 = inlined_call_operand.vmem [shape: f32[1,4], index: 15, kind: input, shape index: {}]
  %s16 = inlined_call_operand.vmem [shape: f32[2,64,4], index: 16, kind: output, shape index: {0}]
  %s17 = inlined_call_operand.vmem [shape: f32[2,64,4], index: 17, kind: output, shape index: {1}]
  %18 = xla_tuple %s16, %s17
  %s19 = sld [smem:[#allocation0]]
  $region105: #{residual_downsample_forward.1} parent=0
    _
  %s21 = ssub.s32 1, %s19
  %s22 = scalar_select 0, %s21, %s19
  loop: start=0, step=1, limit=4
  $region2: #{residual_downsample_forward.1} parent=0 // loop_pre_header
    _
  $region3: #{residual_downsample_forward.1} parent=0 // loop_header
    %s24 = sphi 0, %s28
    %p25 = scmp.ge.s32.totalorder %s24, 4
    %s34 = sphi 0, %s36
    %s37 = sphi 0, %s34
    %s38 = sphi 0, %s37
    %s54 = sphi 0, %s38
    %s58 = sphi 0, %s58
    %s60 = sphi 0, %s58
    %s61 = sphi 0, %s60
    %s75 = sphi 0, %s61
    %s79 = sphi 0, %s79
    %s81 = sphi 0, %s79
    %s82 = sphi 0, %s81
    %s96 = sphi 0, %s82
    %s100 = sphi 0, %s100
    %s102 = sphi 0, %s100
    %s103 = sphi 0, %s102
    %s117 = sphi 0, %s103
    %s121 = sphi 0, %s121
    %s123 = sphi 0, %s121
    %s124 = sphi 0, %s123
    %s138 = sphi 0, %s124
    %s142 = sphi 0, %s142
    %s144 = sphi 0, %s142
    %s145 = sphi 0, %s144
    %s159 = sphi 0, %s145
    %s163 = sphi 0, %s163
    %s165 = sphi 0, %s163
    %s166 = sphi 0, %s165
    %s180 = sphi 0, %s166
    %s184 = sphi 0, %s184
    %s186 = sphi 0, %s184
    %s187 = sphi 0, %s186
    %s201 = sphi 0, %s187
    %s205 = sphi 0, %s205
    %s207 = sphi 0, %s205
    %s208 = sphi 0, %s207
    %s222 = sphi 0, %s208
    %s226 = sphi 0, %s226
    %s228 = sphi 0, %s226
    %s229 = sphi 0, %s228
    %s243 = sphi 0, %s229
    %s247 = sphi 0, %s247
    %s249 = sphi 0, %s247
    %s250 = sphi 0, %s249
    %s264 = sphi 0, %s250
    %s268 = sphi 0, %s268
    %s270 = sphi 0, %s268
    %s271 = sphi 0, %s270
    %s285 = sphi 0, %s271
    %s289 = sphi 0, %s289
    %s291 = sphi 0, %s289
    %s292 = sphi 0, %s291
    %s306 = sphi 0, %s292
    %s310 = sphi 0, %s310
    %s312 = sphi 0, %s310
    %s313 = sphi 0, %s312
    %s327 = sphi 0, %s313
    %s331 = sphi 0, %s331
    %s333 = sphi 0, %s331
    %s334 = sphi 0, %s333
    %s348 = sphi 0, %s334
    %s352 = sphi 0, %s352
    %s354 = sphi 0, %s352
    %s355 = sphi 0, %s354
    %s369 = sphi 0, %s355
    %s375 = sphi 0, %s377
    %s378 = sphi 0, %s375
    %s379 = sphi 0, %s378
    %s395 = sphi 0, %s379
    %s401 = sphi 0, %s403
    %s404 = sphi 0, %s401
    %s405 = sphi 0, %s404
    %s421 = sphi 0, %s405
  $region4: #{residual_downsample_forward.1} parent=0 // loop_header_branch
    %27 = sbr.rel (%p25) target = $region8
  $region5: #{residual_downsample_forward.1} parent=0 // loop_body
    %s29 = ssub.s32 %s24, 1
    %s30 = ssub.s32 %s24, 2
    %s31 = sadd.s32 %s24, 1
    %s32 = ssub.s32 %s24, %s31
    %p33 = scmp.eq.s32.totalorder %s32, 0
    %s35 = sadd.s32 %s34, 1
    %s36 = scalar_select %p33, %s34, %s35
    %p39 = pneg %p33
    %p40 = scmp.eq.s32.totalorder %s24, 1
    %p41 = por %p39, %p40
    %p42 = scmp.ne.s32.totalorder %s34, %s37
    %p43 = scmp.eq.s32.totalorder %s24, 0
    %p44 = por %p42, %p43
    %p45 = scmp.ne.s32.totalorder %s34, %s37
    %p46 = scmp.eq.s32.totalorder %s29, 1
    %p47 = por %p45, %p46
    %p48 = scmp.ne.s32.totalorder %s37, %s38
    %p49 = scmp.eq.s32.totalorder %s29, 0
    %p50 = por %p48, %p49
    %p51 = scmp.ne.s32.totalorder %s37, %s38
    %p52 = scmp.eq.s32.totalorder %s30, 1
    %p53 = por %p51, %p52
    %p55 = scmp.ne.s32.totalorder %s38, %s54
    %p56 = scmp.eq.s32.totalorder %s30, 0
    %p57 = por %p55, %p56
    %s59 = sadd.s32 %s58, 1
    %p62 = scmp.eq.s32.totalorder %s24, 1
    %p63 = scmp.ne.s32.totalorder %s58, %s60
    %p64 = scmp.eq.s32.totalorder %s24, 0
    %p65 = por %p63, %p64
    %p66 = scmp.ne.s32.totalorder %s58, %s60
    %p67 = scmp.eq.s32.totalorder %s29, 1
    %p68 = por %p66, %p67
    %p69 = scmp.ne.s32.totalorder %s60, %s61
    %p70 = scmp.eq.s32.totalorder %s29, 0
    %p71 = por %p69, %p70
    %p72 = scmp.ne.s32.totalorder %s60, %s61
    %p73 = scmp.eq.s32.totalorder %s30, 1
    %p74 = por %p72, %p73
    %p76 = scmp.ne.s32.totalorder %s61, %s75
    %p77 = scmp.eq.s32.totalorder %s30, 0
    %p78 = por %p76, %p77
    %s80 = sadd.s32 %s79, 1
    %p83 = scmp.eq.s32.totalorder %s24, 1
    %p84 = scmp.ne.s32.totalorder %s79, %s81
    %p85 = scmp.eq.s32.totalorder %s24, 0
    %p86 = por %p84, %p85
    %p87 = scmp.ne.s32.totalorder %s79, %s81
    %p88 = scmp.eq.s32.totalorder %s29, 1
    %p89 = por %p87, %p88
    %p90 = scmp.ne.s32.totalorder %s81, %s82
    %p91 = scmp.eq.s32.totalorder %s29, 0
    %p92 = por %p90, %p91
    %p93 = scmp.ne.s32.totalorder %s81, %s82
    %p94 = scmp.eq.s32.totalorder %s30, 1
    %p95 = por %p93, %p94
    %p97 = scmp.ne.s32.totalorder %s82, %s96
    %p98 = scmp.eq.s32.totalorder %s30, 0
    %p99 = por %p97, %p98
    %s101 = sadd.s32 %s100, 1
    %p104 = scmp.eq.s32.totalorder %s24, 1
    %p105 = scmp.ne.s32.totalorder %s100, %s102
    %p106 = scmp.eq.s32.totalorder %s24, 0
    %p107 = por %p105, %p106
    %p108 = scmp.ne.s32.totalorder %s100, %s102
    %p109 = scmp.eq.s32.totalorder %s29, 1
    %p110 = por %p108, %p109
    %p111 = scmp.ne.s32.totalorder %s102, %s103
    %p112 = scmp.eq.s32.totalorder %s29, 0
    %p113 = por %p111, %p112
    %p114 = scmp.ne.s32.totalorder %s102, %s103
    %p115 = scmp.eq.s32.totalorder %s30, 1
    %p116 = por %p114, %p115
    %p118 = scmp.ne.s32.totalorder %s103, %s117
    %p119 = scmp.eq.s32.totalorder %s30, 0
    %p120 = por %p118, %p119
    %s122 = sadd.s32 %s121, 1
    %p125 = scmp.eq.s32.totalorder %s24, 1
    %p126 = scmp.ne.s32.totalorder %s121, %s123
    %p127 = scmp.eq.s32.totalorder %s24, 0
    %p128 = por %p126, %p127
    %p129 = scmp.ne.s32.totalorder %s121, %s123
    %p130 = scmp.eq.s32.totalorder %s29, 1
    %p131 = por %p129, %p130
    %p132 = scmp.ne.s32.totalorder %s123, %s124
    %p133 = scmp.eq.s32.totalorder %s29, 0
    %p134 = por %p132, %p133
    %p135 = scmp.ne.s32.totalorder %s123, %s124
    %p136 = scmp.eq.s32.totalorder %s30, 1
    %p137 = por %p135, %p136
    %p139 = scmp.ne.s32.totalorder %s124, %s138
    %p140 = scmp.eq.s32.totalorder %s30, 0
    %p141 = por %p139, %p140
    %s143 = sadd.s32 %s142, 1
    %p146 = scmp.eq.s32.totalorder %s24, 1
    %p147 = scmp.ne.s32.totalorder %s142, %s144
    %p148 = scmp.eq.s32.totalorder %s24, 0
    %p149 = por %p147, %p148
    %p150 = scmp.ne.s32.totalorder %s142, %s144
    %p151 = scmp.eq.s32.totalorder %s29, 1
    %p152 = por %p150, %p151
    %p153 = scmp.ne.s32.totalorder %s144, %s145
    %p154 = scmp.eq.s32.totalorder %s29, 0
    %p155 = por %p153, %p154
    %p156 = scmp.ne.s32.totalorder %s144, %s145
    %p157 = scmp.eq.s32.totalorder %s30, 1
    %p158 = por %p156, %p157
    %p160 = scmp.ne.s32.totalorder %s145, %s159
    %p161 = scmp.eq.s32.totalorder %s30, 0
    %p162 = por %p160, %p161
    %s164 = sadd.s32 %s163, 1
    %p167 = scmp.eq.s32.totalorder %s24, 1
    %p168 = scmp.ne.s32.totalorder %s163, %s165
    %p169 = scmp.eq.s32.totalorder %s24, 0
    %p170 = por %p168, %p169
    %p171 = scmp.ne.s32.totalorder %s163, %s165
    %p172 = scmp.eq.s32.totalorder %s29, 1
    %p173 = por %p171, %p172
    %p174 = scmp.ne.s32.totalorder %s165, %s166
    %p175 = scmp.eq.s32.totalorder %s29, 0
    %p176 = por %p174, %p175
    %p177 = scmp.ne.s32.totalorder %s165, %s166
    %p178 = scmp.eq.s32.totalorder %s30, 1
    %p179 = por %p177, %p178
    %p181 = scmp.ne.s32.totalorder %s166, %s180
    %p182 = scmp.eq.s32.totalorder %s30, 0
    %p183 = por %p181, %p182
    %s185 = sadd.s32 %s184, 1
    %p188 = scmp.eq.s32.totalorder %s24, 1
    %p189 = scmp.ne.s32.totalorder %s184, %s186
    %p190 = scmp.eq.s32.totalorder %s24, 0
    %p191 = por %p189, %p190
    %p192 = scmp.ne.s32.totalorder %s184, %s186
    %p193 = scmp.eq.s32.totalorder %s29, 1
    %p194 = por %p192, %p193
    %p195 = scmp.ne.s32.totalorder %s186, %s187
    %p196 = scmp.eq.s32.totalorder %s29, 0
    %p197 = por %p195, %p196
    %p198 = scmp.ne.s32.totalorder %s186, %s187
    %p199 = scmp.eq.s32.totalorder %s30, 1
    %p200 = por %p198, %p199
    %p202 = scmp.ne.s32.totalorder %s187, %s201
    %p203 = scmp.eq.s32.totalorder %s30, 0
    %p204 = por %p202, %p203
    %s206 = sadd.s32 %s205, 1
    %p209 = scmp.eq.s32.totalorder %s24, 1
    %p210 = scmp.ne.s32.totalorder %s205, %s207
    %p211 = scmp.eq.s32.totalorder %s24, 0
    %p212 = por %p210, %p211
    %p213 = scmp.ne.s32.totalorder %s205, %s207
    %p214 = scmp.eq.s32.totalorder %s29, 1
    %p215 = por %p213, %p214
    %p216 = scmp.ne.s32.totalorder %s207, %s208
    %p217 = scmp.eq.s32.totalorder %s29, 0
    %p218 = por %p216, %p217
    %p219 = scmp.ne.s32.totalorder %s207, %s208
    %p220 = scmp.eq.s32.totalorder %s30, 1
    %p221 = por %p219, %p220
    %p223 = scmp.ne.s32.totalorder %s208, %s222
    %p224 = scmp.eq.s32.totalorder %s30, 0
    %p225 = por %p223, %p224
    %s227 = sadd.s32 %s226, 1
    %p230 = scmp.eq.s32.totalorder %s24, 1
    %p231 = scmp.ne.s32.totalorder %s226, %s228
    %p232 = scmp.eq.s32.totalorder %s24, 0
    %p233 = por %p231, %p232
    %p234 = scmp.ne.s32.totalorder %s226, %s228
    %p235 = scmp.eq.s32.totalorder %s29, 1
    %p236 = por %p234, %p235
    %p237 = scmp.ne.s32.totalorder %s228, %s229
    %p238 = scmp.eq.s32.totalorder %s29, 0
    %p239 = por %p237, %p238
    %p240 = scmp.ne.s32.totalorder %s228, %s229
    %p241 = scmp.eq.s32.totalorder %s30, 1
    %p242 = por %p240, %p241
    %p244 = scmp.ne.s32.totalorder %s229, %s243
    %p245 = scmp.eq.s32.totalorder %s30, 0
    %p246 = por %p244, %p245
    %s248 = sadd.s32 %s247, 1
    %p251 = scmp.eq.s32.totalorder %s24, 1
    %p252 = scmp.ne.s32.totalorder %s247, %s249
    %p253 = scmp.eq.s32.totalorder %s24, 0
    %p254 = por %p252, %p253
    %p255 = scmp.ne.s32.totalorder %s247, %s249
    %p256 = scmp.eq.s32.totalorder %s29, 1
    %p257 = por %p255, %p256
    %p258 = scmp.ne.s32.totalorder %s249, %s250
    %p259 = scmp.eq.s32.totalorder %s29, 0
    %p260 = por %p258, %p259
    %p261 = scmp.ne.s32.totalorder %s249, %s250
    %p262 = scmp.eq.s32.totalorder %s30, 1
    %p263 = por %p261, %p262
    %p265 = scmp.ne.s32.totalorder %s250, %s264
    %p266 = scmp.eq.s32.totalorder %s30, 0
    %p267 = por %p265, %p266
    %s269 = sadd.s32 %s268, 1
    %p272 = scmp.eq.s32.totalorder %s24, 1
    %p273 = scmp.ne.s32.totalorder %s268, %s270
    %p274 = scmp.eq.s32.totalorder %s24, 0
    %p275 = por %p273, %p274
    %p276 = scmp.ne.s32.totalorder %s268, %s270
    %p277 = scmp.eq.s32.totalorder %s29, 1
    %p278 = por %p276, %p277
    %p279 = scmp.ne.s32.totalorder %s270, %s271
    %p280 = scmp.eq.s32.totalorder %s29, 0
    %p281 = por %p279, %p280
    %p282 = scmp.ne.s32.totalorder %s270, %s271
    %p283 = scmp.eq.s32.totalorder %s30, 1
    %p284 = por %p282, %p283
    %p286 = scmp.ne.s32.totalorder %s271, %s285
    %p287 = scmp.eq.s32.totalorder %s30, 0
    %p288 = por %p286, %p287
    %s290 = sadd.s32 %s289, 1
    %p293 = scmp.eq.s32.totalorder %s24, 1
    %p294 = scmp.ne.s32.totalorder %s289, %s291
    %p295 = scmp.eq.s32.totalorder %s24, 0
    %p296 = por %p294, %p295
    %p297 = scmp.ne.s32.totalorder %s289, %s291
    %p298 = scmp.eq.s32.totalorder %s29, 1
    %p299 = por %p297, %p298
    %p300 = scmp.ne.s32.totalorder %s291, %s292
    %p301 = scmp.eq.s32.totalorder %s29, 0
    %p302 = por %p300, %p301
    %p303 = scmp.ne.s32.totalorder %s291, %s292
    %p304 = scmp.eq.s32.totalorder %s30, 1
    %p305 = por %p303, %p304
    %p307 = scmp.ne.s32.totalorder %s292, %s306
    %p308 = scmp.eq.s32.totalorder %s30, 0
    %p309 = por %p307, %p308
    %s311 = sadd.s32 %s310, 1
    %p314 = scmp.eq.s32.totalorder %s24, 1
    %p315 = scmp.ne.s32.totalorder %s310, %s312
    %p316 = scmp.eq.s32.totalorder %s24, 0
    %p317 = por %p315, %p316
    %p318 = scmp.ne.s32.totalorder %s310, %s312
    %p319 = scmp.eq.s32.totalorder %s29, 1
    %p320 = por %p318, %p319
    %p321 = scmp.ne.s32.totalorder %s312, %s313
    %p322 = scmp.eq.s32.totalorder %s29, 0
    %p323 = por %p321, %p322
    %p324 = scmp.ne.s32.totalorder %s312, %s313
    %p325 = scmp.eq.s32.totalorder %s30, 1
    %p326 = por %p324, %p325
    %p328 = scmp.ne.s32.totalorder %s313, %s327
    %p329 = scmp.eq.s32.totalorder %s30, 0
    %p330 = por %p328, %p329
    %s332 = sadd.s32 %s331, 1
    %p335 = scmp.eq.s32.totalorder %s24, 1
    %p336 = scmp.ne.s32.totalorder %s331, %s333
    %p337 = scmp.eq.s32.totalorder %s24, 0
    %p338 = por %p336, %p337
    %p339 = scmp.ne.s32.totalorder %s331, %s333
    %p340 = scmp.eq.s32.totalorder %s29, 1
    %p341 = por %p339, %p340
    %p342 = scmp.ne.s32.totalorder %s333, %s334
    %p343 = scmp.eq.s32.totalorder %s29, 0
    %p344 = por %p342, %p343
    %p345 = scmp.ne.s32.totalorder %s333, %s334
    %p346 = scmp.eq.s32.totalorder %s30, 1
    %p347 = por %p345, %p346
    %p349 = scmp.ne.s32.totalorder %s334, %s348
    %p350 = scmp.eq.s32.totalorder %s30, 0
    %p351 = por %p349, %p350
    %s353 = sadd.s32 %s352, 1
    %p356 = scmp.eq.s32.totalorder %s24, 1
    %p357 = scmp.ne.s32.totalorder %s352, %s354
    %p358 = scmp.eq.s32.totalorder %s24, 0
    %p359 = por %p357, %p358
    %p360 = scmp.ne.s32.totalorder %s352, %s354
    %p361 = scmp.eq.s32.totalorder %s29, 1
    %p362 = por %p360, %p361
    %p363 = scmp.ne.s32.totalorder %s354, %s355
    %p364 = scmp.eq.s32.totalorder %s29, 0
    %p365 = por %p363, %p364
    %p366 = scmp.ne.s32.totalorder %s354, %s355
    %p367 = scmp.eq.s32.totalorder %s30, 1
    %p368 = por %p366, %p367
    %p370 = scmp.ne.s32.totalorder %s355, %s369
    %p371 = scmp.eq.s32.totalorder %s30, 0
    %p372 = por %p370, %p371
    %s373 = ssub.s32 %s24, %s31
    %p374 = scmp.eq.s32.totalorder %s373, 0
    %s376 = sadd.s32 %s375, 1
    %s377 = scalar_select %p374, %s375, %s376
    %p380 = pneg %p374
    %p381 = scmp.eq.s32.totalorder %s24, 1
    %p382 = por %p380, %p381
    %p383 = scmp.ne.s32.totalorder %s375, %s378
    %p384 = scmp.eq.s32.totalorder %s24, 0
    %p385 = por %p383, %p384
    %p386 = scmp.ne.s32.totalorder %s375, %s378
    %p387 = scmp.eq.s32.totalorder %s29, 1
    %p388 = por %p386, %p387
    %p389 = scmp.ne.s32.totalorder %s378, %s379
    %p390 = scmp.eq.s32.totalorder %s29, 0
    %p391 = por %p389, %p390
    %p392 = scmp.ne.s32.totalorder %s378, %s379
    %p393 = scmp.eq.s32.totalorder %s30, 1
    %p394 = por %p392, %p393
    %p396 = scmp.ne.s32.totalorder %s379, %s395
    %p397 = scmp.eq.s32.totalorder %s30, 0
    %p398 = por %p396, %p397
    %s399 = ssub.s32 %s24, %s31
    %p400 = scmp.eq.s32.totalorder %s399, 0
    %s402 = sadd.s32 %s401, 1
    %s403 = scalar_select %p400, %s401, %s402
    %p406 = pneg %p400
    %p407 = scmp.eq.s32.totalorder %s24, 1
    %p408 = por %p406, %p407
    %p409 = scmp.ne.s32.totalorder %s401, %s404
    %p410 = scmp.eq.s32.totalorder %s24, 0
    %p411 = por %p409, %p410
    %p412 = scmp.ne.s32.totalorder %s401, %s404
    %p413 = scmp.eq.s32.totalorder %s29, 1
    %p414 = por %p412, %p413
    %p415 = scmp.ne.s32.totalorder %s404, %s405
    %p416 = scmp.eq.s32.totalorder %s29, 0
    %p417 = por %p415, %p416
    %p418 = scmp.ne.s32.totalorder %s404, %s405
    %p419 = scmp.eq.s32.totalorder %s30, 1
    %p420 = por %p418, %p419
    %p422 = scmp.ne.s32.totalorder %s405, %s421
    %p423 = scmp.eq.s32.totalorder %s30, 0
    %p424 = por %p422, %p423
    %p425 = scmp.le.s32.totalorder 1, %s24
    %p426 = scmp.lt.s32.totalorder %s24, 3
    %p427 = pnand %p425, %p426
    %p428 = pneg %p427
    // Predicated region
    $region9: #{residual_downsample_forward.1} parent=5 // pred_check
      _
    $region10: #{residual_downsample_forward.1} parent=5 // pred_check_branch
      %430 = sbr.rel (%p427) target = $region12
    $region11: #{residual_downsample_forward.1} parent=5 // pred_region
      %s431 = ssub.s32 %s24, 1
      // Predicated region
      $region13: #{residual_downsample_forward.1} parent=11 // pred_check
        %p432 = pneg %p71
      $region14: #{residual_downsample_forward.1} parent=11 // pred_check_branch
        %434 = sbr.rel (%p432) target = $region16
      $region15: #{residual_downsample_forward.1} parent=11 // pred_region
        _
      $region16: #{residual_downsample_forward.1} parent=11 // pred_fallthru
        _
      // Predicated region
      $region17: #{residual_downsample_forward.1} parent=11 // pred_check
        %p435 = pneg %p92
      $region18: #{residual_downsample_forward.1} parent=11 // pred_check_branch
        %437 = sbr.rel (%p435) target = $region20
      $region19: #{residual_downsample_forward.1} parent=11 // pred_region
        _
      $region20: #{residual_downsample_forward.1} parent=11 // pred_fallthru
        _
      // Predicated region
      $region21: #{residual_downsample_forward.1} parent=11 // pred_check
        %p438 = pneg %p113
      $region22: #{residual_downsample_forward.1} parent=11 // pred_check_branch
        %440 = sbr.rel (%p438) target = $region24
      $region23: #{residual_downsample_forward.1} parent=11 // pred_region
        _
      $region24: #{residual_downsample_forward.1} parent=11 // pred_fallthru
        _
      // Predicated region
      $region25: #{residual_downsample_forward.1} parent=11 // pred_check
        %p441 = pneg %p134
      $region26: #{residual_downsample_forward.1} parent=11 // pred_check_branch
        %443 = sbr.rel (%p441) target = $region28
      $region27: #{residual_downsample_forward.1} parent=11 // pred_region
        _
      $region28: #{residual_downsample_forward.1} parent=11 // pred_fallthru
        _
      // Predicated region
      $region29: #{residual_downsample_forward.1} parent=11 // pred_check
        %p444 = pneg %p155
      $region30: #{residual_downsample_forward.1} parent=11 // pred_check_branch
        %446 = sbr.rel (%p444) target = $region32
      $region31: #{residual_downsample_forward.1} parent=11 // pred_region
        _
      $region32: #{residual_downsample_forward.1} parent=11 // pred_fallthru
        _
      // Predicated region
      $region33: #{residual_downsample_forward.1} parent=11 // pred_check
        %p447 = pneg %p176
      $region34: #{residual_downsample_forward.1} parent=11 // pred_check_branch
        %449 = sbr.rel (%p447) target = $region36
      $region35: #{residual_downsample_forward.1} parent=11 // pred_region
        _
      $region36: #{residual_downsample_forward.1} parent=11 // pred_fallthru
        _
      // Predicated region
      $region37: #{residual_downsample_forward.1} parent=11 // pred_check
        %p450 = pneg %p197
      $region38: #{residual_downsample_forward.1} parent=11 // pred_check_branch
        %452 = sbr.rel (%p450) target = $region40
      $region39: #{residual_downsample_forward.1} parent=11 // pred_region
        _
      $region40: #{residual_downsample_forward.1} parent=11 // pred_fallthru
        _
      // Predicated region
      $region41: #{residual_downsample_forward.1} parent=11 // pred_check
        %p453 = pneg %p218
      $region42: #{residual_downsample_forward.1} parent=11 // pred_check_branch
        %455 = sbr.rel (%p453) target = $region44
      $region43: #{residual_downsample_forward.1} parent=11 // pred_region
        _
      $region44: #{residual_downsample_forward.1} parent=11 // pred_fallthru
        _
      // Predicated region
      $region45: #{residual_downsample_forward.1} parent=11 // pred_check
        %p456 = pneg %p239
      $region46: #{residual_downsample_forward.1} parent=11 // pred_check_branch
        %458 = sbr.rel (%p456) target = $region48
      $region47: #{residual_downsample_forward.1} parent=11 // pred_region
        _
      $region48: #{residual_downsample_forward.1} parent=11 // pred_fallthru
        _
      // Predicated region
      $region49: #{residual_downsample_forward.1} parent=11 // pred_check
        %p459 = pneg %p260
      $region50: #{residual_downsample_forward.1} parent=11 // pred_check_branch
        %461 = sbr.rel (%p459) target = $region52
      $region51: #{residual_downsample_forward.1} parent=11 // pred_region
        _
      $region52: #{residual_downsample_forward.1} parent=11 // pred_fallthru
        _
      // Predicated region
      $region53: #{residual_downsample_forward.1} parent=11 // pred_check
        %p462 = pneg %p281
      $region54: #{residual_downsample_forward.1} parent=11 // pred_check_branch
        %464 = sbr.rel (%p462) target = $region56
      $region55: #{residual_downsample_forward.1} parent=11 // pred_region
        _
      $region56: #{residual_downsample_forward.1} parent=11 // pred_fallthru
        _
      // Predicated region
      $region57: #{residual_downsample_forward.1} parent=11 // pred_check
        %p465 = pneg %p302
      $region58: #{residual_downsample_forward.1} parent=11 // pred_check_branch
        %467 = sbr.rel (%p465) target = $region60
      $region59: #{residual_downsample_forward.1} parent=11 // pred_region
        _
      $region60: #{residual_downsample_forward.1} parent=11 // pred_fallthru
        _
      // Predicated region
      $region61: #{residual_downsample_forward.1} parent=11 // pred_check
        %p468 = pneg %p323
      $region62: #{residual_downsample_forward.1} parent=11 // pred_check_branch
        %470 = sbr.rel (%p468) target = $region64
      $region63: #{residual_downsample_forward.1} parent=11 // pred_region
        _
      $region64: #{residual_downsample_forward.1} parent=11 // pred_fallthru
        _
      // Predicated region
      $region65: #{residual_downsample_forward.1} parent=11 // pred_check
        %p471 = pneg %p344
      $region66: #{residual_downsample_forward.1} parent=11 // pred_check_branch
        %473 = sbr.rel (%p471) target = $region68
      $region67: #{residual_downsample_forward.1} parent=11 // pred_region
        _
      $region68: #{residual_downsample_forward.1} parent=11 // pred_fallthru
        _
      // Predicated region
      $region69: #{residual_downsample_forward.1} parent=11 // pred_check
        %p474 = pneg %p365
      $region70: #{residual_downsample_forward.1} parent=11 // pred_check_branch
        %476 = sbr.rel (%p474) target = $region72
      $region71: #{residual_downsample_forward.1} parent=11 // pred_region
        _
      $region72: #{residual_downsample_forward.1} parent=11 // pred_fallthru
        _
    $region12: #{residual_downsample_forward.1} parent=5 // pred_fallthru
      _
    %p477 = scmp.lt.s32.totalorder %s24, 2
    // Predicated region
    $region73: #{residual_downsample_forward.1} parent=5 // pred_check
      %p478 = pneg %p477
    $region74: #{residual_downsample_forward.1} parent=5 // pred_check_branch
      %480 = sbr.rel (%p478) target = $region76
    $region75: #{residual_downsample_forward.1} parent=5 // pred_region
      // Predicated region
      $region77: #{residual_downsample_forward.1} parent=75 // pred_check
        %p481 = pneg %p44
      $region78: #{residual_downsample_forward.1} parent=75 // pred_check_branch
        %483 = sbr.rel (%p481) target = $region80
      $region79: #{residual_downsample_forward.1} parent=75 // pred_region
        %p484 = scmp.lt.s32.totalorder %s24, 1
        %s485 = scalar_select %p484, %s24, 1
        %s486 = smul.addr %s485, 72
        %s487 = smul.addr %s486, 8
        %s488 = scalar_lea.vmem %s0, %s487
      $region80: #{residual_downsample_forward.1} parent=75 // pred_fallthru
        _
    $region76: #{residual_downsample_forward.1} parent=5 // pred_fallthru
      _
    %p489 = scmp.le.s32.totalorder 1, %s24
    %p490 = scmp.lt.s32.totalorder %s24, 3
    %p491 = pnand %p489, %p490
    %p492 = pneg %p491
    // Predicated region
    $region81: #{residual_downsample_forward.1} parent=5 // pred_check
      _
    $region82: #{residual_downsample_forward.1} parent=5 // pred_check_branch
      %494 = sbr.rel (%p491) target = $region84
    $region83: #{residual_downsample_forward.1} parent=5 // pred_region
      %s495 = ssub.s32 %s24, 1
      %p496 = scmp.lt.s32.totalorder %s29, 1
      %s497 = scalar_select %p496, %s29, 1
      %s498 = smul.addr %s497, 72
      %s499 = smul.addr %s498, 8
      %s500 = scalar_lea.vmem %s0, %s499
      %p501 = pneg %p50
      %p502 = pneg %p47
      %p503 = pneg %p71
      %p504 = pneg %p68
      %p505 = pneg %p92
      %p506 = pneg %p89
      %p507 = pneg %p113
      %p508 = pneg %p110
      %p509 = pneg %p134
      %p510 = pneg %p131
      %p511 = pneg %p155
      %p512 = pneg %p152
      %p513 = pneg %p176
      %p514 = pneg %p173
      %p515 = pneg %p197
      %p516 = pneg %p194
      %p517 = pneg %p218
      %p518 = pneg %p215
      %p519 = pneg %p239
      %p520 = pneg %p236
      %p521 = pneg %p260
      %p522 = pneg %p257
      %p523 = pneg %p281
      %p524 = pneg %p278
      %p525 = pneg %p302
      %p526 = pneg %p299
      %p527 = pneg %p323
      %p528 = pneg %p320
      %p529 = pneg %p344
      %p530 = pneg %p341
      %p531 = pneg %p365
      %p532 = pneg %p362
      %p533 = pneg %p391
      %p534 = pneg %p388
      %p535 = scmp.lt.s32.totalorder %s29, 1
      %s536 = scalar_select %p535, %s29, 1
      %s537 = smul.addr %s536, 8
      %s538 = smul.addr %s537, 8
      %s539 = scalar_lea.vmem %s16, %s538
      %p540 = pneg %p417
      %p541 = pneg %p414
      %p542 = scmp.lt.s32.totalorder %s29, 1
      %s543 = scalar_select %p542, %s29, 1
      %s544 = smul.addr %s543, 8
      %s545 = smul.addr %s544, 8
      %s546 = scalar_lea.vmem %s17, %s545
      %p547 = scmp.lt.s32.totalorder %s29, 1
      %s548 = scalar_select %p547, %s29, 1
      %s549 = smul.addr %s548, 72
      %s550 = smul.addr %s549, 8
      %s551 = scalar_lea.vmem %s0, %s550
      %p552 = scmp.lt.s32.totalorder %s29, 1
      %s553 = scalar_select %p552, %s29, 1
      %s554 = smul.addr %s553, 8
      %s555 = smul.addr %s554, 8
      %s556 = scalar_lea.vmem %s16, %s555
      %p557 = scmp.lt.s32.totalorder %s29, 1
      %s558 = scalar_select %p557, %s29, 1
      %s559 = smul.addr %s558, 8
      %s560 = smul.addr %s559, 8
      %s561 = scalar_lea.vmem %s17, %s560
      %v562 = vld [vmem:[%s551] sm:$0xff]
      %v563 = vld [vmem:[%s551 + $0x10] sm:$0xff]
      %v564 = vld [vmem:[%s551 + $0x20] sm:$0xff]
      %v565 = vld [vmem:[%s551 + $0x30] sm:$0xff]
      %v566 = vld [vmem:[%s551 + $0x40] sm:$0xff]
      %v567 = vld [vmem:[%s551 + $0x50] sm:$0xff]
      %v568 = vld [vmem:[%s551 + $0x60] sm:$0xff]
      %v569 = vld [vmem:[%s551 + $0x70] sm:$0xff]
      %v570 = vld [vmem:[%s1] sm:$0x1]
      %v572 = vlaneseq
      %v573 = vshrl.u32 %v572, 7
      %v574 = vsub.s32 0, %v573
      %v575 = vrot.slane %v570, %v574
      %v577 = vmul.f32 %v562, %v575
      %v578 = vmul.f32 %v563, %v575
      %v579 = vmul.f32 %v564, %v575
      %v580 = vmul.f32 %v565, %v575
      %v581 = vmul.f32 %v566, %v575
      %v582 = vmul.f32 %v567, %v575
      %v583 = vmul.f32 %v568, %v575
      %v584 = vmul.f32 %v569, %v575
      %v585 = vadd.f32 %v577, 0.0
      %v586 = vadd.f32 %v578, 0.0
      %v587 = vadd.f32 %v579, 0.0
      %v588 = vadd.f32 %v580, 0.0
      %v589 = vadd.f32 %v581, 0.0
      %v590 = vadd.f32 %v582, 0.0
      %v591 = vadd.f32 %v583, 0.0
      %v592 = vadd.f32 %v584, 0.0
      %s593 = scalar_lea.vmem %s551, 144
      %v594 = vld [vmem:[%s593] sm:$0xff]
      %v595 = vld [vmem:[%s593 + $0x10] sm:$0xff]
      %v596 = vld [vmem:[%s593 + $0x20] sm:$0xff]
      %v597 = vld [vmem:[%s593 + $0x30] sm:$0xff]
      %v598 = vld [vmem:[%s593 + $0x40] sm:$0xff]
      %v599 = vld [vmem:[%s593 + $0x50] sm:$0xff]
      %v600 = vld [vmem:[%s593 + $0x60] sm:$0xff]
      %v601 = vld [vmem:[%s593 + $0x70] sm:$0xff]
      %s602 = scalar_lea.vmem %s1, 1
      %v603 = vld [vmem:[%s602] sm:$0x1]
      %v605 = vlaneseq
      %v606 = vshrl.u32 %v605, 7
      %v607 = vsub.s32 0, %v606
      %v608 = vrot.slane %v603, %v607
      %v610 = vmul.f32 %v594, %v608
      %v611 = vmul.f32 %v595, %v608
      %v612 = vmul.f32 %v596, %v608
      %v613 = vmul.f32 %v597, %v608
      %v614 = vmul.f32 %v598, %v608
      %v615 = vmul.f32 %v599, %v608
      %v616 = vmul.f32 %v600, %v608
      %v617 = vmul.f32 %v601, %v608
      %v618 = vadd.f32 %v585, %v610
      %v619 = vadd.f32 %v586, %v611
      %v620 = vadd.f32 %v587, %v612
      %v621 = vadd.f32 %v588, %v613
      %v622 = vadd.f32 %v589, %v614
      %v623 = vadd.f32 %v590, %v615
      %v624 = vadd.f32 %v591, %v616
      %v625 = vadd.f32 %v592, %v617
      %v626 = vld [vmem:[%s551 + $0x1] sm:$0xff]
      %v627 = vld [vmem:[%s551 + $0x11] sm:$0xff]
      %v628 = vld [vmem:[%s551 + $0x21] sm:$0xff]
      %v629 = vld [vmem:[%s551 + $0x31] sm:$0xff]
      %v630 = vld [vmem:[%s551 + $0x41] sm:$0xff]
      %v631 = vld [vmem:[%s551 + $0x51] sm:$0xff]
      %v632 = vld [vmem:[%s551 + $0x61] sm:$0xff]
      %v633 = vld [vmem:[%s551 + $0x71] sm:$0xff]
      %s634 = scalar_lea.vmem %s1, 2
      %v635 = vld [vmem:[%s634] sm:$0x1]
      %v637 = vlaneseq
      %v638 = vshrl.u32 %v637, 7
      %v639 = vsub.s32 0, %v638
      %v640 = vrot.slane %v635, %v639
      %v642 = vmul.f32 %v626, %v640
      %v643 = vmul.f32 %v627, %v640
      %v644 = vmul.f32 %v628, %v640
      %v645 = vmul.f32 %v629, %v640
      %v646 = vmul.f32 %v630, %v640
      %v647 = vmul.f32 %v631, %v640
      %v648 = vmul.f32 %v632, %v640
      %v649 = vmul.f32 %v633, %v640
      %v650 = vadd.f32 %v618, %v642
      %v651 = vadd.f32 %v619, %v643
      %v652 = vadd.f32 %v620, %v644
      %v653 = vadd.f32 %v621, %v645
      %v654 = vadd.f32 %v622, %v646
      %v655 = vadd.f32 %v623, %v647
      %v656 = vadd.f32 %v624, %v648
      %v657 = vadd.f32 %v625, %v649
      %s658 = scalar_lea.vmem %s551, 288
      %v659 = vld [vmem:[%s658] sm:$0xff]
      %v660 = vld [vmem:[%s658 + $0x10] sm:$0xff]
      %v661 = vld [vmem:[%s658 + $0x20] sm:$0xff]
      %v662 = vld [vmem:[%s658 + $0x30] sm:$0xff]
      %v663 = vld [vmem:[%s658 + $0x40] sm:$0xff]
      %v664 = vld [vmem:[%s658 + $0x50] sm:$0xff]
      %v665 = vld [vmem:[%s658 + $0x60] sm:$0xff]
      %v666 = vld [vmem:[%s658 + $0x70] sm:$0xff]
      %s667 = scalar_lea.vmem %s1, 3
      %v668 = vld [vmem:[%s667] sm:$0x1]
      %v670 = vlaneseq
      %v671 = vshrl.u32 %v670, 7
      %v672 = vsub.s32 0, %v671
      %v673 = vrot.slane %v668, %v672
      %v675 = vmul.f32 %v659, %v673
      %v676 = vmul.f32 %v660, %v673
      %v677 = vmul.f32 %v661, %v673
      %v678 = vmul.f32 %v662, %v673
      %v679 = vmul.f32 %v663, %v673
      %v680 = vmul.f32 %v664, %v673
      %v681 = vmul.f32 %v665, %v673
      %v682 = vmul.f32 %v666, %v673
      %v683 = vadd.f32 %v650, %v675
      %v684 = vadd.f32 %v651, %v676
      %v685 = vadd.f32 %v652, %v677
      %v686 = vadd.f32 %v653, %v678
      %v687 = vadd.f32 %v654, %v679
      %v688 = vadd.f32 %v655, %v680
      %v689 = vadd.f32 %v656, %v681
      %v690 = vadd.f32 %v657, %v682
      %s691 = scalar_lea.vmem %s551, 432
      %v692 = vld [vmem:[%s691] sm:$0xff]
      %v693 = vld [vmem:[%s691 + $0x10] sm:$0xff]
      %v694 = vld [vmem:[%s691 + $0x20] sm:$0xff]
      %v695 = vld [vmem:[%s691 + $0x30] sm:$0xff]
      %v696 = vld [vmem:[%s691 + $0x40] sm:$0xff]
      %v697 = vld [vmem:[%s691 + $0x50] sm:$0xff]
      %v698 = vld [vmem:[%s691 + $0x60] sm:$0xff]
      %v699 = vld [vmem:[%s691 + $0x70] sm:$0xff]
      %s700 = scalar_lea.vmem %s1, 4
      %v701 = vld [vmem:[%s700] sm:$0x1]
      %v703 = vlaneseq
      %v704 = vshrl.u32 %v703, 7
      %v705 = vsub.s32 0, %v704
      %v706 = vrot.slane %v701, %v705
      %v708 = vmul.f32 %v692, %v706
      %v709 = vmul.f32 %v693, %v706
      %v710 = vmul.f32 %v694, %v706
      %v711 = vmul.f32 %v695, %v706
      %v712 = vmul.f32 %v696, %v706
      %v713 = vmul.f32 %v697, %v706
      %v714 = vmul.f32 %v698, %v706
      %v715 = vmul.f32 %v699, %v706
      %v716 = vadd.f32 %v683, %v708
      %v717 = vadd.f32 %v684, %v709
      %v718 = vadd.f32 %v685, %v710
      %v719 = vadd.f32 %v686, %v711
      %v720 = vadd.f32 %v687, %v712
      %v721 = vadd.f32 %v688, %v713
      %v722 = vadd.f32 %v689, %v714
      %v723 = vadd.f32 %v690, %v715
      %v724 = vld [vmem:[%s658 + $0x1] sm:$0xff]
      %v725 = vld [vmem:[%s658 + $0x11] sm:$0xff]
      %v726 = vld [vmem:[%s658 + $0x21] sm:$0xff]
      %v727 = vld [vmem:[%s658 + $0x31] sm:$0xff]
      %v728 = vld [vmem:[%s658 + $0x41] sm:$0xff]
      %v729 = vld [vmem:[%s658 + $0x51] sm:$0xff]
      %v730 = vld [vmem:[%s658 + $0x61] sm:$0xff]
      %v731 = vld [vmem:[%s658 + $0x71] sm:$0xff]
      %s732 = scalar_lea.vmem %s1, 5
      %v733 = vld [vmem:[%s732] sm:$0x1]
      %v735 = vlaneseq
      %v736 = vshrl.u32 %v735, 7
      %v737 = vsub.s32 0, %v736
      %v738 = vrot.slane %v733, %v737
      %v740 = vmul.f32 %v724, %v738
      %v741 = vmul.f32 %v725, %v738
      %v742 = vmul.f32 %v726, %v738
      %v743 = vmul.f32 %v727, %v738
      %v744 = vmul.f32 %v728, %v738
      %v745 = vmul.f32 %v729, %v738
      %v746 = vmul.f32 %v730, %v738
      %v747 = vmul.f32 %v731, %v738
      %v748 = vadd.f32 %v716, %v740
      %v749 = vadd.f32 %v717, %v741
      %v750 = vadd.f32 %v718, %v742
      %v751 = vadd.f32 %v719, %v743
      %v752 = vadd.f32 %v720, %v744
      %v753 = vadd.f32 %v721, %v745
      %v754 = vadd.f32 %v722, %v746
      %v755 = vadd.f32 %v723, %v747
      %s756 = scalar_lea.vmem %s551, 16
      %v757 = vld [vmem:[%s756] sm:$0xff]
      %v758 = vld [vmem:[%s756 + $0x10] sm:$0xff]
      %v759 = vld [vmem:[%s756 + $0x20] sm:$0xff]
      %v760 = vld [vmem:[%s756 + $0x30] sm:$0xff]
      %v761 = vld [vmem:[%s756 + $0x40] sm:$0xff]
      %v762 = vld [vmem:[%s756 + $0x50] sm:$0xff]
      %v763 = vld [vmem:[%s756 + $0x60] sm:$0xff]
      %v764 = vld [vmem:[%s756 + $0x70] sm:$0xff]
      %s765 = scalar_lea.vmem %s1, 6
      %v766 = vld [vmem:[%s765] sm:$0x1]
      %v768 = vlaneseq
      %v769 = vshrl.u32 %v768, 7
      %v770 = vsub.s32 0, %v769
      %v771 = vrot.slane %v766, %v770
      %v773 = vmul.f32 %v757, %v771
      %v774 = vmul.f32 %v758, %v771
      %v775 = vmul.f32 %v759, %v771
      %v776 = vmul.f32 %v760, %v771
      %v777 = vmul.f32 %v761, %v771
      %v778 = vmul.f32 %v762, %v771
      %v779 = vmul.f32 %v763, %v771
      %v780 = vmul.f32 %v764, %v771
      %v781 = vadd.f32 %v748, %v773
      %v782 = vadd.f32 %v749, %v774
      %v783 = vadd.f32 %v750, %v775
      %v784 = vadd.f32 %v751, %v776
      %v785 = vadd.f32 %v752, %v777
      %v786 = vadd.f32 %v753, %v778
      %v787 = vadd.f32 %v754, %v779
      %v788 = vadd.f32 %v755, %v780
      %s789 = scalar_lea.vmem %s551, 160
      %v790 = vld [vmem:[%s789] sm:$0xff]
      %v791 = vld [vmem:[%s789 + $0x10] sm:$0xff]
      %v792 = vld [vmem:[%s789 + $0x20] sm:$0xff]
      %v793 = vld [vmem:[%s789 + $0x30] sm:$0xff]
      %v794 = vld [vmem:[%s789 + $0x40] sm:$0xff]
      %v795 = vld [vmem:[%s789 + $0x50] sm:$0xff]
      %v796 = vld [vmem:[%s789 + $0x60] sm:$0xff]
      %v797 = vld [vmem:[%s789 + $0x70] sm:$0xff]
      %s798 = scalar_lea.vmem %s1, 7
      %v799 = vld [vmem:[%s798] sm:$0x1]
      %v801 = vlaneseq
      %v802 = vshrl.u32 %v801, 7
      %v803 = vsub.s32 0, %v802
      %v804 = vrot.slane %v799, %v803
      %v806 = vmul.f32 %v790, %v804
      %v807 = vmul.f32 %v791, %v804
      %v808 = vmul.f32 %v792, %v804
      %v809 = vmul.f32 %v793, %v804
      %v810 = vmul.f32 %v794, %v804
      %v811 = vmul.f32 %v795, %v804
      %v812 = vmul.f32 %v796, %v804
      %v813 = vmul.f32 %v797, %v804
      %v814 = vadd.f32 %v781, %v806
      %v815 = vadd.f32 %v782, %v807
      %v816 = vadd.f32 %v783, %v808
      %v817 = vadd.f32 %v784, %v809
      %v818 = vadd.f32 %v785, %v810
      %v819 = vadd.f32 %v786, %v811
      %v820 = vadd.f32 %v787, %v812
      %v821 = vadd.f32 %v788, %v813
      %v822 = vld [vmem:[%s756 + $0x1] sm:$0xff]
      %v823 = vld [vmem:[%s756 + $0x11] sm:$0xff]
      %v824 = vld [vmem:[%s756 + $0x21] sm:$0xff]
      %v825 = vld [vmem:[%s756 + $0x31] sm:$0xff]
      %v826 = vld [vmem:[%s756 + $0x41] sm:$0xff]
      %v827 = vld [vmem:[%s756 + $0x51] sm:$0xff]
      %v828 = vld [vmem:[%s756 + $0x61] sm:$0xff]
      %v829 = vld [vmem:[%s756 + $0x71] sm:$0xff]
      %s830 = scalar_lea.vmem %s1, 8
      %v831 = vld [vmem:[%s830] sm:$0x1]
      %v833 = vlaneseq
      %v834 = vshrl.u32 %v833, 7
      %v835 = vsub.s32 0, %v834
      %v836 = vrot.slane %v831, %v835
      %v838 = vmul.f32 %v822, %v836
      %v839 = vmul.f32 %v823, %v836
      %v840 = vmul.f32 %v824, %v836
      %v841 = vmul.f32 %v825, %v836
      %v842 = vmul.f32 %v826, %v836
      %v843 = vmul.f32 %v827, %v836
      %v844 = vmul.f32 %v828, %v836
      %v845 = vmul.f32 %v829, %v836
      %v846 = vadd.f32 %v814, %v838
      %v847 = vadd.f32 %v815, %v839
      %v848 = vadd.f32 %v816, %v840
      %v849 = vadd.f32 %v817, %v841
      %v850 = vadd.f32 %v818, %v842
      %v851 = vadd.f32 %v819, %v843
      %v852 = vadd.f32 %v820, %v844
      %v853 = vadd.f32 %v821, %v845
      %v854 = vld [vmem:[%s2] sm:$0x1]
      %v856 = vlaneseq
      %v857 = vshrl.u32 %v856, 7
      %v858 = vsub.s32 0, %v857
      %v859 = vrot.slane %v854, %v858
      %v861 = vmul.f32 %v846, %v859
      %v862 = vmul.f32 %v847, %v859
      %v863 = vmul.f32 %v848, %v859
      %v864 = vmul.f32 %v849, %v859
      %v865 = vmul.f32 %v850, %v859
      %v866 = vmul.f32 %v851, %v859
      %v867 = vmul.f32 %v852, %v859
      %v868 = vmul.f32 %v853, %v859
      %v869 = vld [vmem:[%s3] sm:$0x1]
      %v871 = vlaneseq
      %v872 = vshrl.u32 %v871, 7
      %v873 = vsub.s32 0, %v872
      %v874 = vrot.slane %v869, %v873
      %v876 = vadd.f32 %v861, %v874
      %v877 = vadd.f32 %v862, %v874
      %v878 = vadd.f32 %v863, %v874
      %v879 = vadd.f32 %v864, %v874
      %v880 = vadd.f32 %v865, %v874
      %v881 = vadd.f32 %v866, %v874
      %v882 = vadd.f32 %v867, %v874
      %v883 = vadd.f32 %v868, %v874
      %v884 = vld [vmem:[%s4] sm:$0xf]
      %vm885 = vcmask 31744
      %v887 = vsel %vm885, %v876, 0
      %v890 = vsel %vm885, %v877, 0
      %v893 = vsel %vm885, %v878, 0
      %v896 = vsel %vm885, %v879, 0
      %v899 = vsel %vm885, %v880, 0
      %v902 = vsel %vm885, %v881, 0
      %v905 = vsel %vm885, %v882, 0
      %v908 = vsel %vm885, %v883, 0
      %vm910 = vcmask 1043456
      %v912 = vsel %vm910, %v884, 0
      %914 = vmatprep.subr.mxu0 0.0
      %915 = vmatpush1.msra.mxu0 0.0
      %916 = vmatprep.subr.mxu0 0.0
      %917 = vmatpush1.msra.mxu0 0.0
      %918 = vmatprep.subr.mxu0 0.0
      %919 = vmatpush1.msra.mxu0 0.0
      %920 = vmatprep.subr.mxu0 0.0
      %921 = vmatpush1.msra.mxu0 0.0
      %922 = vmatprep.subr.mxu0 0.0
      %923 = vmatpush1.msra.mxu0 0.0
      %924 = vmatprep.subr.mxu0 0.0
      %925 = vmatpush1.msra.mxu0 0.0
      %926 = vmatprep.subr.mxu0 0.0
      %927 = vmatpush1.msra.mxu0 0.0
      %928 = vmatprep.subr.mxu0 0.0
      %929 = vmatpush1.msra.mxu0 0.0
      %930 = vmatprep.subr.mxu0 0.0
      %931 = vmatpush1.msra.mxu0 0.0
      %932 = vmatprep.subr.mxu0 0.0
      %933 = vmatpush1.msra.mxu0 0.0
      %934 = vmatprep.subr.mxu0 0.0
      %935 = vmatpush1.msra.mxu0 0.0
      %936 = vmatprep.subr.mxu0 0.0
      %937 = vmatpush1.msra.mxu0 0.0
      %938 = vmatprep.subr.mxu0 0.0
      %939 = vmatpush1.msra.mxu0 0.0
      %940 = vmatprep.subr.mxu0 0.0
      %941 = vmatpush1.msra.mxu0 0.0
      %942 = vmatprep.subr.mxu0 0.0
      %943 = vmatpush1.msra.mxu0 0.0
      %944 = vmatprep.subr.mxu0 0.0
      %945 = vmatpush1.msra.mxu0 %v912
      %946 = vmatprep.subr.mxu0 0.0
      %947 = vmatpush2.msra.mxu0 0.0
      %948 = vmatprep.subr.mxu0 0.0
      %949 = vmatpush2.msra.mxu0 0.0
      %950 = vmatprep.subr.mxu0 0.0
      %951 = vmatpush2.msra.mxu0 0.0
      %952 = vmatprep.subr.mxu0 0.0
      %953 = vmatpush2.msra.mxu0 0.0
      %954 = vmatprep.subr.mxu0 0.0
      %955 = vmatpush2.msra.mxu0 0.0
      %956 = vmatprep.subr.mxu0 0.0
      %957 = vmatpush2.msra.mxu0 0.0
      %958 = vmatprep.subr.mxu0 0.0
      %959 = vmatpush2.msra.mxu0 0.0
      %960 = vmatprep.subr.mxu0 0.0
      %961 = vmatpush2.msra.mxu0 0.0
      %962 = vmatprep.subr.mxu0 0.0
      %963 = vmatpush2.msra.mxu0 0.0
      %964 = vmatprep.subr.mxu0 0.0
      %965 = vmatpush2.msra.mxu0 0.0
      %966 = vmatprep.subr.mxu0 0.0
      %967 = vmatpush2.msra.mxu0 0.0
      %968 = vmatprep.subr.mxu0 0.0
      %969 = vmatpush2.msra.mxu0 0.0
      %970 = vmatprep.subr.mxu0 0.0
      %971 = vmatpush2.msra.mxu0 0.0
      %972 = vmatprep.subr.mxu0 0.0
      %973 = vmatpush2.msra.mxu0 0.0
      %974 = vmatprep.subr.mxu0 0.0
      %975 = vmatpush2.msra.mxu0 0.0
      %976 = vmatprep.subr.mxu0 0.0
      %977 = vmatpush2.msra.mxu0 0.0
      %978 = vmatprep.mubr.f32.mxu0 0.0
      %979 = vmatmul.mubr.f32.gmra.mxu0 %v887
      %v980 = vpop.f32.mrf.mxu0
      %v981 = vadd.f32 0.0, %v980
      %v982 = vpop.f32.mrf.mxu0
      %983 = vmatprep.mubr.f32.mxu0 0.0
      %984 = vmatmul.mubr.f32.gmra.mxu0 %v890
      %v985 = vpop.f32.mrf.mxu0
      %v986 = vadd.f32 0.0, %v985
      %v987 = vpop.f32.mrf.mxu0
      %988 = vmatprep.mubr.f32.mxu0 0.0
      %989 = vmatmul.mubr.f32.gmra.mxu0 %v893
      %v990 = vpop.f32.mrf.mxu0
      %v991 = vadd.f32 0.0, %v990
      %v992 = vpop.f32.mrf.mxu0
      %993 = vmatprep.mubr.f32.mxu0 0.0
      %994 = vmatmul.mubr.f32.gmra.mxu0 %v896
      %v995 = vpop.f32.mrf.mxu0
      %v996 = vadd.f32 0.0, %v995
      %v997 = vpop.f32.mrf.mxu0
      %998 = vmatprep.mubr.f32.mxu0 0.0
      %999 = vmatmul.mubr.f32.gmra.mxu0 %v899
      %v1000 = vpop.f32.mrf.mxu0
      %v1001 = vadd.f32 0.0, %v1000
      %v1002 = vpop.f32.mrf.mxu0
      %1003 = vmatprep.mubr.f32.mxu0 0.0
      %1004 = vmatmul.mubr.f32.gmra.mxu0 %v902
      %v1005 = vpop.f32.mrf.mxu0
      %v1006 = vadd.f32 0.0, %v1005
      %v1007 = vpop.f32.mrf.mxu0
      %1008 = vmatprep.mubr.f32.mxu0 0.0
      %1009 = vmatmul.mubr.f32.gmra.mxu0 %v905
      %v1010 = vpop.f32.mrf.mxu0
      %v1011 = vadd.f32 0.0, %v1010
      %v1012 = vpop.f32.mrf.mxu0
      %1013 = vmatprep.mubr.f32.mxu0 0.0
      %1014 = vmatmul.mubr.f32.gmra.mxu0 %v908
      %v1015 = vpop.f32.mrf.mxu0
      %v1016 = vadd.f32 0.0, %v1015
      %v1017 = vpop.f32.mrf.mxu0
      %1018 = vdwg.mxu0
      %v1019 = vld [vmem:[%s5] sm:$0x1]
      %v1021 = vlaneseq
      %v1022 = vshrl.u32 %v1021, 7
      %v1023 = vsub.s32 0, %v1022
      %v1024 = vrot.slane %v1019, %v1023
      %v1026 = vmul.f32 %v981, %v1024
      %v1027 = vmul.f32 %v986, %v1024
      %v1028 = vmul.f32 %v991, %v1024
      %v1029 = vmul.f32 %v996, %v1024
      %v1030 = vmul.f32 %v1001, %v1024
      %v1031 = vmul.f32 %v1006, %v1024
      %v1032 = vmul.f32 %v1011, %v1024
      %v1033 = vmul.f32 %v1016, %v1024
      %v1034 = vld [vmem:[%s6] sm:$0x1]
      %v1036 = vlaneseq
      %v1037 = vshrl.u32 %v1036, 7
      %v1038 = vsub.s32 0, %v1037
      %v1039 = vrot.slane %v1034, %v1038
      %v1041 = vadd.f32 %v1026, %v1039
      %v1042 = vadd.f32 %v1027, %v1039
      %v1043 = vadd.f32 %v1028, %v1039
      %v1044 = vadd.f32 %v1029, %v1039
      %v1045 = vadd.f32 %v1030, %v1039
      %v1046 = vadd.f32 %v1031, %v1039
      %v1047 = vadd.f32 %v1032, %v1039
      %v1048 = vadd.f32 %v1033, %v1039
      %v1049 = vxor.u32 %v1041, 2147483648
      %v1050 = vxor.u32 %v1042, 2147483648
      %v1051 = vxor.u32 %v1043, 2147483648
      %v1052 = vxor.u32 %v1044, 2147483648
      %v1053 = vxor.u32 %v1045, 2147483648
      %v1054 = vxor.u32 %v1046, 2147483648
      %v1055 = vxor.u32 %v1047, 2147483648
      %v1056 = vxor.u32 %v1048, 2147483648
      %v1057 = vmul.f32 %v1049, 1.442695
      %v1058 = vpow.pop %v1057
      %v1059 = vmul.f32 %v1050, 1.442695
      %v1060 = vpow.pop %v1059
      %v1061 = vmul.f32 %v1051, 1.442695
      %v1062 = vpow.pop %v1061
      %v1063 = vmul.f32 %v1052, 1.442695
      %v1064 = vpow.pop %v1063
      %v1065 = vmul.f32 %v1053, 1.442695
      %v1066 = vpow.pop %v1065
      %v1067 = vmul.f32 %v1054, 1.442695
      %v1068 = vpow.pop %v1067
      %v1069 = vmul.f32 %v1055, 1.442695
      %v1070 = vpow.pop %v1069
      %v1071 = vmul.f32 %v1056, 1.442695
      %v1072 = vpow.pop %v1071
      %v1073 = vadd.f32 %v1058, 1.0
      %v1074 = vadd.f32 %v1060, 1.0
      %v1075 = vadd.f32 %v1062, 1.0
      %v1076 = vadd.f32 %v1064, 1.0
      %v1077 = vadd.f32 %v1066, 1.0
      %v1078 = vadd.f32 %v1068, 1.0
      %v1079 = vadd.f32 %v1070, 1.0
      %v1080 = vadd.f32 %v1072, 1.0
      %v1081 = vrcp.pop %v1073
      %v1082 = vmul.f32 1.0, %v1081
      %v1083 = vrcp.pop %v1074
      %v1084 = vmul.f32 1.0, %v1083
      %v1085 = vrcp.pop %v1075
      %v1086 = vmul.f32 1.0, %v1085
      %v1087 = vrcp.pop %v1076
      %v1088 = vmul.f32 1.0, %v1087
      %v1089 = vrcp.pop %v1077
      %v1090 = vmul.f32 1.0, %v1089
      %v1091 = vrcp.pop %v1078
      %v1092 = vmul.f32 1.0, %v1091
      %v1093 = vrcp.pop %v1079
      %v1094 = vmul.f32 1.0, %v1093
      %v1095 = vrcp.pop %v1080
      %v1096 = vmul.f32 1.0, %v1095
      %v1097 = vmul.f32 %v1041, %v1082
      %v1098 = vmul.f32 %v1042, %v1084
      %v1099 = vmul.f32 %v1043, %v1086
      %v1100 = vmul.f32 %v1044, %v1088
      %v1101 = vmul.f32 %v1045, %v1090
      %v1102 = vmul.f32 %v1046, %v1092
      %v1103 = vmul.f32 %v1047, %v1094
      %v1104 = vmul.f32 %v1048, %v1096
      %1105 = vst.msk [vmem:[%s556] sm:$0xff] %vm885, %v1097
      %1106 = vst.msk [vmem:[%s556 + $0x8] sm:$0xff] %vm885, %v1098
      %1107 = vst.msk [vmem:[%s556 + $0x10] sm:$0xff] %vm885, %v1099
      %1108 = vst.msk [vmem:[%s556 + $0x18] sm:$0xff] %vm885, %v1100
      %1109 = vst.msk [vmem:[%s556 + $0x20] sm:$0xff] %vm885, %v1101
      %1110 = vst.msk [vmem:[%s556 + $0x28] sm:$0xff] %vm885, %v1102
      %1111 = vst.msk [vmem:[%s556 + $0x30] sm:$0xff] %vm885, %v1103
      %1112 = vst.msk [vmem:[%s556 + $0x38] sm:$0xff] %vm885, %v1104
      %1113 = vst.msk [vmem:[#allocation2] sm:$0xff] %vm885, 0.0
      %vm1114 = vcmask 24576
      %1115 = vst.msk [vmem:[#allocation2 + $0x8] sm:$0x1] %vm1114, 0.0
      %1116 = vst.msk [vmem:[#allocation2 + $0x10] sm:$0xff] %vm885, 0.0
      %1117 = vst.msk [vmem:[#allocation2 + $0x18] sm:$0x1] %vm1114, 0.0
      %1118 = vst.msk [vmem:[#allocation2 + $0x20] sm:$0xff] %vm885, 0.0
      %1119 = vst.msk [vmem:[#allocation2 + $0x28] sm:$0x1] %vm1114, 0.0
      %1120 = vst.msk [vmem:[#allocation2 + $0x30] sm:$0xff] %vm885, 0.0
      %1121 = vst.msk [vmem:[#allocation2 + $0x38] sm:$0x1] %vm1114, 0.0
      %1122 = vst.msk [vmem:[#allocation2 + $0x40] sm:$0xff] %vm885, 0.0
      %1123 = vst.msk [vmem:[#allocation2 + $0x48] sm:$0x1] %vm1114, 0.0
      %1124 = vst.msk [vmem:[#allocation2 + $0x50] sm:$0xff] %vm885, 0.0
      %1125 = vst.msk [vmem:[#allocation2 + $0x58] sm:$0x1] %vm1114, 0.0
      %1126 = vst.msk [vmem:[#allocation2 + $0x60] sm:$0xff] %vm885, 0.0
      %1127 = vst.msk [vmem:[#allocation2 + $0x68] sm:$0x1] %vm1114, 0.0
      %1128 = vst.msk [vmem:[#allocation2 + $0x70] sm:$0xff] %vm885, 0.0
      %1129 = vst.msk [vmem:[#allocation2 + $0x78] sm:$0x1] %vm1114, 0.0
      %1130 = vst.msk [vmem:[#allocation2 + $0x80] sm:$0xff] %vm885, 0.0
      %1131 = vst.msk [vmem:[#allocation2 + $0x88] sm:$0x1] %vm1114, 0.0
      %1132 = vst.msk [vmem:[#allocation2 + $0x90] sm:$0xff] %vm885, 0.0
      %1133 = vst.msk [vmem:[#allocation2 + $0x98] sm:$0x1] %vm1114, 0.0
      %1134 = vst.msk [vmem:[#allocation2 + $0xa0] sm:$0xff] %vm885, 0.0
      %1135 = vst.msk [vmem:[#allocation2 + $0xa8] sm:$0x1] %vm1114, 0.0
      %1136 = vst.msk [vmem:[#allocation2 + $0xb0] sm:$0xff] %vm885, 0.0
      %1137 = vst.msk [vmem:[#allocation2 + $0xb8] sm:$0x1] %vm1114, 0.0
      %1138 = vst.msk [vmem:[#allocation2 + $0xc0] sm:$0xff] %vm885, 0.0
      %1139 = vst.msk [vmem:[#allocation2 + $0xc8] sm:$0x1] %vm1114, 0.0
      %1140 = vst.msk [vmem:[#allocation2 + $0xd0] sm:$0xff] %vm885, 0.0
      %1141 = vst.msk [vmem:[#allocation2 + $0xd8] sm:$0x1] %vm1114, 0.0
      %1142 = vst.msk [vmem:[#allocation2 + $0xe0] sm:$0xff] %vm885, 0.0
      %1143 = vst.msk [vmem:[#allocation2 + $0xe8] sm:$0x1] %vm1114, 0.0
      %1144 = vst.msk [vmem:[#allocation2 + $0xf0] sm:$0xff] %vm885, 0.0
      %1145 = vst.msk [vmem:[#allocation2 + $0xf8] sm:$0x1] %vm1114, 0.0
      %1146 = vst.msk [vmem:[#allocation2 + $0x100] sm:$0xff] %vm885, 0.0
      %1147 = vst.msk [vmem:[#allocation2 + $0x108] sm:$0x1] %vm1114, 0.0
      %1148 = vst.msk [vmem:[#allocation2 + $0x110] sm:$0xff] %vm885, 0.0
      %1149 = vst.msk [vmem:[#allocation2 + $0x118] sm:$0x1] %vm1114, 0.0
      %1150 = vst.msk [vmem:[#allocation2 + $0x120] sm:$0xff] %vm885, 0.0
      %1151 = vst.msk [vmem:[#allocation2 + $0x128] sm:$0x1] %vm1114, 0.0
      %1152 = vst.msk [vmem:[#allocation2 + $0x130] sm:$0xff] %vm885, 0.0
      %1153 = vst.msk [vmem:[#allocation2 + $0x138] sm:$0x1] %vm1114, 0.0
      %1154 = vst.msk [vmem:[#allocation2 + $0x140] sm:$0xff] %vm885, 0.0
      %1155 = vst.msk [vmem:[#allocation2 + $0x148] sm:$0x1] %vm1114, 0.0
      %1156 = vst.msk [vmem:[#allocation2 + $0x150] sm:$0xff] %vm885, 0.0
      %1157 = vst.msk [vmem:[#allocation2 + $0x158] sm:$0x1] %vm1114, 0.0
      %1158 = vst.msk [vmem:[#allocation2 + $0x160] sm:$0xff] %vm885, 0.0
      %1159 = vst.msk [vmem:[#allocation2 + $0x168] sm:$0x1] %vm1114, 0.0
      %1160 = vst.msk [vmem:[#allocation2 + $0x170] sm:$0xff] %vm885, 0.0
      %1161 = vst.msk [vmem:[#allocation2 + $0x178] sm:$0x1] %vm1114, 0.0
      %1162 = vst.msk [vmem:[#allocation2 + $0x180] sm:$0xff] %vm885, 0.0
      %1163 = vst.msk [vmem:[#allocation2 + $0x188] sm:$0x1] %vm1114, 0.0
      %1164 = vst.msk [vmem:[#allocation2 + $0x190] sm:$0xff] %vm885, 0.0
      %1165 = vst.msk [vmem:[#allocation2 + $0x198] sm:$0x1] %vm1114, 0.0
      %1166 = vst.msk [vmem:[#allocation2 + $0x1a0] sm:$0xff] %vm885, 0.0
      %1167 = vst.msk [vmem:[#allocation2 + $0x1a8] sm:$0x1] %vm1114, 0.0
      %1168 = vst.msk [vmem:[#allocation2 + $0x1b0] sm:$0xff] %vm885, 0.0
      %1169 = vst.msk [vmem:[#allocation2 + $0x1b8] sm:$0x1] %vm1114, 0.0
      %1170 = vst.msk [vmem:[#allocation2 + $0x1c0] sm:$0xff] %vm885, 0.0
      %1171 = vst.msk [vmem:[#allocation2 + $0x1c8] sm:$0x1] %vm1114, 0.0
      %1172 = vst.msk [vmem:[#allocation2 + $0x1d0] sm:$0xff] %vm885, 0.0
      %1173 = vst.msk [vmem:[#allocation2 + $0x1d8] sm:$0x1] %vm1114, 0.0
      %1174 = vst.msk [vmem:[#allocation2 + $0x1e0] sm:$0xff] %vm885, 0.0
      %1175 = vst.msk [vmem:[#allocation2 + $0x1e8] sm:$0x1] %vm1114, 0.0
      %1176 = vst.msk [vmem:[#allocation2 + $0x1f0] sm:$0xff] %vm885, 0.0
      %1177 = vst.msk [vmem:[#allocation2 + $0x1f8] sm:$0x1] %vm1114, 0.0
      %1178 = vst.msk [vmem:[#allocation2 + $0x200] sm:$0xff] %vm885, 0.0
      %1179 = vst.msk [vmem:[#allocation2 + $0x208] sm:$0x1] %vm1114, 0.0
      %1180 = vst.msk [vmem:[#allocation2 + $0x210] sm:$0xff] %vm885, 0.0
      %1181 = vst.msk [vmem:[#allocation2 + $0x218] sm:$0x1] %vm1114, 0.0
      %1182 = vst.msk [vmem:[#allocation2 + $0x220] sm:$0xff] %vm885, 0.0
      %1183 = vst.msk [vmem:[#allocation2 + $0x228] sm:$0x1] %vm1114, 0.0
      %1184 = vst.msk [vmem:[#allocation2 + $0x230] sm:$0xff] %vm885, 0.0
      %1185 = vst.msk [vmem:[#allocation2 + $0x238] sm:$0x1] %vm1114, 0.0
      %v1186 = vld [vmem:[%s756 + $0x1] sm:$0xff]
      %v1187 = vld [vmem:[%s756 + $0x11] sm:$0xff]
      %v1188 = vld [vmem:[%s756 + $0x21] sm:$0xff]
      %v1189 = vld [vmem:[%s756 + $0x31] sm:$0xff]
      %v1190 = vld [vmem:[%s756 + $0x41] sm:$0xff]
      %v1191 = vld [vmem:[%s756 + $0x51] sm:$0xff]
      %v1192 = vld [vmem:[%s756 + $0x61] sm:$0xff]
      %v1193 = vld [vmem:[%s756 + $0x71] sm:$0xff]
      %v1194 = vld [vmem:[%s7] sm:$0xf]
      %v1196 = vsel %vm885, %v1186, 0
      %v1199 = vsel %vm885, %v1187, 0
      %v1202 = vsel %vm885, %v1188, 0
      %v1205 = vsel %vm885, %v1189, 0
      %v1208 = vsel %vm885, %v1190, 0
      %v1211 = vsel %vm885, %v1191, 0
      %v1214 = vsel %vm885, %v1192, 0
      %v1217 = vsel %vm885, %v1193, 0
      %v1220 = vsel %vm910, %v1194, 0
      %1222 = vmatprep.subr.mxu0 0.0
      %1223 = vmatpush1.msra.mxu0 0.0
      %1224 = vmatprep.subr.mxu0 0.0
      %1225 = vmatpush1.msra.mxu0 0.0
      %1226 = vmatprep.subr.mxu0 0.0
      %1227 = vmatpush1.msra.mxu0 0.0
      %1228 = vmatprep.subr.mxu0 0.0
      %1229 = vmatpush1.msra.mxu0 0.0
      %1230 = vmatprep.subr.mxu0 0.0
      %1231 = vmatpush1.msra.mxu0 0.0
      %1232 = vmatprep.subr.mxu0 0.0
      %1233 = vmatpush1.msra.mxu0 0.0
      %1234 = vmatprep.subr.mxu0 0.0
      %1235 = vmatpush1.msra.mxu0 0.0
      %1236 = vmatprep.subr.mxu0 0.0
      %1237 = vmatpush1.msra.mxu0 0.0
      %1238 = vmatprep.subr.mxu0 0.0
      %1239 = vmatpush1.msra.mxu0 0.0
      %1240 = vmatprep.subr.mxu0 0.0
      %1241 = vmatpush1.msra.mxu0 0.0
      %1242 = vmatprep.subr.mxu0 0.0
      %1243 = vmatpush1.msra.mxu0 0.0
      %1244 = vmatprep.subr.mxu0 0.0
      %1245 = vmatpush1.msra.mxu0 0.0
      %1246 = vmatprep.subr.mxu0 0.0
      %1247 = vmatpush1.msra.mxu0 0.0
      %1248 = vmatprep.subr.mxu0 0.0
      %1249 = vmatpush1.msra.mxu0 0.0
      %1250 = vmatprep.subr.mxu0 0.0
      %1251 = vmatpush1.msra.mxu0 0.0
      %1252 = vmatprep.subr.mxu0 0.0
      %1253 = vmatpush1.msra.mxu0 %v1220
      %1254 = vmatprep.subr.mxu0 0.0
      %1255 = vmatpush2.msra.mxu0 0.0
      %1256 = vmatprep.subr.mxu0 0.0
      %1257 = vmatpush2.msra.mxu0 0.0
      %1258 = vmatprep.subr.mxu0 0.0
      %1259 = vmatpush2.msra.mxu0 0.0
      %1260 = vmatprep.subr.mxu0 0.0
      %1261 = vmatpush2.msra.mxu0 0.0
      %1262 = vmatprep.subr.mxu0 0.0
      %1263 = vmatpush2.msra.mxu0 0.0
      %1264 = vmatprep.subr.mxu0 0.0
      %1265 = vmatpush2.msra.mxu0 0.0
      %1266 = vmatprep.subr.mxu0 0.0
      %1267 = vmatpush2.msra.mxu0 0.0
      %1268 = vmatprep.subr.mxu0 0.0
      %1269 = vmatpush2.msra.mxu0 0.0
      %1270 = vmatprep.subr.mxu0 0.0
      %1271 = vmatpush2.msra.mxu0 0.0
      %1272 = vmatprep.subr.mxu0 0.0
      %1273 = vmatpush2.msra.mxu0 0.0
      %1274 = vmatprep.subr.mxu0 0.0
      %1275 = vmatpush2.msra.mxu0 0.0
      %1276 = vmatprep.subr.mxu0 0.0
      %1277 = vmatpush2.msra.mxu0 0.0
      %1278 = vmatprep.subr.mxu0 0.0
      %1279 = vmatpush2.msra.mxu0 0.0
      %1280 = vmatprep.subr.mxu0 0.0
      %1281 = vmatpush2.msra.mxu0 0.0
      %1282 = vmatprep.subr.mxu0 0.0
      %1283 = vmatpush2.msra.mxu0 0.0
      %1284 = vmatprep.subr.mxu0 0.0
      %1285 = vmatpush2.msra.mxu0 0.0
      %1286 = vmatprep.mubr.f32.mxu0 0.0
      %1287 = vmatmul.mubr.f32.gmra.mxu0 %v1196
      %v1288 = vpop.f32.mrf.mxu0
      %v1289 = vadd.f32 0.0, %v1288
      %v1290 = vpop.f32.mrf.mxu0
      %1291 = vmatprep.mubr.f32.mxu0 0.0
      %1292 = vmatmul.mubr.f32.gmra.mxu0 %v1199
      %v1293 = vpop.f32.mrf.mxu0
      %v1294 = vadd.f32 0.0, %v1293
      %v1295 = vpop.f32.mrf.mxu0
      %1296 = vmatprep.mubr.f32.mxu0 0.0
      %1297 = vmatmul.mubr.f32.gmra.mxu0 %v1202
      %v1298 = vpop.f32.mrf.mxu0
      %v1299 = vadd.f32 0.0, %v1298
      %v1300 = vpop.f32.mrf.mxu0
      %1301 = vmatprep.mubr.f32.mxu0 0.0
      %1302 = vmatmul.mubr.f32.gmra.mxu0 %v1205
      %v1303 = vpop.f32.mrf.mxu0
      %v1304 = vadd.f32 0.0, %v1303
      %v1305 = vpop.f32.mrf.mxu0
      %1306 = vmatprep.mubr.f32.mxu0 0.0
      %1307 = vmatmul.mubr.f32.gmra.mxu0 %v1208
      %v1308 = vpop.f32.mrf.mxu0
      %v1309 = vadd.f32 0.0, %v1308
      %v1310 = vpop.f32.mrf.mxu0
      %1311 = vmatprep.mubr.f32.mxu0 0.0
      %1312 = vmatmul.mubr.f32.gmra.mxu0 %v1211
      %v1313 = vpop.f32.mrf.mxu0
      %v1314 = vadd.f32 0.0, %v1313
      %v1315 = vpop.f32.mrf.mxu0
      %1316 = vmatprep.mubr.f32.mxu0 0.0
      %1317 = vmatmul.mubr.f32.gmra.mxu0 %v1214
      %v1318 = vpop.f32.mrf.mxu0
      %v1319 = vadd.f32 0.0, %v1318
      %v1320 = vpop.f32.mrf.mxu0
      %1321 = vmatprep.mubr.f32.mxu0 0.0
      %1322 = vmatmul.mubr.f32.gmra.mxu0 %v1217
      %v1323 = vpop.f32.mrf.mxu0
      %v1324 = vadd.f32 0.0, %v1323
      %v1325 = vpop.f32.mrf.mxu0
      %1326 = vdwg.mxu0
      %v1327 = vld [vmem:[%s8] sm:$0x1]
      %v1329 = vlaneseq
      %v1330 = vshrl.u32 %v1329, 7
      %v1331 = vsub.s32 0, %v1330
      %v1332 = vrot.slane %v1327, %v1331
      %v1334 = vmul.f32 %v1289, %v1332
      %v1335 = vmul.f32 %v1294, %v1332
      %v1336 = vmul.f32 %v1299, %v1332
      %v1337 = vmul.f32 %v1304, %v1332
      %v1338 = vmul.f32 %v1309, %v1332
      %v1339 = vmul.f32 %v1314, %v1332
      %v1340 = vmul.f32 %v1319, %v1332
      %v1341 = vmul.f32 %v1324, %v1332
      %v1342 = vld [vmem:[%s9] sm:$0x1]
      %v1344 = vlaneseq
      %v1345 = vshrl.u32 %v1344, 7
      %v1346 = vsub.s32 0, %v1345
      %v1347 = vrot.slane %v1342, %v1346
      %v1349 = vadd.f32 %v1334, %v1347
      %v1350 = vadd.f32 %v1335, %v1347
      %v1351 = vadd.f32 %v1336, %v1347
      %v1352 = vadd.f32 %v1337, %v1347
      %v1353 = vadd.f32 %v1338, %v1347
      %v1354 = vadd.f32 %v1339, %v1347
      %v1355 = vadd.f32 %v1340, %v1347
      %v1356 = vadd.f32 %v1341, %v1347
      %v1357 = vxor.u32 %v1349, 2147483648
      %v1358 = vxor.u32 %v1350, 2147483648
      %v1359 = vxor.u32 %v1351, 2147483648
      %v1360 = vxor.u32 %v1352, 2147483648
      %v1361 = vxor.u32 %v1353, 2147483648
      %v1362 = vxor.u32 %v1354, 2147483648
      %v1363 = vxor.u32 %v1355, 2147483648
      %v1364 = vxor.u32 %v1356, 2147483648
      %v1365 = vmul.f32 %v1357, 1.442695
      %v1366 = vpow.pop %v1365
      %v1367 = vmul.f32 %v1358, 1.442695
      %v1368 = vpow.pop %v1367
      %v1369 = vmul.f32 %v1359, 1.442695
      %v1370 = vpow.pop %v1369
      %v1371 = vmul.f32 %v1360, 1.442695
      %v1372 = vpow.pop %v1371
      %v1373 = vmul.f32 %v1361, 1.442695
      %v1374 = vpow.pop %v1373
      %v1375 = vmul.f32 %v1362, 1.442695
      %v1376 = vpow.pop %v1375
      %v1377 = vmul.f32 %v1363, 1.442695
      %v1378 = vpow.pop %v1377
      %v1379 = vmul.f32 %v1364, 1.442695
      %v1380 = vpow.pop %v1379
      %v1381 = vadd.f32 %v1366, 1.0
      %v1382 = vadd.f32 %v1368, 1.0
      %v1383 = vadd.f32 %v1370, 1.0
      %v1384 = vadd.f32 %v1372, 1.0
      %v1385 = vadd.f32 %v1374, 1.0
      %v1386 = vadd.f32 %v1376, 1.0
      %v1387 = vadd.f32 %v1378, 1.0
      %v1388 = vadd.f32 %v1380, 1.0
      %v1389 = vrcp.pop %v1381
      %v1390 = vmul.f32 1.0, %v1389
      %v1391 = vrcp.pop %v1382
      %v1392 = vmul.f32 1.0, %v1391
      %v1393 = vrcp.pop %v1383
      %v1394 = vmul.f32 1.0, %v1393
      %v1395 = vrcp.pop %v1384
      %v1396 = vmul.f32 1.0, %v1395
      %v1397 = vrcp.pop %v1385
      %v1398 = vmul.f32 1.0, %v1397
      %v1399 = vrcp.pop %v1386
      %v1400 = vmul.f32 1.0, %v1399
      %v1401 = vrcp.pop %v1387
      %v1402 = vmul.f32 1.0, %v1401
      %v1403 = vrcp.pop %v1388
      %v1404 = vmul.f32 1.0, %v1403
      %v1405 = vmul.f32 %v1349, %v1390
      %v1406 = vmul.f32 %v1350, %v1392
      %v1407 = vmul.f32 %v1351, %v1394
      %v1408 = vmul.f32 %v1352, %v1396
      %v1409 = vmul.f32 %v1353, %v1398
      %v1410 = vmul.f32 %v1354, %v1400
      %v1411 = vmul.f32 %v1355, %v1402
      %v1412 = vmul.f32 %v1356, %v1404
      %s1413 = scalar_lea.vmem [#allocation2], 16
      %1414 = vst.msk [vmem:[%s1413 + $0x1] sm:$0xff] %vm885, %v1405
      %1415 = vst.msk [vmem:[%s1413 + $0x11] sm:$0xff] %vm885, %v1406
      %1416 = vst.msk [vmem:[%s1413 + $0x21] sm:$0xff] %vm885, %v1407
      %1417 = vst.msk [vmem:[%s1413 + $0x31] sm:$0xff] %vm885, %v1408
      %1418 = vst.msk [vmem:[%s1413 + $0x41] sm:$0xff] %vm885, %v1409
      %1419 = vst.msk [vmem:[%s1413 + $0x51] sm:$0xff] %vm885, %v1410
      %1420 = vst.msk [vmem:[%s1413 + $0x61] sm:$0xff] %vm885, %v1411
      %1421 = vst.msk [vmem:[%s1413 + $0x71] sm:$0xff] %vm885, %v1412
      %v1422 = vld [vmem:[%s789] sm:$0xff]
      %v1423 = vld [vmem:[%s789 + $0x10] sm:$0xff]
      %v1424 = vld [vmem:[%s789 + $0x20] sm:$0xff]
      %v1425 = vld [vmem:[%s789 + $0x30] sm:$0xff]
      %v1426 = vld [vmem:[%s789 + $0x40] sm:$0xff]
      %v1427 = vld [vmem:[%s789 + $0x50] sm:$0xff]
      %v1428 = vld [vmem:[%s789 + $0x60] sm:$0xff]
      %v1429 = vld [vmem:[%s789 + $0x70] sm:$0xff]
      %v1430 = vld [vmem:[%s7] sm:$0xf]
      %v1432 = vsel %vm885, %v1422, 0
      %v1435 = vsel %vm885, %v1423, 0
      %v1438 = vsel %vm885, %v1424, 0
      %v1441 = vsel %vm885, %v1425, 0
      %v1444 = vsel %vm885, %v1426, 0
      %v1447 = vsel %vm885, %v1427, 0
      %v1450 = vsel %vm885, %v1428, 0
      %v1453 = vsel %vm885, %v1429, 0
      %v1456 = vsel %vm910, %v1430, 0
      %1458 = vmatprep.subr.mxu0 0.0
      %1459 = vmatpush1.msra.mxu0 0.0
      %1460 = vmatprep.subr.mxu0 0.0
      %1461 = vmatpush1.msra.mxu0 0.0
      %1462 = vmatprep.subr.mxu0 0.0
      %1463 = vmatpush1.msra.mxu0 0.0
      %1464 = vmatprep.subr.mxu0 0.0
      %1465 = vmatpush1.msra.mxu0 0.0
      %1466 = vmatprep.subr.mxu0 0.0
      %1467 = vmatpush1.msra.mxu0 0.0
      %1468 = vmatprep.subr.mxu0 0.0
      %1469 = vmatpush1.msra.mxu0 0.0
      %1470 = vmatprep.subr.mxu0 0.0
      %1471 = vmatpush1.msra.mxu0 0.0
      %1472 = vmatprep.subr.mxu0 0.0
      %1473 = vmatpush1.msra.mxu0 0.0
      %1474 = vmatprep.subr.mxu0 0.0
      %1475 = vmatpush1.msra.mxu0 0.0
      %1476 = vmatprep.subr.mxu0 0.0
      %1477 = vmatpush1.msra.mxu0 0.0
      %1478 = vmatprep.subr.mxu0 0.0
      %1479 = vmatpush1.msra.mxu0 0.0
      %1480 = vmatprep.subr.mxu0 0.0
      %1481 = vmatpush1.msra.mxu0 0.0
      %1482 = vmatprep.subr.mxu0 0.0
      %1483 = vmatpush1.msra.mxu0 0.0
      %1484 = vmatprep.subr.mxu0 0.0
      %1485 = vmatpush1.msra.mxu0 0.0
      %1486 = vmatprep.subr.mxu0 0.0
      %1487 = vmatpush1.msra.mxu0 0.0
      %1488 = vmatprep.subr.mxu0 0.0
      %1489 = vmatpush1.msra.mxu0 %v1456
      %1490 = vmatprep.subr.mxu0 0.0
      %1491 = vmatpush2.msra.mxu0 0.0
      %1492 = vmatprep.subr.mxu0 0.0
      %1493 = vmatpush2.msra.mxu0 0.0
      %1494 = vmatprep.subr.mxu0 0.0
      %1495 = vmatpush2.msra.mxu0 0.0
      %1496 = vmatprep.subr.mxu0 0.0
      %1497 = vmatpush2.msra.mxu0 0.0
      %1498 = vmatprep.subr.mxu0 0.0
      %1499 = vmatpush2.msra.mxu0 0.0
      %1500 = vmatprep.subr.mxu0 0.0
      %1501 = vmatpush2.msra.mxu0 0.0
      %1502 = vmatprep.subr.mxu0 0.0
      %1503 = vmatpush2.msra.mxu0 0.0
      %1504 = vmatprep.subr.mxu0 0.0
      %1505 = vmatpush2.msra.mxu0 0.0
      %1506 = vmatprep.subr.mxu0 0.0
      %1507 = vmatpush2.msra.mxu0 0.0
      %1508 = vmatprep.subr.mxu0 0.0
      %1509 = vmatpush2.msra.mxu0 0.0
      %1510 = vmatprep.subr.mxu0 0.0
      %1511 = vmatpush2.msra.mxu0 0.0
      %1512 = vmatprep.subr.mxu0 0.0
      %1513 = vmatpush2.msra.mxu0 0.0
      %1514 = vmatprep.subr.mxu0 0.0
      %1515 = vmatpush2.msra.mxu0 0.0
      %1516 = vmatprep.subr.mxu0 0.0
      %1517 = vmatpush2.msra.mxu0 0.0
      %1518 = vmatprep.subr.mxu0 0.0
      %1519 = vmatpush2.msra.mxu0 0.0
      %1520 = vmatprep.subr.mxu0 0.0
      %1521 = vmatpush2.msra.mxu0 0.0
      %1522 = vmatprep.mubr.f32.mxu0 0.0
      %1523 = vmatmul.mubr.f32.gmra.mxu0 %v1432
      %v1524 = vpop.f32.mrf.mxu0
      %v1525 = vadd.f32 0.0, %v1524
      %v1526 = vpop.f32.mrf.mxu0
      %1527 = vmatprep.mubr.f32.mxu0 0.0
      %1528 = vmatmul.mubr.f32.gmra.mxu0 %v1435
      %v1529 = vpop.f32.mrf.mxu0
      %v1530 = vadd.f32 0.0, %v1529
      %v1531 = vpop.f32.mrf.mxu0
      %1532 = vmatprep.mubr.f32.mxu0 0.0
      %1533 = vmatmul.mubr.f32.gmra.mxu0 %v1438
      %v1534 = vpop.f32.mrf.mxu0
      %v1535 = vadd.f32 0.0, %v1534
      %v1536 = vpop.f32.mrf.mxu0
      %1537 = vmatprep.mubr.f32.mxu0 0.0
      %1538 = vmatmul.mubr.f32.gmra.mxu0 %v1441
      %v1539 = vpop.f32.mrf.mxu0
      %v1540 = vadd.f32 0.0, %v1539
      %v1541 = vpop.f32.mrf.mxu0
      %1542 = vmatprep.mubr.f32.mxu0 0.0
      %1543 = vmatmul.mubr.f32.gmra.mxu0 %v1444
      %v1544 = vpop.f32.mrf.mxu0
      %v1545 = vadd.f32 0.0, %v1544
      %v1546 = vpop.f32.mrf.mxu0
      %1547 = vmatprep.mubr.f32.mxu0 0.0
      %1548 = vmatmul.mubr.f32.gmra.mxu0 %v1447
      %v1549 = vpop.f32.mrf.mxu0
      %v1550 = vadd.f32 0.0, %v1549
      %v1551 = vpop.f32.mrf.mxu0
      %1552 = vmatprep.mubr.f32.mxu0 0.0
      %1553 = vmatmul.mubr.f32.gmra.mxu0 %v1450
      %v1554 = vpop.f32.mrf.mxu0
      %v1555 = vadd.f32 0.0, %v1554
      %v1556 = vpop.f32.mrf.mxu0
      %1557 = vmatprep.mubr.f32.mxu0 0.0
      %1558 = vmatmul.mubr.f32.gmra.mxu0 %v1453
      %v1559 = vpop.f32.mrf.mxu0
      %v1560 = vadd.f32 0.0, %v1559
      %v1561 = vpop.f32.mrf.mxu0
      %1562 = vdwg.mxu0
      %v1563 = vld [vmem:[%s8] sm:$0x1]
      %v1565 = vlaneseq
      %v1566 = vshrl.u32 %v1565, 7
      %v1567 = vsub.s32 0, %v1566
      %v1568 = vrot.slane %v1563, %v1567
      %v1570 = vmul.f32 %v1525, %v1568
      %v1571 = vmul.f32 %v1530, %v1568
      %v1572 = vmul.f32 %v1535, %v1568
      %v1573 = vmul.f32 %v1540, %v1568
      %v1574 = vmul.f32 %v1545, %v1568
      %v1575 = vmul.f32 %v1550, %v1568
      %v1576 = vmul.f32 %v1555, %v1568
      %v1577 = vmul.f32 %v1560, %v1568
      %v1578 = vld [vmem:[%s9] sm:$0x1]
      %v1580 = vlaneseq
      %v1581 = vshrl.u32 %v1580, 7
      %v1582 = vsub.s32 0, %v1581
      %v1583 = vrot.slane %v1578, %v1582
      %v1585 = vadd.f32 %v1570, %v1583
      %v1586 = vadd.f32 %v1571, %v1583
      %v1587 = vadd.f32 %v1572, %v1583
      %v1588 = vadd.f32 %v1573, %v1583
      %v1589 = vadd.f32 %v1574, %v1583
      %v1590 = vadd.f32 %v1575, %v1583
      %v1591 = vadd.f32 %v1576, %v1583
      %v1592 = vadd.f32 %v1577, %v1583
      %v1593 = vxor.u32 %v1585, 2147483648
      %v1594 = vxor.u32 %v1586, 2147483648
      %v1595 = vxor.u32 %v1587, 2147483648
      %v1596 = vxor.u32 %v1588, 2147483648
      %v1597 = vxor.u32 %v1589, 2147483648
      %v1598 = vxor.u32 %v1590, 2147483648
      %v1599 = vxor.u32 %v1591, 2147483648
      %v1600 = vxor.u32 %v1592, 2147483648
      %v1601 = vmul.f32 %v1593, 1.442695
      %v1602 = vpow.pop %v1601
      %v1603 = vmul.f32 %v1594, 1.442695
      %v1604 = vpow.pop %v1603
      %v1605 = vmul.f32 %v1595, 1.442695
      %v1606 = vpow.pop %v1605
      %v1607 = vmul.f32 %v1596, 1.442695
      %v1608 = vpow.pop %v1607
      %v1609 = vmul.f32 %v1597, 1.442695
      %v1610 = vpow.pop %v1609
      %v1611 = vmul.f32 %v1598, 1.442695
      %v1612 = vpow.pop %v1611
      %v1613 = vmul.f32 %v1599, 1.442695
      %v1614 = vpow.pop %v1613
      %v1615 = vmul.f32 %v1600, 1.442695
      %v1616 = vpow.pop %v1615
      %v1617 = vadd.f32 %v1602, 1.0
      %v1618 = vadd.f32 %v1604, 1.0
      %v1619 = vadd.f32 %v1606, 1.0
      %v1620 = vadd.f32 %v1608, 1.0
      %v1621 = vadd.f32 %v1610, 1.0
      %v1622 = vadd.f32 %v1612, 1.0
      %v1623 = vadd.f32 %v1614, 1.0
      %v1624 = vadd.f32 %v1616, 1.0
      %v1625 = vrcp.pop %v1617
      %v1626 = vmul.f32 1.0, %v1625
      %v1627 = vrcp.pop %v1618
      %v1628 = vmul.f32 1.0, %v1627
      %v1629 = vrcp.pop %v1619
      %v1630 = vmul.f32 1.0, %v1629
      %v1631 = vrcp.pop %v1620
      %v1632 = vmul.f32 1.0, %v1631
      %v1633 = vrcp.pop %v1621
      %v1634 = vmul.f32 1.0, %v1633
      %v1635 = vrcp.pop %v1622
      %v1636 = vmul.f32 1.0, %v1635
      %v1637 = vrcp.pop %v1623
      %v1638 = vmul.f32 1.0, %v1637
      %v1639 = vrcp.pop %v1624
      %v1640 = vmul.f32 1.0, %v1639
      %v1641 = vmul.f32 %v1585, %v1626
      %v1642 = vmul.f32 %v1586, %v1628
      %v1643 = vmul.f32 %v1587, %v1630
      %v1644 = vmul.f32 %v1588, %v1632
      %v1645 = vmul.f32 %v1589, %v1634
      %v1646 = vmul.f32 %v1590, %v1636
      %v1647 = vmul.f32 %v1591, %v1638
      %v1648 = vmul.f32 %v1592, %v1640
      %s1649 = scalar_lea.vmem [#allocation2], 160
      %1650 = vst.msk [vmem:[%s1649] sm:$0xff] %vm885, %v1641
      %1651 = vst.msk [vmem:[%s1649 + $0x10] sm:$0xff] %vm885, %v1642
      %1652 = vst.msk [vmem:[%s1649 + $0x20] sm:$0xff] %vm885, %v1643
      %1653 = vst.msk [vmem:[%s1649 + $0x30] sm:$0xff] %vm885, %v1644
      %1654 = vst.msk [vmem:[%s1649 + $0x40] sm:$0xff] %vm885, %v1645
      %1655 = vst.msk [vmem:[%s1649 + $0x50] sm:$0xff] %vm885, %v1646
      %1656 = vst.msk [vmem:[%s1649 + $0x60] sm:$0xff] %vm885, %v1647
      %1657 = vst.msk [vmem:[%s1649 + $0x70] sm:$0xff] %vm885, %v1648
      %v1658 = vld [vmem:[%s658 + $0x1] sm:$0xff]
      %v1659 = vld [vmem:[%s658 + $0x11] sm:$0xff]
      %v1660 = vld [vmem:[%s658 + $0x21] sm:$0xff]
      %v1661 = vld [vmem:[%s658 + $0x31] sm:$0xff]
      %v1662 = vld [vmem:[%s658 + $0x41] sm:$0xff]
      %v1663 = vld [vmem:[%s658 + $0x51] sm:$0xff]
      %v1664 = vld [vmem:[%s658 + $0x61] sm:$0xff]
      %v1665 = vld [vmem:[%s658 + $0x71] sm:$0xff]
      %v1666 = vld [vmem:[%s7] sm:$0xf]
      %v1668 = vsel %vm885, %v1658, 0
      %v1671 = vsel %vm885, %v1659, 0
      %v1674 = vsel %vm885, %v1660, 0
      %v1677 = vsel %vm885, %v1661, 0
      %v1680 = vsel %vm885, %v1662, 0
      %v1683 = vsel %vm885, %v1663, 0
      %v1686 = vsel %vm885, %v1664, 0
      %v1689 = vsel %vm885, %v1665, 0
      %v1692 = vsel %vm910, %v1666, 0
      %1694 = vmatprep.subr.mxu0 0.0
      %1695 = vmatpush1.msra.mxu0 0.0
      %1696 = vmatprep.subr.mxu0 0.0
      %1697 = vmatpush1.msra.mxu0 0.0
      %1698 = vmatprep.subr.mxu0 0.0
      %1699 = vmatpush1.msra.mxu0 0.0
      %1700 = vmatprep.subr.mxu0 0.0
      %1701 = vmatpush1.msra.mxu0 0.0
      %1702 = vmatprep.subr.mxu0 0.0
      %1703 = vmatpush1.msra.mxu0 0.0
      %1704 = vmatprep.subr.mxu0 0.0
      %1705 = vmatpush1.msra.mxu0 0.0
      %1706 = vmatprep.subr.mxu0 0.0
      %1707 = vmatpush1.msra.mxu0 0.0
      %1708 = vmatprep.subr.mxu0 0.0
      %1709 = vmatpush1.msra.mxu0 0.0
      %1710 = vmatprep.subr.mxu0 0.0
      %1711 = vmatpush1.msra.mxu0 0.0
      %1712 = vmatprep.subr.mxu0 0.0
      %1713 = vmatpush1.msra.mxu0 0.0
      %1714 = vmatprep.subr.mxu0 0.0
      %1715 = vmatpush1.msra.mxu0 0.0
      %1716 = vmatprep.subr.mxu0 0.0
      %1717 = vmatpush1.msra.mxu0 0.0
      %1718 = vmatprep.subr.mxu0 0.0
      %1719 = vmatpush1.msra.mxu0 0.0
      %1720 = vmatprep.subr.mxu0 0.0
      %1721 = vmatpush1.msra.mxu0 0.0
      %1722 = vmatprep.subr.mxu0 0.0
      %1723 = vmatpush1.msra.mxu0 0.0
      %1724 = vmatprep.subr.mxu0 0.0
      %1725 = vmatpush1.msra.mxu0 %v1692
      %1726 = vmatprep.subr.mxu0 0.0
      %1727 = vmatpush2.msra.mxu0 0.0
      %1728 = vmatprep.subr.mxu0 0.0
      %1729 = vmatpush2.msra.mxu0 0.0
      %1730 = vmatprep.subr.mxu0 0.0
      %1731 = vmatpush2.msra.mxu0 0.0
      %1732 = vmatprep.subr.mxu0 0.0
      %1733 = vmatpush2.msra.mxu0 0.0
      %1734 = vmatprep.subr.mxu0 0.0
      %1735 = vmatpush2.msra.mxu0 0.0
      %1736 = vmatprep.subr.mxu0 0.0
      %1737 = vmatpush2.msra.mxu0 0.0
      %1738 = vmatprep.subr.mxu0 0.0
      %1739 = vmatpush2.msra.mxu0 0.0
      %1740 = vmatprep.subr.mxu0 0.0
      %1741 = vmatpush2.msra.mxu0 0.0
      %1742 = vmatprep.subr.mxu0 0.0
      %1743 = vmatpush2.msra.mxu0 0.0
      %1744 = vmatprep.subr.mxu0 0.0
      %1745 = vmatpush2.msra.mxu0 0.0
      %1746 = vmatprep.subr.mxu0 0.0
      %1747 = vmatpush2.msra.mxu0 0.0
      %1748 = vmatprep.subr.mxu0 0.0
      %1749 = vmatpush2.msra.mxu0 0.0
      %1750 = vmatprep.subr.mxu0 0.0
      %1751 = vmatpush2.msra.mxu0 0.0
      %1752 = vmatprep.subr.mxu0 0.0
      %1753 = vmatpush2.msra.mxu0 0.0
      %1754 = vmatprep.subr.mxu0 0.0
      %1755 = vmatpush2.msra.mxu0 0.0
      %1756 = vmatprep.subr.mxu0 0.0
      %1757 = vmatpush2.msra.mxu0 0.0
      %1758 = vmatprep.mubr.f32.mxu0 0.0
      %1759 = vmatmul.mubr.f32.gmra.mxu0 %v1668
      %v1760 = vpop.f32.mrf.mxu0
      %v1761 = vadd.f32 0.0, %v1760
      %v1762 = vpop.f32.mrf.mxu0
      %1763 = vmatprep.mubr.f32.mxu0 0.0
      %1764 = vmatmul.mubr.f32.gmra.mxu0 %v1671
      %v1765 = vpop.f32.mrf.mxu0
      %v1766 = vadd.f32 0.0, %v1765
      %v1767 = vpop.f32.mrf.mxu0
      %1768 = vmatprep.mubr.f32.mxu0 0.0
      %1769 = vmatmul.mubr.f32.gmra.mxu0 %v1674
      %v1770 = vpop.f32.mrf.mxu0
      %v1771 = vadd.f32 0.0, %v1770
      %v1772 = vpop.f32.mrf.mxu0
      %1773 = vmatprep.mubr.f32.mxu0 0.0
      %1774 = vmatmul.mubr.f32.gmra.mxu0 %v1677
      %v1775 = vpop.f32.mrf.mxu0
      %v1776 = vadd.f32 0.0, %v1775
      %v1777 = vpop.f32.mrf.mxu0
      %1778 = vmatprep.mubr.f32.mxu0 0.0
      %1779 = vmatmul.mubr.f32.gmra.mxu0 %v1680
      %v1780 = vpop.f32.mrf.mxu0
      %v1781 = vadd.f32 0.0, %v1780
      %v1782 = vpop.f32.mrf.mxu0
      %1783 = vmatprep.mubr.f32.mxu0 0.0
      %1784 = vmatmul.mubr.f32.gmra.mxu0 %v1683
      %v1785 = vpop.f32.mrf.mxu0
      %v1786 = vadd.f32 0.0, %v1785
      %v1787 = vpop.f32.mrf.mxu0
      %1788 = vmatprep.mubr.f32.mxu0 0.0
      %1789 = vmatmul.mubr.f32.gmra.mxu0 %v1686
      %v1790 = vpop.f32.mrf.mxu0
      %v1791 = vadd.f32 0.0, %v1790
      %v1792 = vpop.f32.mrf.mxu0
      %1793 = vmatprep.mubr.f32.mxu0 0.0
      %1794 = vmatmul.mubr.f32.gmra.mxu0 %v1689
      %v1795 = vpop.f32.mrf.mxu0
      %v1796 = vadd.f32 0.0, %v1795
      %v1797 = vpop.f32.mrf.mxu0
      %1798 = vdwg.mxu0
      %v1799 = vld [vmem:[%s8] sm:$0x1]
      %v1801 = vlaneseq
      %v1802 = vshrl.u32 %v1801, 7
      %v1803 = vsub.s32 0, %v1802
      %v1804 = vrot.slane %v1799, %v1803
      %v1806 = vmul.f32 %v1761, %v1804
      %v1807 = vmul.f32 %v1766, %v1804
      %v1808 = vmul.f32 %v1771, %v1804
      %v1809 = vmul.f32 %v1776, %v1804
      %v1810 = vmul.f32 %v1781, %v1804
      %v1811 = vmul.f32 %v1786, %v1804
      %v1812 = vmul.f32 %v1791, %v1804
      %v1813 = vmul.f32 %v1796, %v1804
      %v1814 = vld [vmem:[%s9] sm:$0x1]
      %v1816 = vlaneseq
      %v1817 = vshrl.u32 %v1816, 7
      %v1818 = vsub.s32 0, %v1817
      %v1819 = vrot.slane %v1814, %v1818
      %v1821 = vadd.f32 %v1806, %v1819
      %v1822 = vadd.f32 %v1807, %v1819
      %v1823 = vadd.f32 %v1808, %v1819
      %v1824 = vadd.f32 %v1809, %v1819
      %v1825 = vadd.f32 %v1810, %v1819
      %v1826 = vadd.f32 %v1811, %v1819
      %v1827 = vadd.f32 %v1812, %v1819
      %v1828 = vadd.f32 %v1813, %v1819
      %v1829 = vxor.u32 %v1821, 2147483648
      %v1830 = vxor.u32 %v1822, 2147483648
      %v1831 = vxor.u32 %v1823, 2147483648
      %v1832 = vxor.u32 %v1824, 2147483648
      %v1833 = vxor.u32 %v1825, 2147483648
      %v1834 = vxor.u32 %v1826, 2147483648
      %v1835 = vxor.u32 %v1827, 2147483648
      %v1836 = vxor.u32 %v1828, 2147483648
      %v1837 = vmul.f32 %v1829, 1.442695
      %v1838 = vpow.pop %v1837
      %v1839 = vmul.f32 %v1830, 1.442695
      %v1840 = vpow.pop %v1839
      %v1841 = vmul.f32 %v1831, 1.442695
      %v1842 = vpow.pop %v1841
      %v1843 = vmul.f32 %v1832, 1.442695
      %v1844 = vpow.pop %v1843
      %v1845 = vmul.f32 %v1833, 1.442695
      %v1846 = vpow.pop %v1845
      %v1847 = vmul.f32 %v1834, 1.442695
      %v1848 = vpow.pop %v1847
      %v1849 = vmul.f32 %v1835, 1.442695
      %v1850 = vpow.pop %v1849
      %v1851 = vmul.f32 %v1836, 1.442695
      %v1852 = vpow.pop %v1851
      %v1853 = vadd.f32 %v1838, 1.0
      %v1854 = vadd.f32 %v1840, 1.0
      %v1855 = vadd.f32 %v1842, 1.0
      %v1856 = vadd.f32 %v1844, 1.0
      %v1857 = vadd.f32 %v1846, 1.0
      %v1858 = vadd.f32 %v1848, 1.0
      %v1859 = vadd.f32 %v1850, 1.0
      %v1860 = vadd.f32 %v1852, 1.0
      %v1861 = vrcp.pop %v1853
      %v1862 = vmul.f32 1.0, %v1861
      %v1863 = vrcp.pop %v1854
      %v1864 = vmul.f32 1.0, %v1863
      %v1865 = vrcp.pop %v1855
      %v1866 = vmul.f32 1.0, %v1865
      %v1867 = vrcp.pop %v1856
      %v1868 = vmul.f32 1.0, %v1867
      %v1869 = vrcp.pop %v1857
      %v1870 = vmul.f32 1.0, %v1869
      %v1871 = vrcp.pop %v1858
      %v1872 = vmul.f32 1.0, %v1871
      %v1873 = vrcp.pop %v1859
      %v1874 = vmul.f32 1.0, %v1873
      %v1875 = vrcp.pop %v1860
      %v1876 = vmul.f32 1.0, %v1875
      %v1877 = vmul.f32 %v1821, %v1862
      %v1878 = vmul.f32 %v1822, %v1864
      %v1879 = vmul.f32 %v1823, %v1866
      %v1880 = vmul.f32 %v1824, %v1868
      %v1881 = vmul.f32 %v1825, %v1870
      %v1882 = vmul.f32 %v1826, %v1872
      %v1883 = vmul.f32 %v1827, %v1874
      %v1884 = vmul.f32 %v1828, %v1876
      %s1885 = scalar_lea.vmem [#allocation2], 288
      %1886 = vst.msk [vmem:[%s1885 + $0x1] sm:$0xff] %vm885, %v1877
      %1887 = vst.msk [vmem:[%s1885 + $0x11] sm:$0xff] %vm885, %v1878
      %1888 = vst.msk [vmem:[%s1885 + $0x21] sm:$0xff] %vm885, %v1879
      %1889 = vst.msk [vmem:[%s1885 + $0x31] sm:$0xff] %vm885, %v1880
      %1890 = vst.msk [vmem:[%s1885 + $0x41] sm:$0xff] %vm885, %v1881
      %1891 = vst.msk [vmem:[%s1885 + $0x51] sm:$0xff] %vm885, %v1882
      %1892 = vst.msk [vmem:[%s1885 + $0x61] sm:$0xff] %vm885, %v1883
      %1893 = vst.msk [vmem:[%s1885 + $0x71] sm:$0xff] %vm885, %v1884
      %v1894 = vld [vmem:[%s691] sm:$0xff]
      %v1895 = vld [vmem:[%s691 + $0x10] sm:$0xff]
      %v1896 = vld [vmem:[%s691 + $0x20] sm:$0xff]
      %v1897 = vld [vmem:[%s691 + $0x30] sm:$0xff]
      %v1898 = vld [vmem:[%s691 + $0x40] sm:$0xff]
      %v1899 = vld [vmem:[%s691 + $0x50] sm:$0xff]
      %v1900 = vld [vmem:[%s691 + $0x60] sm:$0xff]
      %v1901 = vld [vmem:[%s691 + $0x70] sm:$0xff]
      %v1902 = vld [vmem:[%s7] sm:$0xf]
      %v1904 = vsel %vm885, %v1894, 0
      %v1907 = vsel %vm885, %v1895, 0
      %v1910 = vsel %vm885, %v1896, 0
      %v1913 = vsel %vm885, %v1897, 0
      %v1916 = vsel %vm885, %v1898, 0
      %v1919 = vsel %vm885, %v1899, 0
      %v1922 = vsel %vm885, %v1900, 0
      %v1925 = vsel %vm885, %v1901, 0
      %v1928 = vsel %vm910, %v1902, 0
      %1930 = vmatprep.subr.mxu0 0.0
      %1931 = vmatpush1.msra.mxu0 0.0
      %1932 = vmatprep.subr.mxu0 0.0
      %1933 = vmatpush1.msra.mxu0 0.0
      %1934 = vmatprep.subr.mxu0 0.0
      %1935 = vmatpush1.msra.mxu0 0.0
      %1936 = vmatprep.subr.mxu0 0.0
      %1937 = vmatpush1.msra.mxu0 0.0
      %1938 = vmatprep.subr.mxu0 0.0
      %1939 = vmatpush1.msra.mxu0 0.0
      %1940 = vmatprep.subr.mxu0 0.0
      %1941 = vmatpush1.msra.mxu0 0.0
      %1942 = vmatprep.subr.mxu0 0.0
      %1943 = vmatpush1.msra.mxu0 0.0
      %1944 = vmatprep.subr.mxu0 0.0
      %1945 = vmatpush1.msra.mxu0 0.0
      %1946 = vmatprep.subr.mxu0 0.0
      %1947 = vmatpush1.msra.mxu0 0.0
      %1948 = vmatprep.subr.mxu0 0.0
      %1949 = vmatpush1.msra.mxu0 0.0
      %1950 = vmatprep.subr.mxu0 0.0
      %1951 = vmatpush1.msra.mxu0 0.0
      %1952 = vmatprep.subr.mxu0 0.0
      %1953 = vmatpush1.msra.mxu0 0.0
      %1954 = vmatprep.subr.mxu0 0.0
      %1955 = vmatpush1.msra.mxu0 0.0
      %1956 = vmatprep.subr.mxu0 0.0
      %1957 = vmatpush1.msra.mxu0 0.0
      %1958 = vmatprep.subr.mxu0 0.0
      %1959 = vmatpush1.msra.mxu0 0.0
      %1960 = vmatprep.subr.mxu0 0.0
      %1961 = vmatpush1.msra.mxu0 %v1928
      %1962 = vmatprep.subr.mxu0 0.0
      %1963 = vmatpush2.msra.mxu0 0.0
      %1964 = vmatprep.subr.mxu0 0.0
      %1965 = vmatpush2.msra.mxu0 0.0
      %1966 = vmatprep.subr.mxu0 0.0
      %1967 = vmatpush2.msra.mxu0 0.0
      %1968 = vmatprep.subr.mxu0 0.0
      %1969 = vmatpush2.msra.mxu0 0.0
      %1970 = vmatprep.subr.mxu0 0.0
      %1971 = vmatpush2.msra.mxu0 0.0
      %1972 = vmatprep.subr.mxu0 0.0
      %1973 = vmatpush2.msra.mxu0 0.0
      %1974 = vmatprep.subr.mxu0 0.0
      %1975 = vmatpush2.msra.mxu0 0.0
      %1976 = vmatprep.subr.mxu0 0.0
      %1977 = vmatpush2.msra.mxu0 0.0
      %1978 = vmatprep.subr.mxu0 0.0
      %1979 = vmatpush2.msra.mxu0 0.0
      %1980 = vmatprep.subr.mxu0 0.0
      %1981 = vmatpush2.msra.mxu0 0.0
      %1982 = vmatprep.subr.mxu0 0.0
      %1983 = vmatpush2.msra.mxu0 0.0
      %1984 = vmatprep.subr.mxu0 0.0
      %1985 = vmatpush2.msra.mxu0 0.0
      %1986 = vmatprep.subr.mxu0 0.0
      %1987 = vmatpush2.msra.mxu0 0.0
      %1988 = vmatprep.subr.mxu0 0.0
      %1989 = vmatpush2.msra.mxu0 0.0
      %1990 = vmatprep.subr.mxu0 0.0
      %1991 = vmatpush2.msra.mxu0 0.0
      %1992 = vmatprep.subr.mxu0 0.0
      %1993 = vmatpush2.msra.mxu0 0.0
      %1994 = vmatprep.mubr.f32.mxu0 0.0
      %1995 = vmatmul.mubr.f32.gmra.mxu0 %v1904
      %v1996 = vpop.f32.mrf.mxu0
      %v1997 = vadd.f32 0.0, %v1996
      %v1998 = vpop.f32.mrf.mxu0
      %1999 = vmatprep.mubr.f32.mxu0 0.0
      %2000 = vmatmul.mubr.f32.gmra.mxu0 %v1907
      %v2001 = vpop.f32.mrf.mxu0
      %v2002 = vadd.f32 0.0, %v2001
      %v2003 = vpop.f32.mrf.mxu0
      %2004 = vmatprep.mubr.f32.mxu0 0.0
      %2005 = vmatmul.mubr.f32.gmra.mxu0 %v1910
      %v2006 = vpop.f32.mrf.mxu0
      %v2007 = vadd.f32 0.0, %v2006
      %v2008 = vpop.f32.mrf.mxu0
      %2009 = vmatprep.mubr.f32.mxu0 0.0
      %2010 = vmatmul.mubr.f32.gmra.mxu0 %v1913
      %v2011 = vpop.f32.mrf.mxu0
      %v2012 = vadd.f32 0.0, %v2011
      %v2013 = vpop.f32.mrf.mxu0
      %2014 = vmatprep.mubr.f32.mxu0 0.0
      %2015 = vmatmul.mubr.f32.gmra.mxu0 %v1916
      %v2016 = vpop.f32.mrf.mxu0
      %v2017 = vadd.f32 0.0, %v2016
      %v2018 = vpop.f32.mrf.mxu0
      %2019 = vmatprep.mubr.f32.mxu0 0.0
      %2020 = vmatmul.mubr.f32.gmra.mxu0 %v1919
      %v2021 = vpop.f32.mrf.mxu0
      %v2022 = vadd.f32 0.0, %v2021
      %v2023 = vpop.f32.mrf.mxu0
      %2024 = vmatprep.mubr.f32.mxu0 0.0
      %2025 = vmatmul.mubr.f32.gmra.mxu0 %v1922
      %v2026 = vpop.f32.mrf.mxu0
      %v2027 = vadd.f32 0.0, %v2026
      %v2028 = vpop.f32.mrf.mxu0
      %2029 = vmatprep.mubr.f32.mxu0 0.0
      %2030 = vmatmul.mubr.f32.gmra.mxu0 %v1925
      %v2031 = vpop.f32.mrf.mxu0
      %v2032 = vadd.f32 0.0, %v2031
      %v2033 = vpop.f32.mrf.mxu0
      %2034 = vdwg.mxu0
      %v2035 = vld [vmem:[%s8] sm:$0x1]
      %v2037 = vlaneseq
      %v2038 = vshrl.u32 %v2037, 7
      %v2039 = vsub.s32 0, %v2038
      %v2040 = vrot.slane %v2035, %v2039
      %v2042 = vmul.f32 %v1997, %v2040
      %v2043 = vmul.f32 %v2002, %v2040
      %v2044 = vmul.f32 %v2007, %v2040
      %v2045 = vmul.f32 %v2012, %v2040
      %v2046 = vmul.f32 %v2017, %v2040
      %v2047 = vmul.f32 %v2022, %v2040
      %v2048 = vmul.f32 %v2027, %v2040
      %v2049 = vmul.f32 %v2032, %v2040
      %v2050 = vld [vmem:[%s9] sm:$0x1]
      %v2052 = vlaneseq
      %v2053 = vshrl.u32 %v2052, 7
      %v2054 = vsub.s32 0, %v2053
      %v2055 = vrot.slane %v2050, %v2054
      %v2057 = vadd.f32 %v2042, %v2055
      %v2058 = vadd.f32 %v2043, %v2055
      %v2059 = vadd.f32 %v2044, %v2055
      %v2060 = vadd.f32 %v2045, %v2055
      %v2061 = vadd.f32 %v2046, %v2055
      %v2062 = vadd.f32 %v2047, %v2055
      %v2063 = vadd.f32 %v2048, %v2055
      %v2064 = vadd.f32 %v2049, %v2055
      %v2065 = vxor.u32 %v2057, 2147483648
      %v2066 = vxor.u32 %v2058, 2147483648
      %v2067 = vxor.u32 %v2059, 2147483648
      %v2068 = vxor.u32 %v2060, 2147483648
      %v2069 = vxor.u32 %v2061, 2147483648
      %v2070 = vxor.u32 %v2062, 2147483648
      %v2071 = vxor.u32 %v2063, 2147483648
      %v2072 = vxor.u32 %v2064, 2147483648
      %v2073 = vmul.f32 %v2065, 1.442695
      %v2074 = vpow.pop %v2073
      %v2075 = vmul.f32 %v2066, 1.442695
      %v2076 = vpow.pop %v2075
      %v2077 = vmul.f32 %v2067, 1.442695
      %v2078 = vpow.pop %v2077
      %v2079 = vmul.f32 %v2068, 1.442695
      %v2080 = vpow.pop %v2079
      %v2081 = vmul.f32 %v2069, 1.442695
      %v2082 = vpow.pop %v2081
      %v2083 = vmul.f32 %v2070, 1.442695
      %v2084 = vpow.pop %v2083
      %v2085 = vmul.f32 %v2071, 1.442695
      %v2086 = vpow.pop %v2085
      %v2087 = vmul.f32 %v2072, 1.442695
      %v2088 = vpow.pop %v2087
      %v2089 = vadd.f32 %v2074, 1.0
      %v2090 = vadd.f32 %v2076, 1.0
      %v2091 = vadd.f32 %v2078, 1.0
      %v2092 = vadd.f32 %v2080, 1.0
      %v2093 = vadd.f32 %v2082, 1.0
      %v2094 = vadd.f32 %v2084, 1.0
      %v2095 = vadd.f32 %v2086, 1.0
      %v2096 = vadd.f32 %v2088, 1.0
      %v2097 = vrcp.pop %v2089
      %v2098 = vmul.f32 1.0, %v2097
      %v2099 = vrcp.pop %v2090
      %v2100 = vmul.f32 1.0, %v2099
      %v2101 = vrcp.pop %v2091
      %v2102 = vmul.f32 1.0, %v2101
      %v2103 = vrcp.pop %v2092
      %v2104 = vmul.f32 1.0, %v2103
      %v2105 = vrcp.pop %v2093
      %v2106 = vmul.f32 1.0, %v2105
      %v2107 = vrcp.pop %v2094
      %v2108 = vmul.f32 1.0, %v2107
      %v2109 = vrcp.pop %v2095
      %v2110 = vmul.f32 1.0, %v2109
      %v2111 = vrcp.pop %v2096
      %v2112 = vmul.f32 1.0, %v2111
      %v2113 = vmul.f32 %v2057, %v2098
      %v2114 = vmul.f32 %v2058, %v2100
      %v2115 = vmul.f32 %v2059, %v2102
      %v2116 = vmul.f32 %v2060, %v2104
      %v2117 = vmul.f32 %v2061, %v2106
      %v2118 = vmul.f32 %v2062, %v2108
      %v2119 = vmul.f32 %v2063, %v2110
      %v2120 = vmul.f32 %v2064, %v2112
      %s2121 = scalar_lea.vmem [#allocation2], 432
      %2122 = vst.msk [vmem:[%s2121] sm:$0xff] %vm885, %v2113
      %2123 = vst.msk [vmem:[%s2121 + $0x10] sm:$0xff] %vm885, %v2114
      %2124 = vst.msk [vmem:[%s2121 + $0x20] sm:$0xff] %vm885, %v2115
      %2125 = vst.msk [vmem:[%s2121 + $0x30] sm:$0xff] %vm885, %v2116
      %2126 = vst.msk [vmem:[%s2121 + $0x40] sm:$0xff] %vm885, %v2117
      %2127 = vst.msk [vmem:[%s2121 + $0x50] sm:$0xff] %vm885, %v2118
      %2128 = vst.msk [vmem:[%s2121 + $0x60] sm:$0xff] %vm885, %v2119
      %2129 = vst.msk [vmem:[%s2121 + $0x70] sm:$0xff] %vm885, %v2120
      %v2130 = vld [vmem:[#allocation2] sm:$0xff]
      %v2131 = vld [vmem:[#allocation2 + $0x10] sm:$0xff]
      %v2132 = vld [vmem:[#allocation2 + $0x20] sm:$0xff]
      %v2133 = vld [vmem:[#allocation2 + $0x30] sm:$0xff]
      %v2134 = vld [vmem:[#allocation2 + $0x40] sm:$0xff]
      %v2135 = vld [vmem:[#allocation2 + $0x50] sm:$0xff]
      %v2136 = vld [vmem:[#allocation2 + $0x60] sm:$0xff]
      %v2137 = vld [vmem:[#allocation2 + $0x70] sm:$0xff]
      %v2138 = vld [vmem:[%s10] sm:$0x1]
      %v2140 = vlaneseq
      %v2141 = vshrl.u32 %v2140, 7
      %v2142 = vsub.s32 0, %v2141
      %v2143 = vrot.slane %v2138, %v2142
      %v2145 = vmul.f32 %v2130, %v2143
      %v2146 = vmul.f32 %v2131, %v2143
      %v2147 = vmul.f32 %v2132, %v2143
      %v2148 = vmul.f32 %v2133, %v2143
      %v2149 = vmul.f32 %v2134, %v2143
      %v2150 = vmul.f32 %v2135, %v2143
      %v2151 = vmul.f32 %v2136, %v2143
      %v2152 = vmul.f32 %v2137, %v2143
      %v2153 = vadd.f32 %v2145, 0.0
      %v2154 = vadd.f32 %v2146, 0.0
      %v2155 = vadd.f32 %v2147, 0.0
      %v2156 = vadd.f32 %v2148, 0.0
      %v2157 = vadd.f32 %v2149, 0.0
      %v2158 = vadd.f32 %v2150, 0.0
      %v2159 = vadd.f32 %v2151, 0.0
      %v2160 = vadd.f32 %v2152, 0.0
      %s2161 = scalar_lea.vmem [#allocation2], 144
      %v2162 = vld [vmem:[%s2161] sm:$0xff]
      %v2163 = vld [vmem:[%s2161 + $0x10] sm:$0xff]
      %v2164 = vld [vmem:[%s2161 + $0x20] sm:$0xff]
      %v2165 = vld [vmem:[%s2161 + $0x30] sm:$0xff]
      %v2166 = vld [vmem:[%s2161 + $0x40] sm:$0xff]
      %v2167 = vld [vmem:[%s2161 + $0x50] sm:$0xff]
      %v2168 = vld [vmem:[%s2161 + $0x60] sm:$0xff]
      %v2169 = vld [vmem:[%s2161 + $0x70] sm:$0xff]
      %s2170 = scalar_lea.vmem %s10, 1
      %v2171 = vld [vmem:[%s2170] sm:$0x1]
      %v2173 = vlaneseq
      %v2174 = vshrl.u32 %v2173, 7
      %v2175 = vsub.s32 0, %v2174
      %v2176 = vrot.slane %v2171, %v2175
      %v2178 = vmul.f32 %v2162, %v2176
      %v2179 = vmul.f32 %v2163, %v2176
      %v2180 = vmul.f32 %v2164, %v2176
      %v2181 = vmul.f32 %v2165, %v2176
      %v2182 = vmul.f32 %v2166, %v2176
      %v2183 = vmul.f32 %v2167, %v2176
      %v2184 = vmul.f32 %v2168, %v2176
      %v2185 = vmul.f32 %v2169, %v2176
      %v2186 = vadd.f32 %v2153, %v2178
      %v2187 = vadd.f32 %v2154, %v2179
      %v2188 = vadd.f32 %v2155, %v2180
      %v2189 = vadd.f32 %v2156, %v2181
      %v2190 = vadd.f32 %v2157, %v2182
      %v2191 = vadd.f32 %v2158, %v2183
      %v2192 = vadd.f32 %v2159, %v2184
      %v2193 = vadd.f32 %v2160, %v2185
      %v2194 = vld [vmem:[#allocation2 + $0x1] sm:$0xff]
      %v2195 = vld [vmem:[#allocation2 + $0x11] sm:$0xff]
      %v2196 = vld [vmem:[#allocation2 + $0x21] sm:$0xff]
      %v2197 = vld [vmem:[#allocation2 + $0x31] sm:$0xff]
      %v2198 = vld [vmem:[#allocation2 + $0x41] sm:$0xff]
      %v2199 = vld [vmem:[#allocation2 + $0x51] sm:$0xff]
      %v2200 = vld [vmem:[#allocation2 + $0x61] sm:$0xff]
      %v2201 = vld [vmem:[#allocation2 + $0x71] sm:$0xff]
      %s2202 = scalar_lea.vmem %s10, 2
      %v2203 = vld [vmem:[%s2202] sm:$0x1]
      %v2205 = vlaneseq
      %v2206 = vshrl.u32 %v2205, 7
      %v2207 = vsub.s32 0, %v2206
      %v2208 = vrot.slane %v2203, %v2207
      %v2210 = vmul.f32 %v2194, %v2208
      %v2211 = vmul.f32 %v2195, %v2208
      %v2212 = vmul.f32 %v2196, %v2208
      %v2213 = vmul.f32 %v2197, %v2208
      %v2214 = vmul.f32 %v2198, %v2208
      %v2215 = vmul.f32 %v2199, %v2208
      %v2216 = vmul.f32 %v2200, %v2208
      %v2217 = vmul.f32 %v2201, %v2208
      %v2218 = vadd.f32 %v2186, %v2210
      %v2219 = vadd.f32 %v2187, %v2211
      %v2220 = vadd.f32 %v2188, %v2212
      %v2221 = vadd.f32 %v2189, %v2213
      %v2222 = vadd.f32 %v2190, %v2214
      %v2223 = vadd.f32 %v2191, %v2215
      %v2224 = vadd.f32 %v2192, %v2216
      %v2225 = vadd.f32 %v2193, %v2217
      %v2226 = vld [vmem:[%s1885] sm:$0xff]
      %v2227 = vld [vmem:[%s1885 + $0x10] sm:$0xff]
      %v2228 = vld [vmem:[%s1885 + $0x20] sm:$0xff]
      %v2229 = vld [vmem:[%s1885 + $0x30] sm:$0xff]
      %v2230 = vld [vmem:[%s1885 + $0x40] sm:$0xff]
      %v2231 = vld [vmem:[%s1885 + $0x50] sm:$0xff]
      %v2232 = vld [vmem:[%s1885 + $0x60] sm:$0xff]
      %v2233 = vld [vmem:[%s1885 + $0x70] sm:$0xff]
      %s2234 = scalar_lea.vmem %s10, 3
      %v2235 = vld [vmem:[%s2234] sm:$0x1]
      %v2237 = vlaneseq
      %v2238 = vshrl.u32 %v2237, 7
      %v2239 = vsub.s32 0, %v2238
      %v2240 = vrot.slane %v2235, %v2239
      %v2242 = vmul.f32 %v2226, %v2240
      %v2243 = vmul.f32 %v2227, %v2240
      %v2244 = vmul.f32 %v2228, %v2240
      %v2245 = vmul.f32 %v2229, %v2240
      %v2246 = vmul.f32 %v2230, %v2240
      %v2247 = vmul.f32 %v2231, %v2240
      %v2248 = vmul.f32 %v2232, %v2240
      %v2249 = vmul.f32 %v2233, %v2240
      %v2250 = vadd.f32 %v2218, %v2242
      %v2251 = vadd.f32 %v2219, %v2243
      %v2252 = vadd.f32 %v2220, %v2244
      %v2253 = vadd.f32 %v2221, %v2245
      %v2254 = vadd.f32 %v2222, %v2246
      %v2255 = vadd.f32 %v2223, %v2247
      %v2256 = vadd.f32 %v2224, %v2248
      %v2257 = vadd.f32 %v2225, %v2249
      %v2258 = vld [vmem:[%s2121] sm:$0xff]
      %v2259 = vld [vmem:[%s2121 + $0x10] sm:$0xff]
      %v2260 = vld [vmem:[%s2121 + $0x20] sm:$0xff]
      %v2261 = vld [vmem:[%s2121 + $0x30] sm:$0xff]
      %v2262 = vld [vmem:[%s2121 + $0x40] sm:$0xff]
      %v2263 = vld [vmem:[%s2121 + $0x50] sm:$0xff]
      %v2264 = vld [vmem:[%s2121 + $0x60] sm:$0xff]
      %v2265 = vld [vmem:[%s2121 + $0x70] sm:$0xff]
      %s2266 = scalar_lea.vmem %s10, 4
      %v2267 = vld [vmem:[%s2266] sm:$0x1]
      %v2269 = vlaneseq
      %v2270 = vshrl.u32 %v2269, 7
      %v2271 = vsub.s32 0, %v2270
      %v2272 = vrot.slane %v2267, %v2271
      %v2274 = vmul.f32 %v2258, %v2272
      %v2275 = vmul.f32 %v2259, %v2272
      %v2276 = vmul.f32 %v2260, %v2272
      %v2277 = vmul.f32 %v2261, %v2272
      %v2278 = vmul.f32 %v2262, %v2272
      %v2279 = vmul.f32 %v2263, %v2272
      %v2280 = vmul.f32 %v2264, %v2272
      %v2281 = vmul.f32 %v2265, %v2272
      %v2282 = vadd.f32 %v2250, %v2274
      %v2283 = vadd.f32 %v2251, %v2275
      %v2284 = vadd.f32 %v2252, %v2276
      %v2285 = vadd.f32 %v2253, %v2277
      %v2286 = vadd.f32 %v2254, %v2278
      %v2287 = vadd.f32 %v2255, %v2279
      %v2288 = vadd.f32 %v2256, %v2280
      %v2289 = vadd.f32 %v2257, %v2281
      %v2290 = vld [vmem:[%s1885 + $0x1] sm:$0xff]
      %v2291 = vld [vmem:[%s1885 + $0x11] sm:$0xff]
      %v2292 = vld [vmem:[%s1885 + $0x21] sm:$0xff]
      %v2293 = vld [vmem:[%s1885 + $0x31] sm:$0xff]
      %v2294 = vld [vmem:[%s1885 + $0x41] sm:$0xff]
      %v2295 = vld [vmem:[%s1885 + $0x51] sm:$0xff]
      %v2296 = vld [vmem:[%s1885 + $0x61] sm:$0xff]
      %v2297 = vld [vmem:[%s1885 + $0x71] sm:$0xff]
      %s2298 = scalar_lea.vmem %s10, 5
      %v2299 = vld [vmem:[%s2298] sm:$0x1]
      %v2301 = vlaneseq
      %v2302 = vshrl.u32 %v2301, 7
      %v2303 = vsub.s32 0, %v2302
      %v2304 = vrot.slane %v2299, %v2303
      %v2306 = vmul.f32 %v2290, %v2304
      %v2307 = vmul.f32 %v2291, %v2304
      %v2308 = vmul.f32 %v2292, %v2304
      %v2309 = vmul.f32 %v2293, %v2304
      %v2310 = vmul.f32 %v2294, %v2304
      %v2311 = vmul.f32 %v2295, %v2304
      %v2312 = vmul.f32 %v2296, %v2304
      %v2313 = vmul.f32 %v2297, %v2304
      %v2314 = vadd.f32 %v2282, %v2306
      %v2315 = vadd.f32 %v2283, %v2307
      %v2316 = vadd.f32 %v2284, %v2308
      %v2317 = vadd.f32 %v2285, %v2309
      %v2318 = vadd.f32 %v2286, %v2310
      %v2319 = vadd.f32 %v2287, %v2311
      %v2320 = vadd.f32 %v2288, %v2312
      %v2321 = vadd.f32 %v2289, %v2313
      %v2322 = vld [vmem:[%s1413] sm:$0xff]
      %v2323 = vld [vmem:[%s1413 + $0x10] sm:$0xff]
      %v2324 = vld [vmem:[%s1413 + $0x20] sm:$0xff]
      %v2325 = vld [vmem:[%s1413 + $0x30] sm:$0xff]
      %v2326 = vld [vmem:[%s1413 + $0x40] sm:$0xff]
      %v2327 = vld [vmem:[%s1413 + $0x50] sm:$0xff]
      %v2328 = vld [vmem:[%s1413 + $0x60] sm:$0xff]
      %v2329 = vld [vmem:[%s1413 + $0x70] sm:$0xff]
      %s2330 = scalar_lea.vmem %s10, 6
      %v2331 = vld [vmem:[%s2330] sm:$0x1]
      %v2333 = vlaneseq
      %v2334 = vshrl.u32 %v2333, 7
      %v2335 = vsub.s32 0, %v2334
      %v2336 = vrot.slane %v2331, %v2335
      %v2338 = vmul.f32 %v2322, %v2336
      %v2339 = vmul.f32 %v2323, %v2336
      %v2340 = vmul.f32 %v2324, %v2336
      %v2341 = vmul.f32 %v2325, %v2336
      %v2342 = vmul.f32 %v2326, %v2336
      %v2343 = vmul.f32 %v2327, %v2336
      %v2344 = vmul.f32 %v2328, %v2336
      %v2345 = vmul.f32 %v2329, %v2336
      %v2346 = vadd.f32 %v2314, %v2338
      %v2347 = vadd.f32 %v2315, %v2339
      %v2348 = vadd.f32 %v2316, %v2340
      %v2349 = vadd.f32 %v2317, %v2341
      %v2350 = vadd.f32 %v2318, %v2342
      %v2351 = vadd.f32 %v2319, %v2343
      %v2352 = vadd.f32 %v2320, %v2344
      %v2353 = vadd.f32 %v2321, %v2345
      %v2354 = vld [vmem:[%s1649] sm:$0xff]
      %v2355 = vld [vmem:[%s1649 + $0x10] sm:$0xff]
      %v2356 = vld [vmem:[%s1649 + $0x20] sm:$0xff]
      %v2357 = vld [vmem:[%s1649 + $0x30] sm:$0xff]
      %v2358 = vld [vmem:[%s1649 + $0x40] sm:$0xff]
      %v2359 = vld [vmem:[%s1649 + $0x50] sm:$0xff]
      %v2360 = vld [vmem:[%s1649 + $0x60] sm:$0xff]
      %v2361 = vld [vmem:[%s1649 + $0x70] sm:$0xff]
      %s2362 = scalar_lea.vmem %s10, 7
      %v2363 = vld [vmem:[%s2362] sm:$0x1]
      %v2365 = vlaneseq
      %v2366 = vshrl.u32 %v2365, 7
      %v2367 = vsub.s32 0, %v2366
      %v2368 = vrot.slane %v2363, %v2367
      %v2370 = vmul.f32 %v2354, %v2368
      %v2371 = vmul.f32 %v2355, %v2368
      %v2372 = vmul.f32 %v2356, %v2368
      %v2373 = vmul.f32 %v2357, %v2368
      %v2374 = vmul.f32 %v2358, %v2368
      %v2375 = vmul.f32 %v2359, %v2368
      %v2376 = vmul.f32 %v2360, %v2368
      %v2377 = vmul.f32 %v2361, %v2368
      %v2378 = vadd.f32 %v2346, %v2370
      %v2379 = vadd.f32 %v2347, %v2371
      %v2380 = vadd.f32 %v2348, %v2372
      %v2381 = vadd.f32 %v2349, %v2373
      %v2382 = vadd.f32 %v2350, %v2374
      %v2383 = vadd.f32 %v2351, %v2375
      %v2384 = vadd.f32 %v2352, %v2376
      %v2385 = vadd.f32 %v2353, %v2377
      %v2386 = vld [vmem:[%s1413 + $0x1] sm:$0xff]
      %v2387 = vld [vmem:[%s1413 + $0x11] sm:$0xff]
      %v2388 = vld [vmem:[%s1413 + $0x21] sm:$0xff]
      %v2389 = vld [vmem:[%s1413 + $0x31] sm:$0xff]
      %v2390 = vld [vmem:[%s1413 + $0x41] sm:$0xff]
      %v2391 = vld [vmem:[%s1413 + $0x51] sm:$0xff]
      %v2392 = vld [vmem:[%s1413 + $0x61] sm:$0xff]
      %v2393 = vld [vmem:[%s1413 + $0x71] sm:$0xff]
      %s2394 = scalar_lea.vmem %s10, 8
      %v2395 = vld [vmem:[%s2394] sm:$0x1]
      %v2397 = vlaneseq
      %v2398 = vshrl.u32 %v2397, 7
      %v2399 = vsub.s32 0, %v2398
      %v2400 = vrot.slane %v2395, %v2399
      %v2402 = vmul.f32 %v2386, %v2400
      %v2403 = vmul.f32 %v2387, %v2400
      %v2404 = vmul.f32 %v2388, %v2400
      %v2405 = vmul.f32 %v2389, %v2400
      %v2406 = vmul.f32 %v2390, %v2400
      %v2407 = vmul.f32 %v2391, %v2400
      %v2408 = vmul.f32 %v2392, %v2400
      %v2409 = vmul.f32 %v2393, %v2400
      %v2410 = vadd.f32 %v2378, %v2402
      %v2411 = vadd.f32 %v2379, %v2403
      %v2412 = vadd.f32 %v2380, %v2404
      %v2413 = vadd.f32 %v2381, %v2405
      %v2414 = vadd.f32 %v2382, %v2406
      %v2415 = vadd.f32 %v2383, %v2407
      %v2416 = vadd.f32 %v2384, %v2408
      %v2417 = vadd.f32 %v2385, %v2409
      %v2418 = vld [vmem:[%s11] sm:$0x1]
      %v2420 = vlaneseq
      %v2421 = vshrl.u32 %v2420, 7
      %v2422 = vsub.s32 0, %v2421
      %v2423 = vrot.slane %v2418, %v2422
      %v2425 = vmul.f32 %v2410, %v2423
      %v2426 = vmul.f32 %v2411, %v2423
      %v2427 = vmul.f32 %v2412, %v2423
      %v2428 = vmul.f32 %v2413, %v2423
      %v2429 = vmul.f32 %v2414, %v2423
      %v2430 = vmul.f32 %v2415, %v2423
      %v2431 = vmul.f32 %v2416, %v2423
      %v2432 = vmul.f32 %v2417, %v2423
      %v2433 = vld [vmem:[%s12] sm:$0x1]
      %v2435 = vlaneseq
      %v2436 = vshrl.u32 %v2435, 7
      %v2437 = vsub.s32 0, %v2436
      %v2438 = vrot.slane %v2433, %v2437
      %v2440 = vadd.f32 %v2425, %v2438
      %v2441 = vadd.f32 %v2426, %v2438
      %v2442 = vadd.f32 %v2427, %v2438
      %v2443 = vadd.f32 %v2428, %v2438
      %v2444 = vadd.f32 %v2429, %v2438
      %v2445 = vadd.f32 %v2430, %v2438
      %v2446 = vadd.f32 %v2431, %v2438
      %v2447 = vadd.f32 %v2432, %v2438
      %v2448 = vld [vmem:[%s13] sm:$0xf]
      %v2450 = vsel %vm885, %v2440, 0
      %v2453 = vsel %vm885, %v2441, 0
      %v2456 = vsel %vm885, %v2442, 0
      %v2459 = vsel %vm885, %v2443, 0
      %v2462 = vsel %vm885, %v2444, 0
      %v2465 = vsel %vm885, %v2445, 0
      %v2468 = vsel %vm885, %v2446, 0
      %v2471 = vsel %vm885, %v2447, 0
      %v2474 = vsel %vm910, %v2448, 0
      %2476 = vmatprep.subr.mxu0 0.0
      %2477 = vmatpush1.msra.mxu0 0.0
      %2478 = vmatprep.subr.mxu0 0.0
      %2479 = vmatpush1.msra.mxu0 0.0
      %2480 = vmatprep.subr.mxu0 0.0
      %2481 = vmatpush1.msra.mxu0 0.0
      %2482 = vmatprep.subr.mxu0 0.0
      %2483 = vmatpush1.msra.mxu0 0.0
      %2484 = vmatprep.subr.mxu0 0.0
      %2485 = vmatpush1.msra.mxu0 0.0
      %2486 = vmatprep.subr.mxu0 0.0
      %2487 = vmatpush1.msra.mxu0 0.0
      %2488 = vmatprep.subr.mxu0 0.0
      %2489 = vmatpush1.msra.mxu0 0.0
      %2490 = vmatprep.subr.mxu0 0.0
      %2491 = vmatpush1.msra.mxu0 0.0
      %2492 = vmatprep.subr.mxu0 0.0
      %2493 = vmatpush1.msra.mxu0 0.0
      %2494 = vmatprep.subr.mxu0 0.0
      %2495 = vmatpush1.msra.mxu0 0.0
      %2496 = vmatprep.subr.mxu0 0.0
      %2497 = vmatpush1.msra.mxu0 0.0
      %2498 = vmatprep.subr.mxu0 0.0
      %2499 = vmatpush1.msra.mxu0 0.0
      %2500 = vmatprep.subr.mxu0 0.0
      %2501 = vmatpush1.msra.mxu0 0.0
      %2502 = vmatprep.subr.mxu0 0.0
      %2503 = vmatpush1.msra.mxu0 0.0
      %2504 = vmatprep.subr.mxu0 0.0
      %2505 = vmatpush1.msra.mxu0 0.0
      %2506 = vmatprep.subr.mxu0 0.0
      %2507 = vmatpush1.msra.mxu0 %v2474
      %2508 = vmatprep.subr.mxu0 0.0
      %2509 = vmatpush2.msra.mxu0 0.0
      %2510 = vmatprep.subr.mxu0 0.0
      %2511 = vmatpush2.msra.mxu0 0.0
      %2512 = vmatprep.subr.mxu0 0.0
      %2513 = vmatpush2.msra.mxu0 0.0
      %2514 = vmatprep.subr.mxu0 0.0
      %2515 = vmatpush2.msra.mxu0 0.0
      %2516 = vmatprep.subr.mxu0 0.0
      %2517 = vmatpush2.msra.mxu0 0.0
      %2518 = vmatprep.subr.mxu0 0.0
      %2519 = vmatpush2.msra.mxu0 0.0
      %2520 = vmatprep.subr.mxu0 0.0
      %2521 = vmatpush2.msra.mxu0 0.0
      %2522 = vmatprep.subr.mxu0 0.0
      %2523 = vmatpush2.msra.mxu0 0.0
      %2524 = vmatprep.subr.mxu0 0.0
      %2525 = vmatpush2.msra.mxu0 0.0
      %2526 = vmatprep.subr.mxu0 0.0
      %2527 = vmatpush2.msra.mxu0 0.0
      %2528 = vmatprep.subr.mxu0 0.0
      %2529 = vmatpush2.msra.mxu0 0.0
      %2530 = vmatprep.subr.mxu0 0.0
      %2531 = vmatpush2.msra.mxu0 0.0
      %2532 = vmatprep.subr.mxu0 0.0
      %2533 = vmatpush2.msra.mxu0 0.0
      %2534 = vmatprep.subr.mxu0 0.0
      %2535 = vmatpush2.msra.mxu0 0.0
      %2536 = vmatprep.subr.mxu0 0.0
      %2537 = vmatpush2.msra.mxu0 0.0
      %2538 = vmatprep.subr.mxu0 0.0
      %2539 = vmatpush2.msra.mxu0 0.0
      %2540 = vmatprep.mubr.f32.mxu0 0.0
      %2541 = vmatmul.mubr.f32.gmra.mxu0 %v2450
      %v2542 = vpop.f32.mrf.mxu0
      %v2543 = vadd.f32 0.0, %v2542
      %v2544 = vpop.f32.mrf.mxu0
      %2545 = vmatprep.mubr.f32.mxu0 0.0
      %2546 = vmatmul.mubr.f32.gmra.mxu0 %v2453
      %v2547 = vpop.f32.mrf.mxu0
      %v2548 = vadd.f32 0.0, %v2547
      %v2549 = vpop.f32.mrf.mxu0
      %2550 = vmatprep.mubr.f32.mxu0 0.0
      %2551 = vmatmul.mubr.f32.gmra.mxu0 %v2456
      %v2552 = vpop.f32.mrf.mxu0
      %v2553 = vadd.f32 0.0, %v2552
      %v2554 = vpop.f32.mrf.mxu0
      %2555 = vmatprep.mubr.f32.mxu0 0.0
      %2556 = vmatmul.mubr.f32.gmra.mxu0 %v2459
      %v2557 = vpop.f32.mrf.mxu0
      %v2558 = vadd.f32 0.0, %v2557
      %v2559 = vpop.f32.mrf.mxu0
      %2560 = vmatprep.mubr.f32.mxu0 0.0
      %2561 = vmatmul.mubr.f32.gmra.mxu0 %v2462
      %v2562 = vpop.f32.mrf.mxu0
      %v2563 = vadd.f32 0.0, %v2562
      %v2564 = vpop.f32.mrf.mxu0
      %2565 = vmatprep.mubr.f32.mxu0 0.0
      %2566 = vmatmul.mubr.f32.gmra.mxu0 %v2465
      %v2567 = vpop.f32.mrf.mxu0
      %v2568 = vadd.f32 0.0, %v2567
      %v2569 = vpop.f32.mrf.mxu0
      %2570 = vmatprep.mubr.f32.mxu0 0.0
      %2571 = vmatmul.mubr.f32.gmra.mxu0 %v2468
      %v2572 = vpop.f32.mrf.mxu0
      %v2573 = vadd.f32 0.0, %v2572
      %v2574 = vpop.f32.mrf.mxu0
      %2575 = vmatprep.mubr.f32.mxu0 0.0
      %2576 = vmatmul.mubr.f32.gmra.mxu0 %v2471
      %v2577 = vpop.f32.mrf.mxu0
      %v2578 = vadd.f32 0.0, %v2577
      %v2579 = vpop.f32.mrf.mxu0
      %2580 = vdwg.mxu0
      %v2581 = vld [vmem:[%s14] sm:$0x1]
      %v2583 = vlaneseq
      %v2584 = vshrl.u32 %v2583, 7
      %v2585 = vsub.s32 0, %v2584
      %v2586 = vrot.slane %v2581, %v2585
      %v2588 = vmul.f32 %v2543, %v2586
      %v2589 = vmul.f32 %v2548, %v2586
      %v2590 = vmul.f32 %v2553, %v2586
      %v2591 = vmul.f32 %v2558, %v2586
      %v2592 = vmul.f32 %v2563, %v2586
      %v2593 = vmul.f32 %v2568, %v2586
      %v2594 = vmul.f32 %v2573, %v2586
      %v2595 = vmul.f32 %v2578, %v2586
      %v2596 = vld [vmem:[%s15] sm:$0x1]
      %v2598 = vlaneseq
      %v2599 = vshrl.u32 %v2598, 7
      %v2600 = vsub.s32 0, %v2599
      %v2601 = vrot.slane %v2596, %v2600
      %v2603 = vadd.f32 %v2588, %v2601
      %v2604 = vadd.f32 %v2589, %v2601
      %v2605 = vadd.f32 %v2590, %v2601
      %v2606 = vadd.f32 %v2591, %v2601
      %v2607 = vadd.f32 %v2592, %v2601
      %v2608 = vadd.f32 %v2593, %v2601
      %v2609 = vadd.f32 %v2594, %v2601
      %v2610 = vadd.f32 %v2595, %v2601
      %v2611 = vxor.u32 %v2603, 2147483648
      %v2612 = vxor.u32 %v2604, 2147483648
      %v2613 = vxor.u32 %v2605, 2147483648
      %v2614 = vxor.u32 %v2606, 2147483648
      %v2615 = vxor.u32 %v2607, 2147483648
      %v2616 = vxor.u32 %v2608, 2147483648
      %v2617 = vxor.u32 %v2609, 2147483648
      %v2618 = vxor.u32 %v2610, 2147483648
      %v2619 = vmul.f32 %v2611, 1.442695
      %v2620 = vpow.pop %v2619
      %v2621 = vmul.f32 %v2612, 1.442695
      %v2622 = vpow.pop %v2621
      %v2623 = vmul.f32 %v2613, 1.442695
      %v2624 = vpow.pop %v2623
      %v2625 = vmul.f32 %v2614, 1.442695
      %v2626 = vpow.pop %v2625
      %v2627 = vmul.f32 %v2615, 1.442695
      %v2628 = vpow.pop %v2627
      %v2629 = vmul.f32 %v2616, 1.442695
      %v2630 = vpow.pop %v2629
      %v2631 = vmul.f32 %v2617, 1.442695
      %v2632 = vpow.pop %v2631
      %v2633 = vmul.f32 %v2618, 1.442695
      %v2634 = vpow.pop %v2633
      %v2635 = vadd.f32 %v2620, 1.0
      %v2636 = vadd.f32 %v2622, 1.0
      %v2637 = vadd.f32 %v2624, 1.0
      %v2638 = vadd.f32 %v2626, 1.0
      %v2639 = vadd.f32 %v2628, 1.0
      %v2640 = vadd.f32 %v2630, 1.0
      %v2641 = vadd.f32 %v2632, 1.0
      %v2642 = vadd.f32 %v2634, 1.0
      %v2643 = vrcp.pop %v2635
      %v2644 = vmul.f32 1.0, %v2643
      %v2645 = vrcp.pop %v2636
      %v2646 = vmul.f32 1.0, %v2645
      %v2647 = vrcp.pop %v2637
      %v2648 = vmul.f32 1.0, %v2647
      %v2649 = vrcp.pop %v2638
      %v2650 = vmul.f32 1.0, %v2649
      %v2651 = vrcp.pop %v2639
      %v2652 = vmul.f32 1.0, %v2651
      %v2653 = vrcp.pop %v2640
      %v2654 = vmul.f32 1.0, %v2653
      %v2655 = vrcp.pop %v2641
      %v2656 = vmul.f32 1.0, %v2655
      %v2657 = vrcp.pop %v2642
      %v2658 = vmul.f32 1.0, %v2657
      %v2659 = vmul.f32 %v2603, %v2644
      %v2660 = vmul.f32 %v2604, %v2646
      %v2661 = vmul.f32 %v2605, %v2648
      %v2662 = vmul.f32 %v2606, %v2650
      %v2663 = vmul.f32 %v2607, %v2652
      %v2664 = vmul.f32 %v2608, %v2654
      %v2665 = vmul.f32 %v2609, %v2656
      %v2666 = vmul.f32 %v2610, %v2658
      %2667 = vst.msk [vmem:[%s561] sm:$0xff] %vm885, %v2659
      %2668 = vst.msk [vmem:[%s561 + $0x8] sm:$0xff] %vm885, %v2660
      %2669 = vst.msk [vmem:[%s561 + $0x10] sm:$0xff] %vm885, %v2661
      %2670 = vst.msk [vmem:[%s561 + $0x18] sm:$0xff] %vm885, %v2662
      %2671 = vst.msk [vmem:[%s561 + $0x20] sm:$0xff] %vm885, %v2663
      %2672 = vst.msk [vmem:[%s561 + $0x28] sm:$0xff] %vm885, %v2664
      %2673 = vst.msk [vmem:[%s561 + $0x30] sm:$0xff] %vm885, %v2665
      %2674 = vst.msk [vmem:[%s561 + $0x38] sm:$0xff] %vm885, %v2666
      %p2675 = scmp.lt.s32.totalorder %s29, 1
      %s2676 = scalar_select %p2675, %s29, 1
      %s2677 = smul.addr %s2676, 8
      %s2678 = smul.addr %s2677, 8
      %s2679 = scalar_lea.vmem %s16, %s2678
      %p2680 = scmp.lt.s32.totalorder %s29, 1
      %s2681 = scalar_select %p2680, %s29, 1
      %s2682 = smul.addr %s2681, 8
      %s2683 = smul.addr %s2682, 8
      %s2684 = scalar_lea.vmem %s17, %s2683
      // Predicated region
      $region85: #{residual_downsample_forward.1} parent=83 // pred_check
        %p2685 = pneg %p388
      $region86: #{residual_downsample_forward.1} parent=83 // pred_check_branch
        %2687 = sbr.rel (%p2685) target = $region88
      $region87: #{residual_downsample_forward.1} parent=83 // pred_region
        _
      $region88: #{residual_downsample_forward.1} parent=83 // pred_fallthru
        _
      // Predicated region
      $region89: #{residual_downsample_forward.1} parent=83 // pred_check
        %p2688 = pneg %p414
      $region90: #{residual_downsample_forward.1} parent=83 // pred_check_branch
        %2690 = sbr.rel (%p2688) target = $region92
      $region91: #{residual_downsample_forward.1} parent=83 // pred_region
        _
      $region92: #{residual_downsample_forward.1} parent=83 // pred_fallthru
        _
    $region84: #{residual_downsample_forward.1} parent=5 // pred_fallthru
      _
    %p2691 = scmp.le.s32.totalorder 2, %s24
    // Predicated region
    $region93: #{residual_downsample_forward.1} parent=5 // pred_check
      %p2692 = pneg %p2691
    $region94: #{residual_downsample_forward.1} parent=5 // pred_check_branch
      %2694 = sbr.rel (%p2692) target = $region96
    $region95: #{residual_downsample_forward.1} parent=5 // pred_region
      %s2695 = ssub.s32 %s24, 2
      // Predicated region
      $region97: #{residual_downsample_forward.1} parent=95 // pred_check
        %p2696 = pneg %p394
      $region98: #{residual_downsample_forward.1} parent=95 // pred_check_branch
        %2698 = sbr.rel (%p2696) target = $region100
      $region99: #{residual_downsample_forward.1} parent=95 // pred_region
        %p2699 = scmp.lt.s32.totalorder %s30, 1
        %s2700 = scalar_select %p2699, %s30, 1
        %s2701 = smul.addr %s2700, 8
        %s2702 = smul.addr %s2701, 8
        %s2703 = scalar_lea.vmem %s16, %s2702
      $region100: #{residual_downsample_forward.1} parent=95 // pred_fallthru
        _
      // Predicated region
      $region101: #{residual_downsample_forward.1} parent=95 // pred_check
        %p2704 = pneg %p420
      $region102: #{residual_downsample_forward.1} parent=95 // pred_check_branch
        %2706 = sbr.rel (%p2704) target = $region104
      $region103: #{residual_downsample_forward.1} parent=95 // pred_region
        %p2707 = scmp.lt.s32.totalorder %s30, 1
        %s2708 = scalar_select %p2707, %s30, 1
        %s2709 = smul.addr %s2708, 8
        %s2710 = smul.addr %s2709, 8
        %s2711 = scalar_lea.vmem %s17, %s2710
      $region104: #{residual_downsample_forward.1} parent=95 // pred_fallthru
        _
    $region96: #{residual_downsample_forward.1} parent=5 // pred_fallthru
      _
  $region6: #{residual_downsample_forward.1} parent=0 // loop_footer
    %s28 = sadd.s32 1, %s24
  $region7: #{residual_downsample_forward.1} parent=0 // loop_footer_branch
    %23 = sbr.rel target = $region3
  $region8: #{residual_downsample_forward.1} parent=0 // loop_exit
    _

</llo_original>
